<compile_context>
chip_gen: v6e
topology: v6e:2x2x1
jax: 0.10.0
libtpu: 0.0.40
codegen_flags: <defaults>
</compile_context>

<pallas_src>
import random
import numpy as np
import jax
import jax.numpy as jnp
from jax.experimental import pallas as pl
from jax.experimental.pallas import tpu as pltpu


# --------------------------------- fused Seq2Seq kernel -------------------------------
def seq2seq_kernel(tf_ref,                                  # scalar prefetch (SMEM): (T,) int32
                   src_ref,                                 # (T*B, D)  f32   VMEM
                   enc_wx_ref, enc_wh_ref,                  # (D, 3H), (H, 3H)  bf16
                   enc_bih_ref, enc_bhh_ref,                # (1, 3H), (1, 3H)  f32
                   dec_wx_ref, dec_wh_ref,                  # (D, 3H), (H, 3H)  bf16
                   dec_bih_ref, dec_bhh_ref,                # (1, 3H), (1, 3H)  f32
                   wout_ref, bout_ref,                      # (H, D) bf16, (1, D) f32
                   out_ref,                                 # (B, T*D) f32  lane-dense output
                   emb_ref):                                # (B, H)   f32  final encoder hidden
    B, H = emb_ref.shape
    TB, D = src_ref.shape
    T = TB // B
    f32, bf16 = jnp.float32, jnp.bfloat16

    # Small weight/bias slabs stay vreg-resident across the unrolled loops.
    enc_wh = enc_wh_ref[...]
    dec_wx = dec_wx_ref[...]
    dec_wh = dec_wh_ref[...]
    wout = wout_ref[...]
    enc_bhh = enc_bhh_ref[...]
    dec_bih = dec_bih_ref[...]
    dec_bhh = dec_bhh_ref[...]
    bout = bout_ref[...]

    # --- hoisted encoder input projection: ONE batched MXU push, off the serial chain ---
    gi_enc_all = jnp.dot(src_ref[...].astype(bf16), enc_wx_ref[...],
                         preferred_element_type=f32) + enc_bih_ref[...]      # (T*B, 3H)

    def gates(gi, gh, h):
        # gi/gh lanes [0:2H) are already aligned -> plain VPU add, one fused sigmoid push.
        rz = jax.nn.sigmoid(gi[:, :2 * H] + gh[:, :2 * H])
        r = rz[:, :H]
        z = rz[:, H:]
        n = jnp.tanh(gi[:, 2 * H:] + r * gh[:, 2 * H:])
        return (1.0 - z) * n + z * h

    # ---- encoder: T dependent steps, fully unrolled; only the K=H dot is on the chain ----
    h = jnp.zeros((B, H), f32)
    for t in range(T):
        gh = jnp.dot(h.astype(bf16), enc_wh, preferred_element_type=f32) + enc_bhh
        gi = gi_enc_all[t * B:(t + 1) * B, :]
        h = gates(gi, gh, h)
    emb_ref[...] = h                                        # single write of final hidden

    # ---- decoder: GRU cell + Linear, teacher forcing from SMEM flags ----
    hidden = h
    inp = src_ref[pl.ds(0, B), :]                           # input = trg[0, :]
    outs = []
    for t in range(T):
        # Two small MXU pushes that pipeline back-to-back; no per-step concat.
        gi = jnp.dot(inp.astype(bf16), dec_wx, preferred_element_type=f32) + dec_bih
        gh = jnp.dot(hidden.astype(bf16), dec_wh, preferred_element_type=f32) + dec_bhh
        hidden = gates(gi, gh, hidden)
        out = jnp.dot(hidden.astype(bf16), wout, preferred_element_type=f32) + bout
        outs.append(out)
        if t + 1 < T:
            use_teacher = tf_ref[t] != 0                    # cheap scalar SMEM read
            src_t = src_ref[pl.ds(t * B, B), :]             # static leading-dim slice
            inp = jnp.where(use_teacher, src_t, out)        # same indexing as the reference
    # One unmasked (8, 128) store instead of T masked 16-lane stores.
    out_ref[...] = jnp.concatenate(outs, axis=-1)


# --------------------------------- host-side wrapper ----------------------------------
def seq2seq_forward(src_bsd, enc_p, dec_p, tf_flags):
    B, T, D = src_bsd.shape
    H = enc_p["whh_t"].shape[0]
    bf16 = jnp.bfloat16

    # (B, T, D) -> (T, B, D) -> (T*B, D): one-time free host transpose/reshape so the
    # kernel gets static leading-dim slices instead of cross-sublane gathers.
    src_flat = jnp.transpose(src_bsd, (1, 0, 2)).reshape(T * B, D)

    def full_spec(shape):
        return pl.BlockSpec(shape, lambda i, tf, _n=len(shape): (0,) * _n)

    out_flat, emb = pl.pallas_call(
        seq2seq_kernel,
        out_shape=(jax.ShapeDtypeStruct((B, T * D), jnp.float32),
                   jax.ShapeDtypeStruct((B, H), jnp.float32)),
        grid_spec=pltpu.PrefetchScalarGridSpec(
            num_scalar_prefetch=1,
            grid=(1,),
            in_specs=[
                full_spec((T * B, D)),
                full_spec((D, 3 * H)), full_spec((H, 3 * H)),
                full_spec((1, 3 * H)), full_spec((1, 3 * H)),
                full_spec((D, 3 * H)), full_spec((H, 3 * H)),
                full_spec((1, 3 * H)), full_spec((1, 3 * H)),
                full_spec((H, D)), full_spec((1, D)),
            ],
            out_specs=[full_spec((B, T * D)), full_spec((B, H))],
        ),
        compiler_params=pltpu.CompilerParams(dimension_semantics=("arbitrary",)),
    )(tf_flags, src_flat,
      enc_p["wih_t"].astype(bf16), enc_p["whh_t"].astype(bf16),
      enc_p["bih"], enc_p["bhh"],
      dec_p["wih_t"].astype(bf16), dec_p["whh_t"].astype(bf16),
      dec_p["bih"], dec_p["bhh"],
      dec_p["wout_t"].astype(bf16), dec_p["bout"])

    outputs = out_flat.reshape(B, T, D)                     # free row-major reshape
    embs = emb[None, :, :]                                  # nn.GRU-style (1, B, H)
    return outputs, embs


# ------------------------------- pure-JAX f32 reference --------------------------------
def _gru_cell_ref(x, h, wih_t, whh_t, bih, bhh):
    H = h.shape[-1]
    hp = jax.lax.Precision.HIGHEST
    gi = jnp.dot(x, wih_t, precision=hp) + bih
    gh = jnp.dot(h, whh_t, precision=hp) + bhh
    r = jax.nn.sigmoid(gi[:, :H] + gh[:, :H])
    z = jax.nn.sigmoid(gi[:, H:2 * H] + gh[:, H:2 * H])
    n = jnp.tanh(gi[:, 2 * H:] + r * gh[:, 2 * H:])
    return (1.0 - z) * n + z * h


def seq2seq_ref(src_bsd, enc_p, dec_p, tf_flags_py):
    src = jnp.transpose(src_bsd, (1, 0, 2))
    trg = src
    T, B, D = src.shape
    hp = jax.lax.Precision.HIGHEST
    H = enc_p["whh_t"].shape[0]
    h = jnp.zeros((B, H), jnp.float32)
    for t in range(T):
        h = _gru_cell_ref(src[t], h, enc_p["wih_t"], enc_p["whh_t"],
                          enc_p["bih"], enc_p["bhh"])
    embs = h[None]
    hidden = h
    inp = trg[0]
    outs = []
    for t in range(T):
        hidden = _gru_cell_ref(inp, hidden, dec_p["wih_t"], dec_p["whh_t"],
                               dec_p["bih"], dec_p["bhh"])
        out = jnp.dot(hidden, dec_p["wout_t"], precision=hp) + dec_p["bout"]
        outs.append(out)
        teacher = (tf_flags_py[t] == 1) and (t + 1 < T)
        inp = trg[t] if teacher else out
    outputs = jnp.transpose(jnp.stack(outs, 0), (1, 0, 2))
    return outputs, embs


# ------------------------------------ main ---------------------------------------
def _init_params(key, D, H):
    """Deterministic init mimicking PyTorch's U(-1/sqrt(H), 1/sqrt(H))."""
    s = 1.0 / np.sqrt(H)
    ks = jax.random.split(key, 7)
    u = lambda k, shape: jax.random.uniform(k, shape, jnp.float32, -s, s)
    return {
        "wih_t": u(ks[0], (D, 3 * H)),     # transposed nn.GRU weight_ih (3H, D)
        "whh_t": u(ks[1], (H, 3 * H)),     # transposed nn.GRU weight_hh (3H, H)
        "bih":   u(ks[2], (1, 3 * H)),
        "bhh":   u(ks[3], (1, 3 * H)),
        "wout_t": u(ks[4], (H, D)),        # decoder Linear(hid_dim, output_dim).T
        "bout":  u(ks[5], (1, D)),
    }


if __name__ == "__main__":
    B, T, D, H = 8, 8, 16, 32            # batch, seq, feat(=output_dim), hid_dim

    key = jax.random.PRNGKey(0)
    k_src, k_enc, k_dec = jax.random.split(key, 3)
    src = jax.random.normal(k_src, (B, T, D), jnp.float32)   # (batch, seq, feat)

    enc_p = _init_params(k_enc, D, H)
    dec_p = _init_params(k_dec, D, H)

    # deterministic teacher-forcing decisions (replaces random.random() < 0.75)
    random.seed(0)
    tf_flags_py = [1 if random.random() < 0.75 else 0 for _ in range(T)]
    tf_flags = jnp.asarray(tf_flags_py, dtype=jnp.int32)

    outputs, embs = seq2seq_forward(src, enc_p, dec_p, tf_flags)
    outputs = jax.block_until_ready(outputs)
    embs = jax.block_until_ready(embs)

    ref_out, ref_embs = seq2seq_ref(src, enc_p, dec_p, tf_flags_py)
    assert outputs.shape == (B, T, D) and embs.shape == (1, B, H)
    # Kernel uses bf16 MXU operands (per perf review); compared against the
    # Precision.HIGHEST f32 reference, so tolerance is loosened accordingly.
    np.testing.assert_allclose(np.asarray(outputs), np.asarray(ref_out),
                               atol=5e-2, rtol=5e-2)
    np.testing.assert_allclose(np.asarray(embs), np.asarray(ref_embs),
                               atol=5e-2, rtol=5e-2)

    print("KERNEL_OK")
</pallas_src>

<mosaic_0001>
module attributes {stable_mosaic.version = 11 : i64} {
  func.func @seq2seq_kernel(%arg0: i32, %arg1: memref<8xi32, #tpu.memory_space<smem>>, %arg2: memref<64x16xf32, #tpu.memory_space<vmem>>, %arg3: memref<16x96xbf16, #tpu.memory_space<vmem>>, %arg4: memref<32x96xbf16, #tpu.memory_space<vmem>>, %arg5: memref<1x96xf32, #tpu.memory_space<vmem>>, %arg6: memref<1x96xf32, #tpu.memory_space<vmem>>, %arg7: memref<16x96xbf16, #tpu.memory_space<vmem>>, %arg8: memref<32x96xbf16, #tpu.memory_space<vmem>>, %arg9: memref<1x96xf32, #tpu.memory_space<vmem>>, %arg10: memref<1x96xf32, #tpu.memory_space<vmem>>, %arg11: memref<32x16xbf16, #tpu.memory_space<vmem>>, %arg12: memref<1x16xf32, #tpu.memory_space<vmem>>, %arg13: memref<8x128xf32, #tpu.memory_space<vmem>>, %arg14: memref<8x32xf32, #tpu.memory_space<vmem>>) attributes {dimension_semantics = [#tpu.dimension_semantics<arbitrary>], iteration_bounds = array<i64: 1>, scalar_prefetch = 1 : i64, scratch_operands = 0 : i64, tpu.core_type = #tpu.core_type<tc>, window_params = [{pipeline_mode = #tpu.pipeline_mode<synchronous>, transform_indices = @transform_0, window_bounds = array<i64: 64, 16>}, {pipeline_mode = #tpu.pipeline_mode<synchronous>, transform_indices = @transform_1, window_bounds = array<i64: 16, 96>}, {pipeline_mode = #tpu.pipeline_mode<synchronous>, transform_indices = @transform_2, window_bounds = array<i64: 32, 96>}, {pipeline_mode = #tpu.pipeline_mode<synchronous>, transform_indices = @transform_3, window_bounds = array<i64: 1, 96>}, {pipeline_mode = #tpu.pipeline_mode<synchronous>, transform_indices = @transform_4, window_bounds = array<i64: 1, 96>}, {pipeline_mode = #tpu.pipeline_mode<synchronous>, transform_indices = @transform_5, window_bounds = array<i64: 16, 96>}, {pipeline_mode = #tpu.pipeline_mode<synchronous>, transform_indices = @transform_6, window_bounds = array<i64: 32, 96>}, {pipeline_mode = #tpu.pipeline_mode<synchronous>, transform_indices = @transform_7, window_bounds = array<i64: 1, 96>}, {pipeline_mode = #tpu.pipeline_mode<synchronous>, transform_indices = @transform_8, window_bounds = array<i64: 1, 96>}, {pipeline_mode = #tpu.pipeline_mode<synchronous>, transform_indices = @transform_9, window_bounds = array<i64: 32, 16>}, {pipeline_mode = #tpu.pipeline_mode<synchronous>, transform_indices = @transform_10, window_bounds = array<i64: 1, 16>}, {pipeline_mode = #tpu.pipeline_mode<synchronous>, transform_indices = @transform_11, window_bounds = array<i64: 8, 128>}, {pipeline_mode = #tpu.pipeline_mode<synchronous>, transform_indices = @transform_12, window_bounds = array<i64: 8, 32>}]} {
    %c0 = arith.constant 0 : index
    %c0_0 = arith.constant 0 : index
    %0 = vector.load %arg4[%c0, %c0_0] : memref<32x96xbf16, #tpu.memory_space<vmem>>, vector<32x96xbf16>
    %c0_1 = arith.constant 0 : index
    %c0_2 = arith.constant 0 : index
    %1 = vector.load %arg7[%c0_1, %c0_2] : memref<16x96xbf16, #tpu.memory_space<vmem>>, vector<16x96xbf16>
    %c0_3 = arith.constant 0 : index
    %c0_4 = arith.constant 0 : index
    %2 = vector.load %arg8[%c0_3, %c0_4] : memref<32x96xbf16, #tpu.memory_space<vmem>>, vector<32x96xbf16>
    %c0_5 = arith.constant 0 : index
    %c0_6 = arith.constant 0 : index
    %3 = vector.load %arg11[%c0_5, %c0_6] : memref<32x16xbf16, #tpu.memory_space<vmem>>, vector<32x16xbf16>
    %c0_7 = arith.constant 0 : index
    %c0_8 = arith.constant 0 : index
    %4 = vector.load %arg6[%c0_7, %c0_8] : memref<1x96xf32, #tpu.memory_space<vmem>>, vector<1x96xf32>
    %c0_9 = arith.constant 0 : index
    %c0_10 = arith.constant 0 : index
    %5 = vector.load %arg9[%c0_9, %c0_10] : memref<1x96xf32, #tpu.memory_space<vmem>>, vector<1x96xf32>
    %c0_11 = arith.constant 0 : index
    %c0_12 = arith.constant 0 : index
    %6 = vector.load %arg10[%c0_11, %c0_12] : memref<1x96xf32, #tpu.memory_space<vmem>>, vector<1x96xf32>
    %c0_13 = arith.constant 0 : index
    %c0_14 = arith.constant 0 : index
    %7 = vector.load %arg12[%c0_13, %c0_14] : memref<1x16xf32, #tpu.memory_space<vmem>>, vector<1x16xf32>
    %c0_15 = arith.constant 0 : index
    %c0_16 = arith.constant 0 : index
    %8 = vector.load %arg2[%c0_15, %c0_16] : memref<64x16xf32, #tpu.memory_space<vmem>>, vector<64x16xf32>
    %9 = arith.truncf %8 : vector<64x16xf32> to vector<64x16xbf16>
    %c0_17 = arith.constant 0 : index
    %c0_18 = arith.constant 0 : index
    %10 = vector.load %arg3[%c0_17, %c0_18] : memref<16x96xbf16, #tpu.memory_space<vmem>>, vector<16x96xbf16>
    %cst = arith.constant dense<0.000000e+00> : vector<64x96xf32>
    %11 = tpu.matmul %9, %10, %cst {dimension_numbers = #tpu.dot_dimension_numbers<[1], [0], [0], [1], [0, 0, 1, 1], [], []>} : vector<64x16xbf16>, vector<16x96xbf16>, vector<64x96xf32> -> vector<64x96xf32>
    %c0_19 = arith.constant 0 : index
    %c0_20 = arith.constant 0 : index
    %12 = vector.load %arg5[%c0_19, %c0_20] : memref<1x96xf32, #tpu.memory_space<vmem>>, vector<1x96xf32>
    %13 = vector.broadcast %12 : vector<1x96xf32> to vector<64x96xf32>
    %14 = arith.addf %11, %13 : vector<64x96xf32>
    %cst_21 = arith.constant 0.000000e+00 : f32
    %15 = vector.broadcast %cst_21 : f32 to vector<8x32xf32>
    %16 = arith.truncf %15 : vector<8x32xf32> to vector<8x32xbf16>
    %cst_22 = arith.constant dense<0.000000e+00> : vector<8x96xf32>
    %17 = tpu.matmul %16, %0, %cst_22 {dimension_numbers = #tpu.dot_dimension_numbers<[1], [0], [0], [1], [0, 0, 1, 1], [], []>} : vector<8x32xbf16>, vector<32x96xbf16>, vector<8x96xf32> -> vector<8x96xf32>
    %18 = vector.broadcast %4 : vector<1x96xf32> to vector<8x96xf32>
    %19 = arith.addf %17, %18 : vector<8x96xf32>
    %20 = vector.extract_strided_slice %14 {offsets = [0, 0], sizes = [8, 96], strides = [1, 1]} : vector<64x96xf32> to vector<8x96xf32>
    %21 = vector.extract_strided_slice %20 {offsets = [0, 0], sizes = [8, 64], strides = [1, 1]} : vector<8x96xf32> to vector<8x64xf32>
    %22 = vector.extract_strided_slice %19 {offsets = [0, 0], sizes = [8, 64], strides = [1, 1]} : vector<8x96xf32> to vector<8x64xf32>
    %23 = arith.addf %21, %22 : vector<8x64xf32>
    %24 = arith.negf %23 : vector<8x64xf32>
    %25 = math.exp %24 : vector<8x64xf32>
    %cst_23 = arith.constant 1.000000e+00 : f32
    %26 = vector.broadcast %cst_23 : f32 to vector<8x64xf32>
    %27 = arith.addf %26, %25 : vector<8x64xf32>
    %28 = arith.divf %26, %27 : vector<8x64xf32>
    %29 = vector.extract_strided_slice %28 {offsets = [0, 0], sizes = [8, 32], strides = [1, 1]} : vector<8x64xf32> to vector<8x32xf32>
    %30 = vector.extract_strided_slice %28 {offsets = [0, 32], sizes = [8, 32], strides = [1, 1]} : vector<8x64xf32> to vector<8x32xf32>
    %31 = vector.extract_strided_slice %20 {offsets = [0, 64], sizes = [8, 32], strides = [1, 1]} : vector<8x96xf32> to vector<8x32xf32>
    %32 = vector.extract_strided_slice %19 {offsets = [0, 64], sizes = [8, 32], strides = [1, 1]} : vector<8x96xf32> to vector<8x32xf32>
    %33 = arith.mulf %29, %32 : vector<8x32xf32>
    %34 = arith.addf %31, %33 : vector<8x32xf32>
    %35 = math.tanh %34 : vector<8x32xf32>
    %cst_24 = arith.constant 1.000000e+00 : f32
    %36 = vector.broadcast %cst_24 : f32 to vector<8x32xf32>
    %37 = arith.subf %36, %30 : vector<8x32xf32>
    %38 = arith.mulf %37, %35 : vector<8x32xf32>
    %39 = arith.mulf %30, %15 : vector<8x32xf32>
    %40 = arith.addf %38, %39 : vector<8x32xf32>
    %41 = arith.truncf %40 : vector<8x32xf32> to vector<8x32xbf16>
    %cst_25 = arith.constant dense<0.000000e+00> : vector<8x96xf32>
    %42 = tpu.matmul %41, %0, %cst_25 {dimension_numbers = #tpu.dot_dimension_numbers<[1], [0], [0], [1], [0, 0, 1, 1], [], []>} : vector<8x32xbf16>, vector<32x96xbf16>, vector<8x96xf32> -> vector<8x96xf32>
    %43 = vector.broadcast %4 : vector<1x96xf32> to vector<8x96xf32>
    %44 = arith.addf %42, %43 : vector<8x96xf32>
    %45 = vector.extract_strided_slice %14 {offsets = [8, 0], sizes = [8, 96], strides = [1, 1]} : vector<64x96xf32> to vector<8x96xf32>
    %46 = vector.extract_strided_slice %45 {offsets = [0, 0], sizes = [8, 64], strides = [1, 1]} : vector<8x96xf32> to vector<8x64xf32>
    %47 = vector.extract_strided_slice %44 {offsets = [0, 0], sizes = [8, 64], strides = [1, 1]} : vector<8x96xf32> to vector<8x64xf32>
    %48 = arith.addf %46, %47 : vector<8x64xf32>
    %49 = arith.negf %48 : vector<8x64xf32>
    %50 = math.exp %49 : vector<8x64xf32>
    %cst_26 = arith.constant 1.000000e+00 : f32
    %51 = vector.broadcast %cst_26 : f32 to vector<8x64xf32>
    %52 = arith.addf %51, %50 : vector<8x64xf32>
    %53 = arith.divf %51, %52 : vector<8x64xf32>
    %54 = vector.extract_strided_slice %53 {offsets = [0, 0], sizes = [8, 32], strides = [1, 1]} : vector<8x64xf32> to vector<8x32xf32>
    %55 = vector.extract_strided_slice %53 {offsets = [0, 32], sizes = [8, 32], strides = [1, 1]} : vector<8x64xf32> to vector<8x32xf32>
    %56 = vector.extract_strided_slice %45 {offsets = [0, 64], sizes = [8, 32], strides = [1, 1]} : vector<8x96xf32> to vector<8x32xf32>
    %57 = vector.extract_strided_slice %44 {offsets = [0, 64], sizes = [8, 32], strides = [1, 1]} : vector<8x96xf32> to vector<8x32xf32>
    %58 = arith.mulf %54, %57 : vector<8x32xf32>
    %59 = arith.addf %56, %58 : vector<8x32xf32>
    %60 = math.tanh %59 : vector<8x32xf32>
    %cst_27 = arith.constant 1.000000e+00 : f32
    %61 = vector.broadcast %cst_27 : f32 to vector<8x32xf32>
    %62 = arith.subf %61, %55 : vector<8x32xf32>
    %63 = arith.mulf %62, %60 : vector<8x32xf32>
    %64 = arith.mulf %55, %40 : vector<8x32xf32>
    %65 = arith.addf %63, %64 : vector<8x32xf32>
    %66 = arith.truncf %65 : vector<8x32xf32> to vector<8x32xbf16>
    %cst_28 = arith.constant dense<0.000000e+00> : vector<8x96xf32>
    %67 = tpu.matmul %66, %0, %cst_28 {dimension_numbers = #tpu.dot_dimension_numbers<[1], [0], [0], [1], [0, 0, 1, 1], [], []>} : vector<8x32xbf16>, vector<32x96xbf16>, vector<8x96xf32> -> vector<8x96xf32>
    %68 = vector.broadcast %4 : vector<1x96xf32> to vector<8x96xf32>
    %69 = arith.addf %67, %68 : vector<8x96xf32>
    %70 = vector.extract_strided_slice %14 {offsets = [16, 0], sizes = [8, 96], strides = [1, 1]} : vector<64x96xf32> to vector<8x96xf32>
    %71 = vector.extract_strided_slice %70 {offsets = [0, 0], sizes = [8, 64], strides = [1, 1]} : vector<8x96xf32> to vector<8x64xf32>
    %72 = vector.extract_strided_slice %69 {offsets = [0, 0], sizes = [8, 64], strides = [1, 1]} : vector<8x96xf32> to vector<8x64xf32>
    %73 = arith.addf %71, %72 : vector<8x64xf32>
    %74 = arith.negf %73 : vector<8x64xf32>
    %75 = math.exp %74 : vector<8x64xf32>
    %cst_29 = arith.constant 1.000000e+00 : f32
    %76 = vector.broadcast %cst_29 : f32 to vector<8x64xf32>
    %77 = arith.addf %76, %75 : vector<8x64xf32>
    %78 = arith.divf %76, %77 : vector<8x64xf32>
    %79 = vector.extract_strided_slice %78 {offsets = [0, 0], sizes = [8, 32], strides = [1, 1]} : vector<8x64xf32> to vector<8x32xf32>
    %80 = vector.extract_strided_slice %78 {offsets = [0, 32], sizes = [8, 32], strides = [1, 1]} : vector<8x64xf32> to vector<8x32xf32>
    %81 = vector.extract_strided_slice %70 {offsets = [0, 64], sizes = [8, 32], strides = [1, 1]} : vector<8x96xf32> to vector<8x32xf32>
    %82 = vector.extract_strided_slice %69 {offsets = [0, 64], sizes = [8, 32], strides = [1, 1]} : vector<8x96xf32> to vector<8x32xf32>
    %83 = arith.mulf %79, %82 : vector<8x32xf32>
    %84 = arith.addf %81, %83 : vector<8x32xf32>
    %85 = math.tanh %84 : vector<8x32xf32>
    %cst_30 = arith.constant 1.000000e+00 : f32
    %86 = vector.broadcast %cst_30 : f32 to vector<8x32xf32>
    %87 = arith.subf %86, %80 : vector<8x32xf32>
    %88 = arith.mulf %87, %85 : vector<8x32xf32>
    %89 = arith.mulf %80, %65 : vector<8x32xf32>
    %90 = arith.addf %88, %89 : vector<8x32xf32>
    %91 = arith.truncf %90 : vector<8x32xf32> to vector<8x32xbf16>
    %cst_31 = arith.constant dense<0.000000e+00> : vector<8x96xf32>
    %92 = tpu.matmul %91, %0, %cst_31 {dimension_numbers = #tpu.dot_dimension_numbers<[1], [0], [0], [1], [0, 0, 1, 1], [], []>} : vector<8x32xbf16>, vector<32x96xbf16>, vector<8x96xf32> -> vector<8x96xf32>
    %93 = vector.broadcast %4 : vector<1x96xf32> to vector<8x96xf32>
    %94 = arith.addf %92, %93 : vector<8x96xf32>
    %95 = vector.extract_strided_slice %14 {offsets = [24, 0], sizes = [8, 96], strides = [1, 1]} : vector<64x96xf32> to vector<8x96xf32>
    %96 = vector.extract_strided_slice %95 {offsets = [0, 0], sizes = [8, 64], strides = [1, 1]} : vector<8x96xf32> to vector<8x64xf32>
    %97 = vector.extract_strided_slice %94 {offsets = [0, 0], sizes = [8, 64], strides = [1, 1]} : vector<8x96xf32> to vector<8x64xf32>
    %98 = arith.addf %96, %97 : vector<8x64xf32>
    %99 = arith.negf %98 : vector<8x64xf32>
    %100 = math.exp %99 : vector<8x64xf32>
    %cst_32 = arith.constant 1.000000e+00 : f32
    %101 = vector.broadcast %cst_32 : f32 to vector<8x64xf32>
    %102 = arith.addf %101, %100 : vector<8x64xf32>
    %103 = arith.divf %101, %102 : vector<8x64xf32>
    %104 = vector.extract_strided_slice %103 {offsets = [0, 0], sizes = [8, 32], strides = [1, 1]} : vector<8x64xf32> to vector<8x32xf32>
    %105 = vector.extract_strided_slice %103 {offsets = [0, 32], sizes = [8, 32], strides = [1, 1]} : vector<8x64xf32> to vector<8x32xf32>
    %106 = vector.extract_strided_slice %95 {offsets = [0, 64], sizes = [8, 32], strides = [1, 1]} : vector<8x96xf32> to vector<8x32xf32>
    %107 = vector.extract_strided_slice %94 {offsets = [0, 64], sizes = [8, 32], strides = [1, 1]} : vector<8x96xf32> to vector<8x32xf32>
    %108 = arith.mulf %104, %107 : vector<8x32xf32>
    %109 = arith.addf %106, %108 : vector<8x32xf32>
    %110 = math.tanh %109 : vector<8x32xf32>
    %cst_33 = arith.constant 1.000000e+00 : f32
    %111 = vector.broadcast %cst_33 : f32 to vector<8x32xf32>
    %112 = arith.subf %111, %105 : vector<8x32xf32>
    %113 = arith.mulf %112, %110 : vector<8x32xf32>
    %114 = arith.mulf %105, %90 : vector<8x32xf32>
    %115 = arith.addf %113, %114 : vector<8x32xf32>
    %116 = arith.truncf %115 : vector<8x32xf32> to vector<8x32xbf16>
    %cst_34 = arith.constant dense<0.000000e+00> : vector<8x96xf32>
    %117 = tpu.matmul %116, %0, %cst_34 {dimension_numbers = #tpu.dot_dimension_numbers<[1], [0], [0], [1], [0, 0, 1, 1], [], []>} : vector<8x32xbf16>, vector<32x96xbf16>, vector<8x96xf32> -> vector<8x96xf32>
    %118 = vector.broadcast %4 : vector<1x96xf32> to vector<8x96xf32>
    %119 = arith.addf %117, %118 : vector<8x96xf32>
    %120 = vector.extract_strided_slice %14 {offsets = [32, 0], sizes = [8, 96], strides = [1, 1]} : vector<64x96xf32> to vector<8x96xf32>
    %121 = vector.extract_strided_slice %120 {offsets = [0, 0], sizes = [8, 64], strides = [1, 1]} : vector<8x96xf32> to vector<8x64xf32>
    %122 = vector.extract_strided_slice %119 {offsets = [0, 0], sizes = [8, 64], strides = [1, 1]} : vector<8x96xf32> to vector<8x64xf32>
    %123 = arith.addf %121, %122 : vector<8x64xf32>
    %124 = arith.negf %123 : vector<8x64xf32>
    %125 = math.exp %124 : vector<8x64xf32>
    %cst_35 = arith.constant 1.000000e+00 : f32
    %126 = vector.broadcast %cst_35 : f32 to vector<8x64xf32>
    %127 = arith.addf %126, %125 : vector<8x64xf32>
    %128 = arith.divf %126, %127 : vector<8x64xf32>
    %129 = vector.extract_strided_slice %128 {offsets = [0, 0], sizes = [8, 32], strides = [1, 1]} : vector<8x64xf32> to vector<8x32xf32>
    %130 = vector.extract_strided_slice %128 {offsets = [0, 32], sizes = [8, 32], strides = [1, 1]} : vector<8x64xf32> to vector<8x32xf32>
    %131 = vector.extract_strided_slice %120 {offsets = [0, 64], sizes = [8, 32], strides = [1, 1]} : vector<8x96xf32> to vector<8x32xf32>
    %132 = vector.extract_strided_slice %119 {offsets = [0, 64], sizes = [8, 32], strides = [1, 1]} : vector<8x96xf32> to vector<8x32xf32>
    %133 = arith.mulf %129, %132 : vector<8x32xf32>
    %134 = arith.addf %131, %133 : vector<8x32xf32>
    %135 = math.tanh %134 : vector<8x32xf32>
    %cst_36 = arith.constant 1.000000e+00 : f32
    %136 = vector.broadcast %cst_36 : f32 to vector<8x32xf32>
    %137 = arith.subf %136, %130 : vector<8x32xf32>
    %138 = arith.mulf %137, %135 : vector<8x32xf32>
    %139 = arith.mulf %130, %115 : vector<8x32xf32>
    %140 = arith.addf %138, %139 : vector<8x32xf32>
    %141 = arith.truncf %140 : vector<8x32xf32> to vector<8x32xbf16>
    %cst_37 = arith.constant dense<0.000000e+00> : vector<8x96xf32>
    %142 = tpu.matmul %141, %0, %cst_37 {dimension_numbers = #tpu.dot_dimension_numbers<[1], [0], [0], [1], [0, 0, 1, 1], [], []>} : vector<8x32xbf16>, vector<32x96xbf16>, vector<8x96xf32> -> vector<8x96xf32>
    %143 = vector.broadcast %4 : vector<1x96xf32> to vector<8x96xf32>
    %144 = arith.addf %142, %143 : vector<8x96xf32>
    %145 = vector.extract_strided_slice %14 {offsets = [40, 0], sizes = [8, 96], strides = [1, 1]} : vector<64x96xf32> to vector<8x96xf32>
    %146 = vector.extract_strided_slice %145 {offsets = [0, 0], sizes = [8, 64], strides = [1, 1]} : vector<8x96xf32> to vector<8x64xf32>
    %147 = vector.extract_strided_slice %144 {offsets = [0, 0], sizes = [8, 64], strides = [1, 1]} : vector<8x96xf32> to vector<8x64xf32>
    %148 = arith.addf %146, %147 : vector<8x64xf32>
    %149 = arith.negf %148 : vector<8x64xf32>
    %150 = math.exp %149 : vector<8x64xf32>
    %cst_38 = arith.constant 1.000000e+00 : f32
    %151 = vector.broadcast %cst_38 : f32 to vector<8x64xf32>
    %152 = arith.addf %151, %150 : vector<8x64xf32>
    %153 = arith.divf %151, %152 : vector<8x64xf32>
    %154 = vector.extract_strided_slice %153 {offsets = [0, 0], sizes = [8, 32], strides = [1, 1]} : vector<8x64xf32> to vector<8x32xf32>
    %155 = vector.extract_strided_slice %153 {offsets = [0, 32], sizes = [8, 32], strides = [1, 1]} : vector<8x64xf32> to vector<8x32xf32>
    %156 = vector.extract_strided_slice %145 {offsets = [0, 64], sizes = [8, 32], strides = [1, 1]} : vector<8x96xf32> to vector<8x32xf32>
    %157 = vector.extract_strided_slice %144 {offsets = [0, 64], sizes = [8, 32], strides = [1, 1]} : vector<8x96xf32> to vector<8x32xf32>
    %158 = arith.mulf %154, %157 : vector<8x32xf32>
    %159 = arith.addf %156, %158 : vector<8x32xf32>
    %160 = math.tanh %159 : vector<8x32xf32>
    %cst_39 = arith.constant 1.000000e+00 : f32
    %161 = vector.broadcast %cst_39 : f32 to vector<8x32xf32>
    %162 = arith.subf %161, %155 : vector<8x32xf32>
    %163 = arith.mulf %162, %160 : vector<8x32xf32>
    %164 = arith.mulf %155, %140 : vector<8x32xf32>
    %165 = arith.addf %163, %164 : vector<8x32xf32>
    %166 = arith.truncf %165 : vector<8x32xf32> to vector<8x32xbf16>
    %cst_40 = arith.constant dense<0.000000e+00> : vector<8x96xf32>
    %167 = tpu.matmul %166, %0, %cst_40 {dimension_numbers = #tpu.dot_dimension_numbers<[1], [0], [0], [1], [0, 0, 1, 1], [], []>} : vector<8x32xbf16>, vector<32x96xbf16>, vector<8x96xf32> -> vector<8x96xf32>
    %168 = vector.broadcast %4 : vector<1x96xf32> to vector<8x96xf32>
    %169 = arith.addf %167, %168 : vector<8x96xf32>
    %170 = vector.extract_strided_slice %14 {offsets = [48, 0], sizes = [8, 96], strides = [1, 1]} : vector<64x96xf32> to vector<8x96xf32>
    %171 = vector.extract_strided_slice %170 {offsets = [0, 0], sizes = [8, 64], strides = [1, 1]} : vector<8x96xf32> to vector<8x64xf32>
    %172 = vector.extract_strided_slice %169 {offsets = [0, 0], sizes = [8, 64], strides = [1, 1]} : vector<8x96xf32> to vector<8x64xf32>
    %173 = arith.addf %171, %172 : vector<8x64xf32>
    %174 = arith.negf %173 : vector<8x64xf32>
    %175 = math.exp %174 : vector<8x64xf32>
    %cst_41 = arith.constant 1.000000e+00 : f32
    %176 = vector.broadcast %cst_41 : f32 to vector<8x64xf32>
    %177 = arith.addf %176, %175 : vector<8x64xf32>
    %178 = arith.divf %176, %177 : vector<8x64xf32>
    %179 = vector.extract_strided_slice %178 {offsets = [0, 0], sizes = [8, 32], strides = [1, 1]} : vector<8x64xf32> to vector<8x32xf32>
    %180 = vector.extract_strided_slice %178 {offsets = [0, 32], sizes = [8, 32], strides = [1, 1]} : vector<8x64xf32> to vector<8x32xf32>
    %181 = vector.extract_strided_slice %170 {offsets = [0, 64], sizes = [8, 32], strides = [1, 1]} : vector<8x96xf32> to vector<8x32xf32>
    %182 = vector.extract_strided_slice %169 {offsets = [0, 64], sizes = [8, 32], strides = [1, 1]} : vector<8x96xf32> to vector<8x32xf32>
    %183 = arith.mulf %179, %182 : vector<8x32xf32>
    %184 = arith.addf %181, %183 : vector<8x32xf32>
    %185 = math.tanh %184 : vector<8x32xf32>
    %cst_42 = arith.constant 1.000000e+00 : f32
    %186 = vector.broadcast %cst_42 : f32 to vector<8x32xf32>
    %187 = arith.subf %186, %180 : vector<8x32xf32>
    %188 = arith.mulf %187, %185 : vector<8x32xf32>
    %189 = arith.mulf %180, %165 : vector<8x32xf32>
    %190 = arith.addf %188, %189 : vector<8x32xf32>
    %191 = arith.truncf %190 : vector<8x32xf32> to vector<8x32xbf16>
    %cst_43 = arith.constant dense<0.000000e+00> : vector<8x96xf32>
    %192 = tpu.matmul %191, %0, %cst_43 {dimension_numbers = #tpu.dot_dimension_numbers<[1], [0], [0], [1], [0, 0, 1, 1], [], []>} : vector<8x32xbf16>, vector<32x96xbf16>, vector<8x96xf32> -> vector<8x96xf32>
    %193 = vector.broadcast %4 : vector<1x96xf32> to vector<8x96xf32>
    %194 = arith.addf %192, %193 : vector<8x96xf32>
    %195 = vector.extract_strided_slice %14 {offsets = [56, 0], sizes = [8, 96], strides = [1, 1]} : vector<64x96xf32> to vector<8x96xf32>
    %196 = vector.extract_strided_slice %195 {offsets = [0, 0], sizes = [8, 64], strides = [1, 1]} : vector<8x96xf32> to vector<8x64xf32>
    %197 = vector.extract_strided_slice %194 {offsets = [0, 0], sizes = [8, 64], strides = [1, 1]} : vector<8x96xf32> to vector<8x64xf32>
    %198 = arith.addf %196, %197 : vector<8x64xf32>
    %199 = arith.negf %198 : vector<8x64xf32>
    %200 = math.exp %199 : vector<8x64xf32>
    %cst_44 = arith.constant 1.000000e+00 : f32
    %201 = vector.broadcast %cst_44 : f32 to vector<8x64xf32>
    %202 = arith.addf %201, %200 : vector<8x64xf32>
    %203 = arith.divf %201, %202 : vector<8x64xf32>
    %204 = vector.extract_strided_slice %203 {offsets = [0, 0], sizes = [8, 32], strides = [1, 1]} : vector<8x64xf32> to vector<8x32xf32>
    %205 = vector.extract_strided_slice %203 {offsets = [0, 32], sizes = [8, 32], strides = [1, 1]} : vector<8x64xf32> to vector<8x32xf32>
    %206 = vector.extract_strided_slice %195 {offsets = [0, 64], sizes = [8, 32], strides = [1, 1]} : vector<8x96xf32> to vector<8x32xf32>
    %207 = vector.extract_strided_slice %194 {offsets = [0, 64], sizes = [8, 32], strides = [1, 1]} : vector<8x96xf32> to vector<8x32xf32>
    %208 = arith.mulf %204, %207 : vector<8x32xf32>
    %209 = arith.addf %206, %208 : vector<8x32xf32>
    %210 = math.tanh %209 : vector<8x32xf32>
    %cst_45 = arith.constant 1.000000e+00 : f32
    %211 = vector.broadcast %cst_45 : f32 to vector<8x32xf32>
    %212 = arith.subf %211, %205 : vector<8x32xf32>
    %213 = arith.mulf %212, %210 : vector<8x32xf32>
    %214 = arith.mulf %205, %190 : vector<8x32xf32>
    %215 = arith.addf %213, %214 : vector<8x32xf32>
    %c0_46 = arith.constant 0 : index
    %c0_47 = arith.constant 0 : index
    %216 = vector.load %arg14[%c0_46, %c0_47] : memref<8x32xf32, #tpu.memory_space<vmem>>, vector<8x32xf32>
    tpu.vector_store %arg14[%c0_46, %c0_47], %215 {strides = array<i32>} : memref<8x32xf32, #tpu.memory_space<vmem>>, vector<8x32xf32>,
    %c0_48 = arith.constant 0 : index
    %c0_49 = arith.constant 0 : index
    %217 = vector.load %arg2[%c0_48, %c0_49] : memref<64x16xf32, #tpu.memory_space<vmem>>, vector<8x16xf32>
    %218 = arith.truncf %217 : vector<8x16xf32> to vector<8x16xbf16>
    %cst_50 = arith.constant dense<0.000000e+00> : vector<8x96xf32>
    %219 = tpu.matmul %218, %1, %cst_50 {dimension_numbers = #tpu.dot_dimension_numbers<[1], [0], [0], [1], [0, 0, 1, 1], [], []>} : vector<8x16xbf16>, vector<16x96xbf16>, vector<8x96xf32> -> vector<8x96xf32>
    %220 = vector.broadcast %5 : vector<1x96xf32> to vector<8x96xf32>
    %221 = arith.addf %219, %220 : vector<8x96xf32>
    %222 = arith.truncf %215 : vector<8x32xf32> to vector<8x32xbf16>
    %cst_51 = arith.constant dense<0.000000e+00> : vector<8x96xf32>
    %223 = tpu.matmul %222, %2, %cst_51 {dimension_numbers = #tpu.dot_dimension_numbers<[1], [0], [0], [1], [0, 0, 1, 1], [], []>} : vector<8x32xbf16>, vector<32x96xbf16>, vector<8x96xf32> -> vector<8x96xf32>
    %224 = vector.broadcast %6 : vector<1x96xf32> to vector<8x96xf32>
    %225 = arith.addf %223, %224 : vector<8x96xf32>
    %226 = vector.extract_strided_slice %221 {offsets = [0, 0], sizes = [8, 64], strides = [1, 1]} : vector<8x96xf32> to vector<8x64xf32>
    %227 = vector.extract_strided_slice %225 {offsets = [0, 0], sizes = [8, 64], strides = [1, 1]} : vector<8x96xf32> to vector<8x64xf32>
    %228 = arith.addf %226, %227 : vector<8x64xf32>
    %229 = arith.negf %228 : vector<8x64xf32>
    %230 = math.exp %229 : vector<8x64xf32>
    %cst_52 = arith.constant 1.000000e+00 : f32
    %231 = vector.broadcast %cst_52 : f32 to vector<8x64xf32>
    %232 = arith.addf %231, %230 : vector<8x64xf32>
    %233 = arith.divf %231, %232 : vector<8x64xf32>
    %234 = vector.extract_strided_slice %233 {offsets = [0, 0], sizes = [8, 32], strides = [1, 1]} : vector<8x64xf32> to vector<8x32xf32>
    %235 = vector.extract_strided_slice %233 {offsets = [0, 32], sizes = [8, 32], strides = [1, 1]} : vector<8x64xf32> to vector<8x32xf32>
    %236 = vector.extract_strided_slice %221 {offsets = [0, 64], sizes = [8, 32], strides = [1, 1]} : vector<8x96xf32> to vector<8x32xf32>
    %237 = vector.extract_strided_slice %225 {offsets = [0, 64], sizes = [8, 32], strides = [1, 1]} : vector<8x96xf32> to vector<8x32xf32>
    %238 = arith.mulf %234, %237 : vector<8x32xf32>
    %239 = arith.addf %236, %238 : vector<8x32xf32>
    %240 = math.tanh %239 : vector<8x32xf32>
    %cst_53 = arith.constant 1.000000e+00 : f32
    %241 = vector.broadcast %cst_53 : f32 to vector<8x32xf32>
    %242 = arith.subf %241, %235 : vector<8x32xf32>
    %243 = arith.mulf %242, %240 : vector<8x32xf32>
    %244 = arith.mulf %235, %215 : vector<8x32xf32>
    %245 = arith.addf %243, %244 : vector<8x32xf32>
    %246 = arith.truncf %245 : vector<8x32xf32> to vector<8x32xbf16>
    %cst_54 = arith.constant dense<0.000000e+00> : vector<8x16xf32>
    %247 = tpu.matmul %246, %3, %cst_54 {dimension_numbers = #tpu.dot_dimension_numbers<[1], [0], [0], [1], [0, 0, 1, 1], [], []>} : vector<8x32xbf16>, vector<32x16xbf16>, vector<8x16xf32> -> vector<8x16xf32>
    %248 = vector.broadcast %7 : vector<1x16xf32> to vector<8x16xf32>
    %249 = arith.addf %247, %248 : vector<8x16xf32>
    %c0_55 = arith.constant 0 : index
    %250 = memref.load %arg1[%c0_55] : memref<8xi32, #tpu.memory_space<smem>>
    %c0_i32 = arith.constant 0 : i32
    %251 = arith.cmpi ne, %250, %c0_i32 : i32
    %c0_56 = arith.constant 0 : index
    %c0_57 = arith.constant 0 : index
    %252 = vector.load %arg2[%c0_56, %c0_57] : memref<64x16xf32, #tpu.memory_space<vmem>>, vector<8x16xf32>
    %253 = arith.select %251, %252, %249 : vector<8x16xf32>
    %254 = arith.truncf %253 : vector<8x16xf32> to vector<8x16xbf16>
    %cst_58 = arith.constant dense<0.000000e+00> : vector<8x96xf32>
    %255 = tpu.matmul %254, %1, %cst_58 {dimension_numbers = #tpu.dot_dimension_numbers<[1], [0], [0], [1], [0, 0, 1, 1], [], []>} : vector<8x16xbf16>, vector<16x96xbf16>, vector<8x96xf32> -> vector<8x96xf32>
    %256 = vector.broadcast %5 : vector<1x96xf32> to vector<8x96xf32>
    %257 = arith.addf %255, %256 : vector<8x96xf32>
    %258 = arith.truncf %245 : vector<8x32xf32> to vector<8x32xbf16>
    %cst_59 = arith.constant dense<0.000000e+00> : vector<8x96xf32>
    %259 = tpu.matmul %258, %2, %cst_59 {dimension_numbers = #tpu.dot_dimension_numbers<[1], [0], [0], [1], [0, 0, 1, 1], [], []>} : vector<8x32xbf16>, vector<32x96xbf16>, vector<8x96xf32> -> vector<8x96xf32>
    %260 = vector.broadcast %6 : vector<1x96xf32> to vector<8x96xf32>
    %261 = arith.addf %259, %260 : vector<8x96xf32>
    %262 = vector.extract_strided_slice %257 {offsets = [0, 0], sizes = [8, 64], strides = [1, 1]} : vector<8x96xf32> to vector<8x64xf32>
    %263 = vector.extract_strided_slice %261 {offsets = [0, 0], sizes = [8, 64], strides = [1, 1]} : vector<8x96xf32> to vector<8x64xf32>
    %264 = arith.addf %262, %263 : vector<8x64xf32>
    %265 = arith.negf %264 : vector<8x64xf32>
    %266 = math.exp %265 : vector<8x64xf32>
    %cst_60 = arith.constant 1.000000e+00 : f32
    %267 = vector.broadcast %cst_60 : f32 to vector<8x64xf32>
    %268 = arith.addf %267, %266 : vector<8x64xf32>
    %269 = arith.divf %267, %268 : vector<8x64xf32>
    %270 = vector.extract_strided_slice %269 {offsets = [0, 0], sizes = [8, 32], strides = [1, 1]} : vector<8x64xf32> to vector<8x32xf32>
    %271 = vector.extract_strided_slice %269 {offsets = [0, 32], sizes = [8, 32], strides = [1, 1]} : vector<8x64xf32> to vector<8x32xf32>
    %272 = vector.extract_strided_slice %257 {offsets = [0, 64], sizes = [8, 32], strides = [1, 1]} : vector<8x96xf32> to vector<8x32xf32>
    %273 = vector.extract_strided_slice %261 {offsets = [0, 64], sizes = [8, 32], strides = [1, 1]} : vector<8x96xf32> to vector<8x32xf32>
    %274 = arith.mulf %270, %273 : vector<8x32xf32>
    %275 = arith.addf %272, %274 : vector<8x32xf32>
    %276 = math.tanh %275 : vector<8x32xf32>
    %cst_61 = arith.constant 1.000000e+00 : f32
    %277 = vector.broadcast %cst_61 : f32 to vector<8x32xf32>
    %278 = arith.subf %277, %271 : vector<8x32xf32>
    %279 = arith.mulf %278, %276 : vector<8x32xf32>
    %280 = arith.mulf %271, %245 : vector<8x32xf32>
    %281 = arith.addf %279, %280 : vector<8x32xf32>
    %282 = arith.truncf %281 : vector<8x32xf32> to vector<8x32xbf16>
    %cst_62 = arith.constant dense<0.000000e+00> : vector<8x16xf32>
    %283 = tpu.matmul %282, %3, %cst_62 {dimension_numbers = #tpu.dot_dimension_numbers<[1], [0], [0], [1], [0, 0, 1, 1], [], []>} : vector<8x32xbf16>, vector<32x16xbf16>, vector<8x16xf32> -> vector<8x16xf32>
    %284 = vector.broadcast %7 : vector<1x16xf32> to vector<8x16xf32>
    %285 = arith.addf %283, %284 : vector<8x16xf32>
    %c1 = arith.constant 1 : index
    %286 = memref.load %arg1[%c1] : memref<8xi32, #tpu.memory_space<smem>>
    %c0_i32_63 = arith.constant 0 : i32
    %287 = arith.cmpi ne, %286, %c0_i32_63 : i32
    %c8 = arith.constant 8 : index
    %c0_64 = arith.constant 0 : index
    %288 = vector.load %arg2[%c8, %c0_64] : memref<64x16xf32, #tpu.memory_space<vmem>>, vector<8x16xf32>
    %289 = arith.select %287, %288, %285 : vector<8x16xf32>
    %290 = arith.truncf %289 : vector<8x16xf32> to vector<8x16xbf16>
    %cst_65 = arith.constant dense<0.000000e+00> : vector<8x96xf32>
    %291 = tpu.matmul %290, %1, %cst_65 {dimension_numbers = #tpu.dot_dimension_numbers<[1], [0], [0], [1], [0, 0, 1, 1], [], []>} : vector<8x16xbf16>, vector<16x96xbf16>, vector<8x96xf32> -> vector<8x96xf32>
    %292 = vector.broadcast %5 : vector<1x96xf32> to vector<8x96xf32>
    %293 = arith.addf %291, %292 : vector<8x96xf32>
    %294 = arith.truncf %281 : vector<8x32xf32> to vector<8x32xbf16>
    %cst_66 = arith.constant dense<0.000000e+00> : vector<8x96xf32>
    %295 = tpu.matmul %294, %2, %cst_66 {dimension_numbers = #tpu.dot_dimension_numbers<[1], [0], [0], [1], [0, 0, 1, 1], [], []>} : vector<8x32xbf16>, vector<32x96xbf16>, vector<8x96xf32> -> vector<8x96xf32>
    %296 = vector.broadcast %6 : vector<1x96xf32> to vector<8x96xf32>
    %297 = arith.addf %295, %296 : vector<8x96xf32>
    %298 = vector.extract_strided_slice %293 {offsets = [0, 0], sizes = [8, 64], strides = [1, 1]} : vector<8x96xf32> to vector<8x64xf32>
    %299 = vector.extract_strided_slice %297 {offsets = [0, 0], sizes = [8, 64], strides = [1, 1]} : vector<8x96xf32> to vector<8x64xf32>
    %300 = arith.addf %298, %299 : vector<8x64xf32>
    %301 = arith.negf %300 : vector<8x64xf32>
    %302 = math.exp %301 : vector<8x64xf32>
    %cst_67 = arith.constant 1.000000e+00 : f32
    %303 = vector.broadcast %cst_67 : f32 to vector<8x64xf32>
    %304 = arith.addf %303, %302 : vector<8x64xf32>
    %305 = arith.divf %303, %304 : vector<8x64xf32>
    %306 = vector.extract_strided_slice %305 {offsets = [0, 0], sizes = [8, 32], strides = [1, 1]} : vector<8x64xf32> to vector<8x32xf32>
    %307 = vector.extract_strided_slice %305 {offsets = [0, 32], sizes = [8, 32], strides = [1, 1]} : vector<8x64xf32> to vector<8x32xf32>
    %308 = vector.extract_strided_slice %293 {offsets = [0, 64], sizes = [8, 32], strides = [1, 1]} : vector<8x96xf32> to vector<8x32xf32>
    %309 = vector.extract_strided_slice %297 {offsets = [0, 64], sizes = [8, 32], strides = [1, 1]} : vector<8x96xf32> to vector<8x32xf32>
    %310 = arith.mulf %306, %309 : vector<8x32xf32>
    %311 = arith.addf %308, %310 : vector<8x32xf32>
    %312 = math.tanh %311 : vector<8x32xf32>
    %cst_68 = arith.constant 1.000000e+00 : f32
    %313 = vector.broadcast %cst_68 : f32 to vector<8x32xf32>
    %314 = arith.subf %313, %307 : vector<8x32xf32>
    %315 = arith.mulf %314, %312 : vector<8x32xf32>
    %316 = arith.mulf %307, %281 : vector<8x32xf32>
    %317 = arith.addf %315, %316 : vector<8x32xf32>
    %318 = arith.truncf %317 : vector<8x32xf32> to vector<8x32xbf16>
    %cst_69 = arith.constant dense<0.000000e+00> : vector<8x16xf32>
    %319 = tpu.matmul %318, %3, %cst_69 {dimension_numbers = #tpu.dot_dimension_numbers<[1], [0], [0], [1], [0, 0, 1, 1], [], []>} : vector<8x32xbf16>, vector<32x16xbf16>, vector<8x16xf32> -> vector<8x16xf32>
    %320 = vector.broadcast %7 : vector<1x16xf32> to vector<8x16xf32>
    %321 = arith.addf %319, %320 : vector<8x16xf32>
    %c2 = arith.constant 2 : index
    %322 = memref.load %arg1[%c2] : memref<8xi32, #tpu.memory_space<smem>>
    %c0_i32_70 = arith.constant 0 : i32
    %323 = arith.cmpi ne, %322, %c0_i32_70 : i32
    %c16 = arith.constant 16 : index
    %c0_71 = arith.constant 0 : index
    %324 = vector.load %arg2[%c16, %c0_71] : memref<64x16xf32, #tpu.memory_space<vmem>>, vector<8x16xf32>
    %325 = arith.select %323, %324, %321 : vector<8x16xf32>
    %326 = arith.truncf %325 : vector<8x16xf32> to vector<8x16xbf16>
    %cst_72 = arith.constant dense<0.000000e+00> : vector<8x96xf32>
    %327 = tpu.matmul %326, %1, %cst_72 {dimension_numbers = #tpu.dot_dimension_numbers<[1], [0], [0], [1], [0, 0, 1, 1], [], []>} : vector<8x16xbf16>, vector<16x96xbf16>, vector<8x96xf32> -> vector<8x96xf32>
    %328 = vector.broadcast %5 : vector<1x96xf32> to vector<8x96xf32>
    %329 = arith.addf %327, %328 : vector<8x96xf32>
    %330 = arith.truncf %317 : vector<8x32xf32> to vector<8x32xbf16>
    %cst_73 = arith.constant dense<0.000000e+00> : vector<8x96xf32>
    %331 = tpu.matmul %330, %2, %cst_73 {dimension_numbers = #tpu.dot_dimension_numbers<[1], [0], [0], [1], [0, 0, 1, 1], [], []>} : vector<8x32xbf16>, vector<32x96xbf16>, vector<8x96xf32> -> vector<8x96xf32>
    %332 = vector.broadcast %6 : vector<1x96xf32> to vector<8x96xf32>
    %333 = arith.addf %331, %332 : vector<8x96xf32>
    %334 = vector.extract_strided_slice %329 {offsets = [0, 0], sizes = [8, 64], strides = [1, 1]} : vector<8x96xf32> to vector<8x64xf32>
    %335 = vector.extract_strided_slice %333 {offsets = [0, 0], sizes = [8, 64], strides = [1, 1]} : vector<8x96xf32> to vector<8x64xf32>
    %336 = arith.addf %334, %335 : vector<8x64xf32>
    %337 = arith.negf %336 : vector<8x64xf32>
    %338 = math.exp %337 : vector<8x64xf32>
    %cst_74 = arith.constant 1.000000e+00 : f32
    %339 = vector.broadcast %cst_74 : f32 to vector<8x64xf32>
    %340 = arith.addf %339, %338 : vector<8x64xf32>
    %341 = arith.divf %339, %340 : vector<8x64xf32>
    %342 = vector.extract_strided_slice %341 {offsets = [0, 0], sizes = [8, 32], strides = [1, 1]} : vector<8x64xf32> to vector<8x32xf32>
    %343 = vector.extract_strided_slice %341 {offsets = [0, 32], sizes = [8, 32], strides = [1, 1]} : vector<8x64xf32> to vector<8x32xf32>
    %344 = vector.extract_strided_slice %329 {offsets = [0, 64], sizes = [8, 32], strides = [1, 1]} : vector<8x96xf32> to vector<8x32xf32>
    %345 = vector.extract_strided_slice %333 {offsets = [0, 64], sizes = [8, 32], strides = [1, 1]} : vector<8x96xf32> to vector<8x32xf32>
    %346 = arith.mulf %342, %345 : vector<8x32xf32>
    %347 = arith.addf %344, %346 : vector<8x32xf32>
    %348 = math.tanh %347 : vector<8x32xf32>
    %cst_75 = arith.constant 1.000000e+00 : f32
    %349 = vector.broadcast %cst_75 : f32 to vector<8x32xf32>
    %350 = arith.subf %349, %343 : vector<8x32xf32>
    %351 = arith.mulf %350, %348 : vector<8x32xf32>
    %352 = arith.mulf %343, %317 : vector<8x32xf32>
    %353 = arith.addf %351, %352 : vector<8x32xf32>
    %354 = arith.truncf %353 : vector<8x32xf32> to vector<8x32xbf16>
    %cst_76 = arith.constant dense<0.000000e+00> : vector<8x16xf32>
    %355 = tpu.matmul %354, %3, %cst_76 {dimension_numbers = #tpu.dot_dimension_numbers<[1], [0], [0], [1], [0, 0, 1, 1], [], []>} : vector<8x32xbf16>, vector<32x16xbf16>, vector<8x16xf32> -> vector<8x16xf32>
    %356 = vector.broadcast %7 : vector<1x16xf32> to vector<8x16xf32>
    %357 = arith.addf %355, %356 : vector<8x16xf32>
    %c3 = arith.constant 3 : index
    %358 = memref.load %arg1[%c3] : memref<8xi32, #tpu.memory_space<smem>>
    %c0_i32_77 = arith.constant 0 : i32
    %359 = arith.cmpi ne, %358, %c0_i32_77 : i32
    %c24 = arith.constant 24 : index
    %c0_78 = arith.constant 0 : index
    %360 = vector.load %arg2[%c24, %c0_78] : memref<64x16xf32, #tpu.memory_space<vmem>>, vector<8x16xf32>
    %361 = arith.select %359, %360, %357 : vector<8x16xf32>
    %362 = arith.truncf %361 : vector<8x16xf32> to vector<8x16xbf16>
    %cst_79 = arith.constant dense<0.000000e+00> : vector<8x96xf32>
    %363 = tpu.matmul %362, %1, %cst_79 {dimension_numbers = #tpu.dot_dimension_numbers<[1], [0], [0], [1], [0, 0, 1, 1], [], []>} : vector<8x16xbf16>, vector<16x96xbf16>, vector<8x96xf32> -> vector<8x96xf32>
    %364 = vector.broadcast %5 : vector<1x96xf32> to vector<8x96xf32>
    %365 = arith.addf %363, %364 : vector<8x96xf32>
    %366 = arith.truncf %353 : vector<8x32xf32> to vector<8x32xbf16>
    %cst_80 = arith.constant dense<0.000000e+00> : vector<8x96xf32>
    %367 = tpu.matmul %366, %2, %cst_80 {dimension_numbers = #tpu.dot_dimension_numbers<[1], [0], [0], [1], [0, 0, 1, 1], [], []>} : vector<8x32xbf16>, vector<32x96xbf16>, vector<8x96xf32> -> vector<8x96xf32>
    %368 = vector.broadcast %6 : vector<1x96xf32> to vector<8x96xf32>
    %369 = arith.addf %367, %368 : vector<8x96xf32>
    %370 = vector.extract_strided_slice %365 {offsets = [0, 0], sizes = [8, 64], strides = [1, 1]} : vector<8x96xf32> to vector<8x64xf32>
    %371 = vector.extract_strided_slice %369 {offsets = [0, 0], sizes = [8, 64], strides = [1, 1]} : vector<8x96xf32> to vector<8x64xf32>
    %372 = arith.addf %370, %371 : vector<8x64xf32>
    %373 = arith.negf %372 : vector<8x64xf32>
    %374 = math.exp %373 : vector<8x64xf32>
    %cst_81 = arith.constant 1.000000e+00 : f32
    %375 = vector.broadcast %cst_81 : f32 to vector<8x64xf32>
    %376 = arith.addf %375, %374 : vector<8x64xf32>
    %377 = arith.divf %375, %376 : vector<8x64xf32>
    %378 = vector.extract_strided_slice %377 {offsets = [0, 0], sizes = [8, 32], strides = [1, 1]} : vector<8x64xf32> to vector<8x32xf32>
    %379 = vector.extract_strided_slice %377 {offsets = [0, 32], sizes = [8, 32], strides = [1, 1]} : vector<8x64xf32> to vector<8x32xf32>
    %380 = vector.extract_strided_slice %365 {offsets = [0, 64], sizes = [8, 32], strides = [1, 1]} : vector<8x96xf32> to vector<8x32xf32>
    %381 = vector.extract_strided_slice %369 {offsets = [0, 64], sizes = [8, 32], strides = [1, 1]} : vector<8x96xf32> to vector<8x32xf32>
    %382 = arith.mulf %378, %381 : vector<8x32xf32>
    %383 = arith.addf %380, %382 : vector<8x32xf32>
    %384 = math.tanh %383 : vector<8x32xf32>
    %cst_82 = arith.constant 1.000000e+00 : f32
    %385 = vector.broadcast %cst_82 : f32 to vector<8x32xf32>
    %386 = arith.subf %385, %379 : vector<8x32xf32>
    %387 = arith.mulf %386, %384 : vector<8x32xf32>
    %388 = arith.mulf %379, %353 : vector<8x32xf32>
    %389 = arith.addf %387, %388 : vector<8x32xf32>
    %390 = arith.truncf %389 : vector<8x32xf32> to vector<8x32xbf16>
    %cst_83 = arith.constant dense<0.000000e+00> : vector<8x16xf32>
    %391 = tpu.matmul %390, %3, %cst_83 {dimension_numbers = #tpu.dot_dimension_numbers<[1], [0], [0], [1], [0, 0, 1, 1], [], []>} : vector<8x32xbf16>, vector<32x16xbf16>, vector<8x16xf32> -> vector<8x16xf32>
    %392 = vector.broadcast %7 : vector<1x16xf32> to vector<8x16xf32>
    %393 = arith.addf %391, %392 : vector<8x16xf32>
    %c4 = arith.constant 4 : index
    %394 = memref.load %arg1[%c4] : memref<8xi32, #tpu.memory_space<smem>>
    %c0_i32_84 = arith.constant 0 : i32
    %395 = arith.cmpi ne, %394, %c0_i32_84 : i32
    %c32 = arith.constant 32 : index
    %c0_85 = arith.constant 0 : index
    %396 = vector.load %arg2[%c32, %c0_85] : memref<64x16xf32, #tpu.memory_space<vmem>>, vector<8x16xf32>
    %397 = arith.select %395, %396, %393 : vector<8x16xf32>
    %398 = arith.truncf %397 : vector<8x16xf32> to vector<8x16xbf16>
    %cst_86 = arith.constant dense<0.000000e+00> : vector<8x96xf32>
    %399 = tpu.matmul %398, %1, %cst_86 {dimension_numbers = #tpu.dot_dimension_numbers<[1], [0], [0], [1], [0, 0, 1, 1], [], []>} : vector<8x16xbf16>, vector<16x96xbf16>, vector<8x96xf32> -> vector<8x96xf32>
    %400 = vector.broadcast %5 : vector<1x96xf32> to vector<8x96xf32>
    %401 = arith.addf %399, %400 : vector<8x96xf32>
    %402 = arith.truncf %389 : vector<8x32xf32> to vector<8x32xbf16>
    %cst_87 = arith.constant dense<0.000000e+00> : vector<8x96xf32>
    %403 = tpu.matmul %402, %2, %cst_87 {dimension_numbers = #tpu.dot_dimension_numbers<[1], [0], [0], [1], [0, 0, 1, 1], [], []>} : vector<8x32xbf16>, vector<32x96xbf16>, vector<8x96xf32> -> vector<8x96xf32>
    %404 = vector.broadcast %6 : vector<1x96xf32> to vector<8x96xf32>
    %405 = arith.addf %403, %404 : vector<8x96xf32>
    %406 = vector.extract_strided_slice %401 {offsets = [0, 0], sizes = [8, 64], strides = [1, 1]} : vector<8x96xf32> to vector<8x64xf32>
    %407 = vector.extract_strided_slice %405 {offsets = [0, 0], sizes = [8, 64], strides = [1, 1]} : vector<8x96xf32> to vector<8x64xf32>
    %408 = arith.addf %406, %407 : vector<8x64xf32>
    %409 = arith.negf %408 : vector<8x64xf32>
    %410 = math.exp %409 : vector<8x64xf32>
    %cst_88 = arith.constant 1.000000e+00 : f32
    %411 = vector.broadcast %cst_88 : f32 to vector<8x64xf32>
    %412 = arith.addf %411, %410 : vector<8x64xf32>
    %413 = arith.divf %411, %412 : vector<8x64xf32>
    %414 = vector.extract_strided_slice %413 {offsets = [0, 0], sizes = [8, 32], strides = [1, 1]} : vector<8x64xf32> to vector<8x32xf32>
    %415 = vector.extract_strided_slice %413 {offsets = [0, 32], sizes = [8, 32], strides = [1, 1]} : vector<8x64xf32> to vector<8x32xf32>
    %416 = vector.extract_strided_slice %401 {offsets = [0, 64], sizes = [8, 32], strides = [1, 1]} : vector<8x96xf32> to vector<8x32xf32>
    %417 = vector.extract_strided_slice %405 {offsets = [0, 64], sizes = [8, 32], strides = [1, 1]} : vector<8x96xf32> to vector<8x32xf32>
    %418 = arith.mulf %414, %417 : vector<8x32xf32>
    %419 = arith.addf %416, %418 : vector<8x32xf32>
    %420 = math.tanh %419 : vector<8x32xf32>
    %cst_89 = arith.constant 1.000000e+00 : f32
    %421 = vector.broadcast %cst_89 : f32 to vector<8x32xf32>
    %422 = arith.subf %421, %415 : vector<8x32xf32>
    %423 = arith.mulf %422, %420 : vector<8x32xf32>
    %424 = arith.mulf %415, %389 : vector<8x32xf32>
    %425 = arith.addf %423, %424 : vector<8x32xf32>
    %426 = arith.truncf %425 : vector<8x32xf32> to vector<8x32xbf16>
    %cst_90 = arith.constant dense<0.000000e+00> : vector<8x16xf32>
    %427 = tpu.matmul %426, %3, %cst_90 {dimension_numbers = #tpu.dot_dimension_numbers<[1], [0], [0], [1], [0, 0, 1, 1], [], []>} : vector<8x32xbf16>, vector<32x16xbf16>, vector<8x16xf32> -> vector<8x16xf32>
    %428 = vector.broadcast %7 : vector<1x16xf32> to vector<8x16xf32>
    %429 = arith.addf %427, %428 : vector<8x16xf32>
    %c5 = arith.constant 5 : index
    %430 = memref.load %arg1[%c5] : memref<8xi32, #tpu.memory_space<smem>>
    %c0_i32_91 = arith.constant 0 : i32
    %431 = arith.cmpi ne, %430, %c0_i32_91 : i32
    %c40 = arith.constant 40 : index
    %c0_92 = arith.constant 0 : index
    %432 = vector.load %arg2[%c40, %c0_92] : memref<64x16xf32, #tpu.memory_space<vmem>>, vector<8x16xf32>
    %433 = arith.select %431, %432, %429 : vector<8x16xf32>
    %434 = arith.truncf %433 : vector<8x16xf32> to vector<8x16xbf16>
    %cst_93 = arith.constant dense<0.000000e+00> : vector<8x96xf32>
    %435 = tpu.matmul %434, %1, %cst_93 {dimension_numbers = #tpu.dot_dimension_numbers<[1], [0], [0], [1], [0, 0, 1, 1], [], []>} : vector<8x16xbf16>, vector<16x96xbf16>, vector<8x96xf32> -> vector<8x96xf32>
    %436 = vector.broadcast %5 : vector<1x96xf32> to vector<8x96xf32>
    %437 = arith.addf %435, %436 : vector<8x96xf32>
    %438 = arith.truncf %425 : vector<8x32xf32> to vector<8x32xbf16>
    %cst_94 = arith.constant dense<0.000000e+00> : vector<8x96xf32>
    %439 = tpu.matmul %438, %2, %cst_94 {dimension_numbers = #tpu.dot_dimension_numbers<[1], [0], [0], [1], [0, 0, 1, 1], [], []>} : vector<8x32xbf16>, vector<32x96xbf16>, vector<8x96xf32> -> vector<8x96xf32>
    %440 = vector.broadcast %6 : vector<1x96xf32> to vector<8x96xf32>
    %441 = arith.addf %439, %440 : vector<8x96xf32>
    %442 = vector.extract_strided_slice %437 {offsets = [0, 0], sizes = [8, 64], strides = [1, 1]} : vector<8x96xf32> to vector<8x64xf32>
    %443 = vector.extract_strided_slice %441 {offsets = [0, 0], sizes = [8, 64], strides = [1, 1]} : vector<8x96xf32> to vector<8x64xf32>
    %444 = arith.addf %442, %443 : vector<8x64xf32>
    %445 = arith.negf %444 : vector<8x64xf32>
    %446 = math.exp %445 : vector<8x64xf32>
    %cst_95 = arith.constant 1.000000e+00 : f32
    %447 = vector.broadcast %cst_95 : f32 to vector<8x64xf32>
    %448 = arith.addf %447, %446 : vector<8x64xf32>
    %449 = arith.divf %447, %448 : vector<8x64xf32>
    %450 = vector.extract_strided_slice %449 {offsets = [0, 0], sizes = [8, 32], strides = [1, 1]} : vector<8x64xf32> to vector<8x32xf32>
    %451 = vector.extract_strided_slice %449 {offsets = [0, 32], sizes = [8, 32], strides = [1, 1]} : vector<8x64xf32> to vector<8x32xf32>
    %452 = vector.extract_strided_slice %437 {offsets = [0, 64], sizes = [8, 32], strides = [1, 1]} : vector<8x96xf32> to vector<8x32xf32>
    %453 = vector.extract_strided_slice %441 {offsets = [0, 64], sizes = [8, 32], strides = [1, 1]} : vector<8x96xf32> to vector<8x32xf32>
    %454 = arith.mulf %450, %453 : vector<8x32xf32>
    %455 = arith.addf %452, %454 : vector<8x32xf32>
    %456 = math.tanh %455 : vector<8x32xf32>
    %cst_96 = arith.constant 1.000000e+00 : f32
    %457 = vector.broadcast %cst_96 : f32 to vector<8x32xf32>
    %458 = arith.subf %457, %451 : vector<8x32xf32>
    %459 = arith.mulf %458, %456 : vector<8x32xf32>
    %460 = arith.mulf %451, %425 : vector<8x32xf32>
    %461 = arith.addf %459, %460 : vector<8x32xf32>
    %462 = arith.truncf %461 : vector<8x32xf32> to vector<8x32xbf16>
    %cst_97 = arith.constant dense<0.000000e+00> : vector<8x16xf32>
    %463 = tpu.matmul %462, %3, %cst_97 {dimension_numbers = #tpu.dot_dimension_numbers<[1], [0], [0], [1], [0, 0, 1, 1], [], []>} : vector<8x32xbf16>, vector<32x16xbf16>, vector<8x16xf32> -> vector<8x16xf32>
    %464 = vector.broadcast %7 : vector<1x16xf32> to vector<8x16xf32>
    %465 = arith.addf %463, %464 : vector<8x16xf32>
    %c6 = arith.constant 6 : index
    %466 = memref.load %arg1[%c6] : memref<8xi32, #tpu.memory_space<smem>>
    %c0_i32_98 = arith.constant 0 : i32
    %467 = arith.cmpi ne, %466, %c0_i32_98 : i32
    %c48 = arith.constant 48 : index
    %c0_99 = arith.constant 0 : index
    %468 = vector.load %arg2[%c48, %c0_99] : memref<64x16xf32, #tpu.memory_space<vmem>>, vector<8x16xf32>
    %469 = arith.select %467, %468, %465 : vector<8x16xf32>
    %470 = arith.truncf %469 : vector<8x16xf32> to vector<8x16xbf16>
    %cst_100 = arith.constant dense<0.000000e+00> : vector<8x96xf32>
    %471 = tpu.matmul %470, %1, %cst_100 {dimension_numbers = #tpu.dot_dimension_numbers<[1], [0], [0], [1], [0, 0, 1, 1], [], []>} : vector<8x16xbf16>, vector<16x96xbf16>, vector<8x96xf32> -> vector<8x96xf32>
    %472 = vector.broadcast %5 : vector<1x96xf32> to vector<8x96xf32>
    %473 = arith.addf %471, %472 : vector<8x96xf32>
    %474 = arith.truncf %461 : vector<8x32xf32> to vector<8x32xbf16>
    %cst_101 = arith.constant dense<0.000000e+00> : vector<8x96xf32>
    %475 = tpu.matmul %474, %2, %cst_101 {dimension_numbers = #tpu.dot_dimension_numbers<[1], [0], [0], [1], [0, 0, 1, 1], [], []>} : vector<8x32xbf16>, vector<32x96xbf16>, vector<8x96xf32> -> vector<8x96xf32>
    %476 = vector.broadcast %6 : vector<1x96xf32> to vector<8x96xf32>
    %477 = arith.addf %475, %476 : vector<8x96xf32>
    %478 = vector.extract_strided_slice %473 {offsets = [0, 0], sizes = [8, 64], strides = [1, 1]} : vector<8x96xf32> to vector<8x64xf32>
    %479 = vector.extract_strided_slice %477 {offsets = [0, 0], sizes = [8, 64], strides = [1, 1]} : vector<8x96xf32> to vector<8x64xf32>
    %480 = arith.addf %478, %479 : vector<8x64xf32>
    %481 = arith.negf %480 : vector<8x64xf32>
    %482 = math.exp %481 : vector<8x64xf32>
    %cst_102 = arith.constant 1.000000e+00 : f32
    %483 = vector.broadcast %cst_102 : f32 to vector<8x64xf32>
    %484 = arith.addf %483, %482 : vector<8x64xf32>
    %485 = arith.divf %483, %484 : vector<8x64xf32>
    %486 = vector.extract_strided_slice %485 {offsets = [0, 0], sizes = [8, 32], strides = [1, 1]} : vector<8x64xf32> to vector<8x32xf32>
    %487 = vector.extract_strided_slice %485 {offsets = [0, 32], sizes = [8, 32], strides = [1, 1]} : vector<8x64xf32> to vector<8x32xf32>
    %488 = vector.extract_strided_slice %473 {offsets = [0, 64], sizes = [8, 32], strides = [1, 1]} : vector<8x96xf32> to vector<8x32xf32>
    %489 = vector.extract_strided_slice %477 {offsets = [0, 64], sizes = [8, 32], strides = [1, 1]} : vector<8x96xf32> to vector<8x32xf32>
    %490 = arith.mulf %486, %489 : vector<8x32xf32>
    %491 = arith.addf %488, %490 : vector<8x32xf32>
    %492 = math.tanh %491 : vector<8x32xf32>
    %cst_103 = arith.constant 1.000000e+00 : f32
    %493 = vector.broadcast %cst_103 : f32 to vector<8x32xf32>
    %494 = arith.subf %493, %487 : vector<8x32xf32>
    %495 = arith.mulf %494, %492 : vector<8x32xf32>
    %496 = arith.mulf %487, %461 : vector<8x32xf32>
    %497 = arith.addf %495, %496 : vector<8x32xf32>
    %498 = arith.truncf %497 : vector<8x32xf32> to vector<8x32xbf16>
    %cst_104 = arith.constant dense<0.000000e+00> : vector<8x16xf32>
    %499 = tpu.matmul %498, %3, %cst_104 {dimension_numbers = #tpu.dot_dimension_numbers<[1], [0], [0], [1], [0, 0, 1, 1], [], []>} : vector<8x32xbf16>, vector<32x16xbf16>, vector<8x16xf32> -> vector<8x16xf32>
    %500 = vector.broadcast %7 : vector<1x16xf32> to vector<8x16xf32>
    %501 = arith.addf %499, %500 : vector<8x16xf32>
    %502 = tpu.concatenate %249, %285, %321, %357, %393, %429, %465, %501 in 1 : vector<8x16xf32>, vector<8x16xf32>, vector<8x16xf32>, vector<8x16xf32>, vector<8x16xf32>, vector<8x16xf32>, vector<8x16xf32>, vector<8x16xf32> -> vector<8x128xf32>
    %c0_105 = arith.constant 0 : index
    %c0_106 = arith.constant 0 : index
    %503 = vector.load %arg13[%c0_105, %c0_106] : memref<8x128xf32, #tpu.memory_space<vmem>>, vector<8x128xf32>
    tpu.vector_store %arg13[%c0_105, %c0_106], %502 {strides = array<i32>} : memref<8x128xf32, #tpu.memory_space<vmem>>, vector<8x128xf32>,
    return
  }
  func.func @transform_0(%arg0: i32, %arg1: memref<8xi32, #tpu.memory_space<smem>>) -> (i32, i32) {
    %c0_i32 = arith.constant 0 : i32
    %c0_i32_0 = arith.constant 0 : i32
    %c0_i32_1 = arith.constant 0 : i32
    return %c0_i32, %c0_i32_0 : i32, i32
  }
  func.func @transform_1(%arg0: i32, %arg1: memref<8xi32, #tpu.memory_space<smem>>) -> (i32, i32) {
    %c0_i32 = arith.constant 0 : i32
    %c0_i32_0 = arith.constant 0 : i32
    %c0_i32_1 = arith.constant 0 : i32
    return %c0_i32, %c0_i32_0 : i32, i32
  }
  func.func @transform_2(%arg0: i32, %arg1: memref<8xi32, #tpu.memory_space<smem>>) -> (i32, i32) {
    %c0_i32 = arith.constant 0 : i32
    %c0_i32_0 = arith.constant 0 : i32
    %c0_i32_1 = arith.constant 0 : i32
    return %c0_i32, %c0_i32_0 : i32, i32
  }
  func.func @transform_3(%arg0: i32, %arg1: memref<8xi32, #tpu.memory_space<smem>>) -> (i32, i32) {
    %c0_i32 = arith.constant 0 : i32
    %c0_i32_0 = arith.constant 0 : i32
    %c0_i32_1 = arith.constant 0 : i32
    return %c0_i32, %c0_i32_0 : i32, i32
  }
  func.func @transform_4(%arg0: i32, %arg1: memref<8xi32, #tpu.memory_space<smem>>) -> (i32, i32) {
    %c0_i32 = arith.constant 0 : i32
    %c0_i32_0 = arith.constant 0 : i32
    %c0_i32_1 = arith.constant 0 : i32
    return %c0_i32, %c0_i32_0 : i32, i32
  }
  func.func @transform_5(%arg0: i32, %arg1: memref<8xi32, #tpu.memory_space<smem>>) -> (i32, i32) {
    %c0_i32 = arith.constant 0 : i32
    %c0_i32_0 = arith.constant 0 : i32
    %c0_i32_1 = arith.constant 0 : i32
    return %c0_i32, %c0_i32_0 : i32, i32
  }
  func.func @transform_6(%arg0: i32, %arg1: memref<8xi32, #tpu.memory_space<smem>>) -> (i32, i32) {
    %c0_i32 = arith.constant 0 : i32
    %c0_i32_0 = arith.constant 0 : i32
    %c0_i32_1 = arith.constant 0 : i32
    return %c0_i32, %c0_i32_0 : i32, i32
  }
  func.func @transform_7(%arg0: i32, %arg1: memref<8xi32, #tpu.memory_space<smem>>) -> (i32, i32) {
    %c0_i32 = arith.constant 0 : i32
    %c0_i32_0 = arith.constant 0 : i32
    %c0_i32_1 = arith.constant 0 : i32
    return %c0_i32, %c0_i32_0 : i32, i32
  }
  func.func @transform_8(%arg0: i32, %arg1: memref<8xi32, #tpu.memory_space<smem>>) -> (i32, i32) {
    %c0_i32 = arith.constant 0 : i32
    %c0_i32_0 = arith.constant 0 : i32
    %c0_i32_1 = arith.constant 0 : i32
    return %c0_i32, %c0_i32_0 : i32, i32
  }
  func.func @transform_9(%arg0: i32, %arg1: memref<8xi32, #tpu.memory_space<smem>>) -> (i32, i32) {
    %c0_i32 = arith.constant 0 : i32
    %c0_i32_0 = arith.constant 0 : i32
    %c0_i32_1 = arith.constant 0 : i32
    return %c0_i32, %c0_i32_0 : i32, i32
  }
  func.func @transform_10(%arg0: i32, %arg1: memref<8xi32, #tpu.memory_space<smem>>) -> (i32, i32) {
    %c0_i32 = arith.constant 0 : i32
    %c0_i32_0 = arith.constant 0 : i32
    %c0_i32_1 = arith.constant 0 : i32
    return %c0_i32, %c0_i32_0 : i32, i32
  }
  func.func @transform_11(%arg0: i32, %arg1: memref<8xi32, #tpu.memory_space<smem>>) -> (i32, i32) {
    %c0_i32 = arith.constant 0 : i32
    %c0_i32_0 = arith.constant 0 : i32
    %c0_i32_1 = arith.constant 0 : i32
    return %c0_i32, %c0_i32_0 : i32, i32
  }
  func.func @transform_12(%arg0: i32, %arg1: memref<8xi32, #tpu.memory_space<smem>>) -> (i32, i32) {
    %c0_i32 = arith.constant 0 : i32
    %c0_i32_0 = arith.constant 0 : i32
    %c0_i32_1 = arith.constant 0 : i32
    return %c0_i32, %c0_i32_0 : i32, i32
  }
}

</mosaic_0001>

<llo_original>
// kernel: tpu_custom_call.1
$region0: #{tpu_custom_call.1}
  #allocation0 [shape = 'u32[]', space=smem, size = 0x4, offset = 0x4, fixed_abs, tag = 'smem constant byte address 0x4 - core index']
  #allocation1 [shape = 'u32[144,128]{1,0:T(1,128)}', space=vmem, size = 0x12000, scoped, tag = 'internal scratch']
  #allocation2 [shape = 's32[1]{0}', space=sflag, size = 0x4, scoped, tag = 'scoped memory for tpu_custom_call.1']
  #allocation3 [shape = 'u8[512]{0}', space=smem, size = 0x200, scoped, tag = 'prefetched SMEM operand 0']
  %s0 = inlined_call_operand.vmem [shape: s32[8], index: 0, kind: input, shape index: {}]
  %s1 = inlined_call_operand.vmem [shape: f32[64,16], index: 1, kind: input, shape index: {}]
  %s2 = inlined_call_operand.vmem [shape: bf16[16,96], index: 2, kind: input, shape index: {}]
  %s3 = inlined_call_operand.vmem [shape: bf16[32,96], index: 3, kind: input, shape index: {}]
  %s4 = inlined_call_operand.vmem [shape: f32[1,96], index: 4, kind: input, shape index: {}]
  %s5 = inlined_call_operand.vmem [shape: f32[1,96], index: 5, kind: input, shape index: {}]
  %s6 = inlined_call_operand.vmem [shape: bf16[16,96], index: 6, kind: input, shape index: {}]
  %s7 = inlined_call_operand.vmem [shape: bf16[32,96], index: 7, kind: input, shape index: {}]
  %s8 = inlined_call_operand.vmem [shape: f32[1,96], index: 8, kind: input, shape index: {}]
  %s9 = inlined_call_operand.vmem [shape: f32[1,96], index: 9, kind: input, shape index: {}]
  %s10 = inlined_call_operand.vmem [shape: bf16[32,16], index: 10, kind: input, shape index: {}]
  %s11 = inlined_call_operand.vmem [shape: f32[1,16], index: 11, kind: input, shape index: {}]
  %s12 = inlined_call_operand.hbm [shape: f32[8,128], index: 12, kind: output, shape index: {0}]
  %s13 = inlined_call_operand.hbm [shape: f32[8,32], index: 13, kind: output, shape index: {1}]
  %14 = xla_tuple %s12, %s13
  %s15 = sld [smem:[#allocation0]]
  $region62: #{tpu_custom_call.1} parent=0
    _
  %s17 = ssub.s32 1, %s15
  %s18 = scalar_select 0, %s17, %s15
  %s19 = sshll.u32 %s0, 4
  %s20 = int_to_ptr.vmem [resolvable:$true] %s19
  %22 = dma.vmem_to_smem %s20, 16, [#allocation3], [#allocation2]
  %23 = dma.done [#allocation2], 16
  %24 = sfence
  $region1: #{tpu_custom_call.1} parent=0
    #allocation4 [shape = 'u8[4096]{0}', space=vmem, size = 0x1000, scoped, tag = 'output window, operand 0, single buffered']
    #allocation5 [shape = 's32[1]{0}', space=sflag, size = 0x4, scoped, tag = 'scoped memory for tpu_custom_call.1']
    #allocation6 [shape = 'u8[4096]{0}', space=vmem, size = 0x1000, scoped, tag = 'output window, operand 1, single buffered']
    #allocation7 [shape = 's32[1]{0}', space=sflag, size = 0x4, scoped, tag = 'scoped memory for tpu_custom_call.1']
    %25 = vsyncpa [#allocation5], 0
    %26 = vsyncpa [#allocation7], 0
    // Predicated region
    $region2: #{tpu_custom_call.1} parent=1 // pred_check
      _
    $region3: #{tpu_custom_call.1} parent=1 // pred_check_branch
      %28 = sbr.rel (0) target = $region5
    $region4: #{tpu_custom_call.1} parent=1 // pred_region
      _
    $region5: #{tpu_custom_call.1} parent=1 // pred_fallthru
      _
    // Predicated region
    $region6: #{tpu_custom_call.1} parent=1 // pred_check
      _
    $region7: #{tpu_custom_call.1} parent=1 // pred_check_branch
      %30 = sbr.rel (0) target = $region9
    $region8: #{tpu_custom_call.1} parent=1 // pred_region
      _
    $region9: #{tpu_custom_call.1} parent=1 // pred_fallthru
      _
    // Predicated region
    $region10: #{tpu_custom_call.1} parent=1 // pred_check
      _
    $region11: #{tpu_custom_call.1} parent=1 // pred_check_branch
      %32 = sbr.rel (0) target = $region13
    $region12: #{tpu_custom_call.1} parent=1 // pred_region
      _
    $region13: #{tpu_custom_call.1} parent=1 // pred_fallthru
      _
    // Predicated region
    $region14: #{tpu_custom_call.1} parent=1 // pred_check
      _
    $region15: #{tpu_custom_call.1} parent=1 // pred_check_branch
      %34 = sbr.rel (0) target = $region17
    $region16: #{tpu_custom_call.1} parent=1 // pred_region
      _
    $region17: #{tpu_custom_call.1} parent=1 // pred_fallthru
      _
    // Predicated region
    $region18: #{tpu_custom_call.1} parent=1 // pred_check
      _
    $region19: #{tpu_custom_call.1} parent=1 // pred_check_branch
      %36 = sbr.rel (0) target = $region21
    $region20: #{tpu_custom_call.1} parent=1 // pred_region
      _
    $region21: #{tpu_custom_call.1} parent=1 // pred_fallthru
      _
    // Predicated region
    $region22: #{tpu_custom_call.1} parent=1 // pred_check
      _
    $region23: #{tpu_custom_call.1} parent=1 // pred_check_branch
      %38 = sbr.rel (0) target = $region25
    $region24: #{tpu_custom_call.1} parent=1 // pred_region
      _
    $region25: #{tpu_custom_call.1} parent=1 // pred_fallthru
      _
    // Predicated region
    $region26: #{tpu_custom_call.1} parent=1 // pred_check
      _
    $region27: #{tpu_custom_call.1} parent=1 // pred_check_branch
      %40 = sbr.rel (0) target = $region29
    $region28: #{tpu_custom_call.1} parent=1 // pred_region
      _
    $region29: #{tpu_custom_call.1} parent=1 // pred_fallthru
      _
    // Predicated region
    $region30: #{tpu_custom_call.1} parent=1 // pred_check
      _
    $region31: #{tpu_custom_call.1} parent=1 // pred_check_branch
      %42 = sbr.rel (0) target = $region33
    $region32: #{tpu_custom_call.1} parent=1 // pred_region
      _
    $region33: #{tpu_custom_call.1} parent=1 // pred_fallthru
      _
    // Predicated region
    $region34: #{tpu_custom_call.1} parent=1 // pred_check
      _
    $region35: #{tpu_custom_call.1} parent=1 // pred_check_branch
      %44 = sbr.rel (0) target = $region37
    $region36: #{tpu_custom_call.1} parent=1 // pred_region
      _
    $region37: #{tpu_custom_call.1} parent=1 // pred_fallthru
      _
    // Predicated region
    $region38: #{tpu_custom_call.1} parent=1 // pred_check
      _
    $region39: #{tpu_custom_call.1} parent=1 // pred_check_branch
      %46 = sbr.rel (0) target = $region41
    $region40: #{tpu_custom_call.1} parent=1 // pred_region
      _
    $region41: #{tpu_custom_call.1} parent=1 // pred_fallthru
      _
    // Predicated region
    $region42: #{tpu_custom_call.1} parent=1 // pred_check
      _
    $region43: #{tpu_custom_call.1} parent=1 // pred_check_branch
      %48 = sbr.rel (0) target = $region45
    $region44: #{tpu_custom_call.1} parent=1 // pred_region
      _
    $region45: #{tpu_custom_call.1} parent=1 // pred_fallthru
      _
    %v50 = vld [vmem:[%s3] sm:$0xf]
    %v51 = vld [vmem:[%s3 + $0x4] sm:$0xf]
    %v52 = vld [vmem:[%s3 + $0x8] sm:$0xf]
    %v53 = vld [vmem:[%s3 + $0xc] sm:$0xf]
    %v54 = vld [vmem:[%s6] sm:$0xf]
    %v55 = vld [vmem:[%s6 + $0x4] sm:$0xf]
    %v56 = vld [vmem:[%s7] sm:$0xf]
    %v57 = vld [vmem:[%s7 + $0x4] sm:$0xf]
    %v58 = vld [vmem:[%s7 + $0x8] sm:$0xf]
    %v59 = vld [vmem:[%s7 + $0xc] sm:$0xf]
    %v60 = vld [vmem:[%s10] sm:$0xf]
    %v61 = vld [vmem:[%s10 + $0x4] sm:$0xf]
    %v62 = vld [vmem:[%s10 + $0x8] sm:$0xf]
    %v63 = vld [vmem:[%s10 + $0xc] sm:$0xf]
    %v64 = vld [vmem:[%s5] sm:$0x1]
    %v65 = vld [vmem:[%s8] sm:$0x1]
    %v66 = vld [vmem:[%s9] sm:$0x1]
    %v67 = vld [vmem:[%s11] sm:$0x1]
    %v68 = vld [vmem:[%s1] sm:$0xff]
    %v69 = vld [vmem:[%s1 + $0x8] sm:$0xff]
    %v70 = vld [vmem:[%s1 + $0x10] sm:$0xff]
    %v71 = vld [vmem:[%s1 + $0x18] sm:$0xff]
    %v72 = vld [vmem:[%s1 + $0x20] sm:$0xff]
    %v73 = vld [vmem:[%s1 + $0x28] sm:$0xff]
    %v74 = vld [vmem:[%s1 + $0x30] sm:$0xff]
    %v75 = vld [vmem:[%s1 + $0x38] sm:$0xff]
    %v76 = vpack.c.bf16 %v69, %v68
    %v77 = vpack.c.bf16 %v71, %v70
    %v78 = vpack.c.bf16 %v73, %v72
    %v79 = vpack.c.bf16 %v75, %v74
    %v80 = vld [vmem:[%s2] sm:$0xf]
    %v81 = vld [vmem:[%s2 + $0x4] sm:$0xf]
    %v82 = vld [vmem:[%s4] sm:$0x1]
    %v84 = vlaneseq
    %v85 = vshrl.u32 %v84, 7
    %v86 = vsub.s32 0, %v85
    %v87 = vrot.slane %v82, %v86
    %v91 = vunpack.c.l.b16 %v80
    %v92 = vunpack.c.l.b16 %v81
    %v93 = vpack.c.b16 %v92, %v91
    %vm95 = vcmask 130048
    %v97 = vsel %vm95, %v76, 0
    %v100 = vsel %vm95, %v77, 0
    %v103 = vsel %vm95, %v78, 0
    %v106 = vsel %vm95, %v79, 0
    %108 = vmatprep.subr.bf16.mxu0 0
    %109 = vmatpush1.bf16.msra.mxu0 0
    %110 = vmatprep.subr.bf16.mxu0 0
    %111 = vmatpush1.bf16.msra.mxu0 0
    %112 = vmatprep.subr.bf16.mxu0 0
    %113 = vmatpush1.bf16.msra.mxu0 0
    %114 = vmatprep.subr.bf16.mxu0 0
    %115 = vmatpush1.bf16.msra.mxu0 0
    %116 = vmatprep.subr.bf16.mxu0 0
    %117 = vmatpush1.bf16.msra.mxu0 0
    %118 = vmatprep.subr.bf16.mxu0 0
    %119 = vmatpush1.bf16.msra.mxu0 0
    %120 = vmatprep.subr.bf16.mxu0 0
    %121 = vmatpush1.bf16.msra.mxu0 0
    %122 = vmatprep.subr.bf16.mxu0 0
    %123 = vmatpush1.bf16.msra.mxu0 %v93
    %124 = vmatprep.subr.bf16.mxu0 0
    %125 = vmatpush2.bf16.msra.mxu0 0
    %126 = vmatprep.subr.bf16.mxu0 0
    %127 = vmatpush2.bf16.msra.mxu0 0
    %128 = vmatprep.subr.bf16.mxu0 0
    %129 = vmatpush2.bf16.msra.mxu0 0
    %130 = vmatprep.subr.bf16.mxu0 0
    %131 = vmatpush2.bf16.msra.mxu0 0
    %132 = vmatprep.subr.bf16.mxu0 0
    %133 = vmatpush2.bf16.msra.mxu0 0
    %134 = vmatprep.subr.bf16.mxu0 0
    %135 = vmatpush2.bf16.msra.mxu0 0
    %136 = vmatprep.subr.bf16.mxu0 0
    %137 = vmatpush2.bf16.msra.mxu0 0
    %138 = vmatprep.subr.bf16.mxu0 0
    %139 = vmatpush2.bf16.msra.mxu0 0
    %140 = vmatprep.mubr.bf16.mxu0 0
    %141 = vmatmul.mubr.bf16.gmra.mxu0 %v97
    %v142 = vpop.f32.mrf.mxu0
    %v143 = vadd.f32 %v87, %v142
    %v144 = vpop.f32.mrf.mxu0
    %v145 = vpop.f32.mrf.mxu0
    %v146 = vadd.f32 %v87, %v145
    %v147 = vpop.f32.mrf.mxu0
    %148 = vmatprep.mubr.bf16.mxu0 0
    %149 = vmatmul.mubr.bf16.gmra.mxu0 %v100
    %v150 = vpop.f32.mrf.mxu0
    %v151 = vadd.f32 %v87, %v150
    %v152 = vpop.f32.mrf.mxu0
    %v153 = vpop.f32.mrf.mxu0
    %v154 = vadd.f32 %v87, %v153
    %v155 = vpop.f32.mrf.mxu0
    %156 = vmatprep.mubr.bf16.mxu0 0
    %157 = vmatmul.mubr.bf16.gmra.mxu0 %v103
    %v158 = vpop.f32.mrf.mxu0
    %v159 = vadd.f32 %v87, %v158
    %v160 = vpop.f32.mrf.mxu0
    %v161 = vpop.f32.mrf.mxu0
    %v162 = vadd.f32 %v87, %v161
    %v163 = vpop.f32.mrf.mxu0
    %164 = vmatprep.mubr.bf16.mxu0 0
    %165 = vmatmul.mubr.bf16.gmra.mxu0 %v106
    %v166 = vpop.f32.mrf.mxu0
    %v167 = vadd.f32 %v87, %v166
    %v168 = vpop.f32.mrf.mxu0
    %v169 = vpop.f32.mrf.mxu0
    %v170 = vadd.f32 %v87, %v169
    %v171 = vpop.f32.mrf.mxu0
    %172 = vdwg.mxu0
    %v174 = vlaneseq
    %v175 = vshrl.u32 %v174, 7
    %v176 = vsub.s32 0, %v175
    %v177 = vrot.slane %v64, %v176
    %v183 = vunpack.c.l.b16 %v50
    %v184 = vunpack.c.l.b16 %v51
    %v185 = vunpack.c.l.b16 %v52
    %v186 = vunpack.c.l.b16 %v53
    %v187 = vpack.c.b16 %v184, %v183
    %v188 = vpack.c.b16 %v186, %v185
    %vm191 = vcmask 261120
    %v193 = vsel %vm191, 0, 0
    %195 = vmatprep.subr.bf16.mxu0 0
    %196 = vmatpush1.bf16.msra.mxu0 0
    %197 = vmatprep.subr.bf16.mxu0 0
    %198 = vmatpush1.bf16.msra.mxu0 0
    %199 = vmatprep.subr.bf16.mxu0 0
    %200 = vmatpush1.bf16.msra.mxu0 0
    %201 = vmatprep.subr.bf16.mxu0 0
    %202 = vmatpush1.bf16.msra.mxu0 0
    %203 = vmatprep.subr.bf16.mxu0 0
    %204 = vmatpush1.bf16.msra.mxu0 0
    %205 = vmatprep.subr.bf16.mxu0 0
    %206 = vmatpush1.bf16.msra.mxu0 0
    %207 = vmatprep.subr.bf16.mxu0 0
    %208 = vmatpush1.bf16.msra.mxu0 %v188
    %209 = vmatprep.subr.bf16.mxu0 0
    %210 = vmatpush1.bf16.msra.mxu0 %v187
    %211 = vmatprep.subr.bf16.mxu0 0
    %212 = vmatpush2.bf16.msra.mxu0 0
    %213 = vmatprep.subr.bf16.mxu0 0
    %214 = vmatpush2.bf16.msra.mxu0 0
    %215 = vmatprep.subr.bf16.mxu0 0
    %216 = vmatpush2.bf16.msra.mxu0 0
    %217 = vmatprep.subr.bf16.mxu0 0
    %218 = vmatpush2.bf16.msra.mxu0 0
    %219 = vmatprep.subr.bf16.mxu0 0
    %220 = vmatpush2.bf16.msra.mxu0 0
    %221 = vmatprep.subr.bf16.mxu0 0
    %222 = vmatpush2.bf16.msra.mxu0 0
    %223 = vmatprep.subr.bf16.mxu0 0
    %224 = vmatpush2.bf16.msra.mxu0 0
    %225 = vmatprep.subr.bf16.mxu0 0
    %226 = vmatpush2.bf16.msra.mxu0 0
    %227 = vmatprep.mubr.bf16.mxu0 0
    %228 = vmatmul.mubr.bf16.gmra.mxu0 %v193
    %v229 = vpop.f32.mrf.mxu0
    %v230 = vadd.f32 %v177, %v229
    %v231 = vpop.f32.mrf.mxu0
    %v232 = vpop.f32.mrf.mxu0
    %v233 = vpop.f32.mrf.mxu0
    %234 = vdwg.mxu0
    %v235 = vadd.f32 %v143, %v230
    %v236 = vxor.u32 %v235, 2147483648
    %v237 = vmul.f32 %v236, 1.442695
    %v238 = vpow.pop %v237
    %v239 = vadd.f32 %v238, 1.0
    %v240 = vrcp.pop %v239
    %v241 = vmul.f32 1.0, %v240
    %243 = vrot.lane.b32.xlu0 %v230, 64
    %v244 = vpop.permute.xlu0 %243
    %v246 = vmul.f32 %v241, %v244
    %248 = vrot.lane.b32.xlu0 %v246, 64
    %v249 = vpop.permute.xlu0 %248
    %v251 = vadd.f32 %v143, %v249
    %v252 = vtanh.pop %v251
    %v253 = vsub.f32 1.0, %v241
    %255 = vrot.lane.b32.xlu0 %v252, 96
    %v256 = vpop.permute.xlu0 %255
    %v258 = vmul.f32 %v253, %v256
    %v259 = vmul.f32 %v241, 0.0
    %v260 = vadd.f32 %v258, %v259
    %v261 = vpack.c.bf16 %v260, %v260
    %263 = vrot.lane.b32.xlu0 %v261, 96
    %v264 = vpop.permute.xlu0 %263
    %v266 = vsel %vm191, %v264, 0
    %268 = vmatprep.subr.bf16.mxu0 0
    %269 = vmatpush1.bf16.msra.mxu0 0
    %270 = vmatprep.subr.bf16.mxu0 0
    %271 = vmatpush1.bf16.msra.mxu0 0
    %272 = vmatprep.subr.bf16.mxu0 0
    %273 = vmatpush1.bf16.msra.mxu0 0
    %274 = vmatprep.subr.bf16.mxu0 0
    %275 = vmatpush1.bf16.msra.mxu0 0
    %276 = vmatprep.subr.bf16.mxu0 0
    %277 = vmatpush1.bf16.msra.mxu0 0
    %278 = vmatprep.subr.bf16.mxu0 0
    %279 = vmatpush1.bf16.msra.mxu0 0
    %280 = vmatprep.subr.bf16.mxu0 0
    %281 = vmatpush1.bf16.msra.mxu0 %v188
    %282 = vmatprep.subr.bf16.mxu0 0
    %283 = vmatpush1.bf16.msra.mxu0 %v187
    %284 = vmatprep.subr.bf16.mxu0 0
    %285 = vmatpush2.bf16.msra.mxu0 0
    %286 = vmatprep.subr.bf16.mxu0 0
    %287 = vmatpush2.bf16.msra.mxu0 0
    %288 = vmatprep.subr.bf16.mxu0 0
    %289 = vmatpush2.bf16.msra.mxu0 0
    %290 = vmatprep.subr.bf16.mxu0 0
    %291 = vmatpush2.bf16.msra.mxu0 0
    %292 = vmatprep.subr.bf16.mxu0 0
    %293 = vmatpush2.bf16.msra.mxu0 0
    %294 = vmatprep.subr.bf16.mxu0 0
    %295 = vmatpush2.bf16.msra.mxu0 0
    %296 = vmatprep.subr.bf16.mxu0 0
    %297 = vmatpush2.bf16.msra.mxu0 0
    %298 = vmatprep.subr.bf16.mxu0 0
    %299 = vmatpush2.bf16.msra.mxu0 0
    %300 = vmatprep.mubr.bf16.mxu0 0
    %301 = vmatmul.mubr.bf16.gmra.mxu0 %v266
    %v302 = vpop.f32.mrf.mxu0
    %v303 = vadd.f32 %v177, %v302
    %v304 = vpop.f32.mrf.mxu0
    %v305 = vpop.f32.mrf.mxu0
    %v306 = vpop.f32.mrf.mxu0
    %307 = vdwg.mxu0
    %v308 = vadd.f32 %v146, %v303
    %v309 = vxor.u32 %v308, 2147483648
    %v310 = vmul.f32 %v309, 1.442695
    %v311 = vpow.pop %v310
    %v312 = vadd.f32 %v311, 1.0
    %v313 = vrcp.pop %v312
    %v314 = vmul.f32 1.0, %v313
    %316 = vrot.lane.b32.xlu0 %v303, 64
    %v317 = vpop.permute.xlu0 %316
    %v319 = vmul.f32 %v314, %v317
    %321 = vrot.lane.b32.xlu0 %v319, 64
    %v322 = vpop.permute.xlu0 %321
    %v324 = vadd.f32 %v146, %v322
    %v325 = vtanh.pop %v324
    %v326 = vsub.f32 1.0, %v314
    %328 = vrot.lane.b32.xlu0 %v325, 96
    %v329 = vpop.permute.xlu0 %328
    %v331 = vmul.f32 %v326, %v329
    %v332 = vmul.f32 %v314, %v260
    %v333 = vadd.f32 %v331, %v332
    %v334 = vpack.c.bf16 %v333, %v333
    %336 = vrot.lane.b32.xlu0 %v334, 96
    %v337 = vpop.permute.xlu0 %336
    %v339 = vsel %vm191, %v337, 0
    %341 = vmatprep.subr.bf16.mxu0 0
    %342 = vmatpush1.bf16.msra.mxu0 0
    %343 = vmatprep.subr.bf16.mxu0 0
    %344 = vmatpush1.bf16.msra.mxu0 0
    %345 = vmatprep.subr.bf16.mxu0 0
    %346 = vmatpush1.bf16.msra.mxu0 0
    %347 = vmatprep.subr.bf16.mxu0 0
    %348 = vmatpush1.bf16.msra.mxu0 0
    %349 = vmatprep.subr.bf16.mxu0 0
    %350 = vmatpush1.bf16.msra.mxu0 0
    %351 = vmatprep.subr.bf16.mxu0 0
    %352 = vmatpush1.bf16.msra.mxu0 0
    %353 = vmatprep.subr.bf16.mxu0 0
    %354 = vmatpush1.bf16.msra.mxu0 %v188
    %355 = vmatprep.subr.bf16.mxu0 0
    %356 = vmatpush1.bf16.msra.mxu0 %v187
    %357 = vmatprep.subr.bf16.mxu0 0
    %358 = vmatpush2.bf16.msra.mxu0 0
    %359 = vmatprep.subr.bf16.mxu0 0
    %360 = vmatpush2.bf16.msra.mxu0 0
    %361 = vmatprep.subr.bf16.mxu0 0
    %362 = vmatpush2.bf16.msra.mxu0 0
    %363 = vmatprep.subr.bf16.mxu0 0
    %364 = vmatpush2.bf16.msra.mxu0 0
    %365 = vmatprep.subr.bf16.mxu0 0
    %366 = vmatpush2.bf16.msra.mxu0 0
    %367 = vmatprep.subr.bf16.mxu0 0
    %368 = vmatpush2.bf16.msra.mxu0 0
    %369 = vmatprep.subr.bf16.mxu0 0
    %370 = vmatpush2.bf16.msra.mxu0 0
    %371 = vmatprep.subr.bf16.mxu0 0
    %372 = vmatpush2.bf16.msra.mxu0 0
    %373 = vmatprep.mubr.bf16.mxu0 0
    %374 = vmatmul.mubr.bf16.gmra.mxu0 %v339
    %v375 = vpop.f32.mrf.mxu0
    %v376 = vadd.f32 %v177, %v375
    %v377 = vpop.f32.mrf.mxu0
    %v378 = vpop.f32.mrf.mxu0
    %v379 = vpop.f32.mrf.mxu0
    %380 = vdwg.mxu0
    %v381 = vadd.f32 %v151, %v376
    %v382 = vxor.u32 %v381, 2147483648
    %v383 = vmul.f32 %v382, 1.442695
    %v384 = vpow.pop %v383
    %v385 = vadd.f32 %v384, 1.0
    %v386 = vrcp.pop %v385
    %v387 = vmul.f32 1.0, %v386
    %389 = vrot.lane.b32.xlu0 %v376, 64
    %v390 = vpop.permute.xlu0 %389
    %v392 = vmul.f32 %v387, %v390
    %394 = vrot.lane.b32.xlu0 %v392, 64
    %v395 = vpop.permute.xlu0 %394
    %v397 = vadd.f32 %v151, %v395
    %v398 = vtanh.pop %v397
    %v399 = vsub.f32 1.0, %v387
    %401 = vrot.lane.b32.xlu0 %v398, 96
    %v402 = vpop.permute.xlu0 %401
    %v404 = vmul.f32 %v399, %v402
    %v405 = vmul.f32 %v387, %v333
    %v406 = vadd.f32 %v404, %v405
    %v407 = vpack.c.bf16 %v406, %v406
    %409 = vrot.lane.b32.xlu0 %v407, 96
    %v410 = vpop.permute.xlu0 %409
    %v412 = vsel %vm191, %v410, 0
    %414 = vmatprep.subr.bf16.mxu0 0
    %415 = vmatpush1.bf16.msra.mxu0 0
    %416 = vmatprep.subr.bf16.mxu0 0
    %417 = vmatpush1.bf16.msra.mxu0 0
    %418 = vmatprep.subr.bf16.mxu0 0
    %419 = vmatpush1.bf16.msra.mxu0 0
    %420 = vmatprep.subr.bf16.mxu0 0
    %421 = vmatpush1.bf16.msra.mxu0 0
    %422 = vmatprep.subr.bf16.mxu0 0
    %423 = vmatpush1.bf16.msra.mxu0 0
    %424 = vmatprep.subr.bf16.mxu0 0
    %425 = vmatpush1.bf16.msra.mxu0 0
    %426 = vmatprep.subr.bf16.mxu0 0
    %427 = vmatpush1.bf16.msra.mxu0 %v188
    %428 = vmatprep.subr.bf16.mxu0 0
    %429 = vmatpush1.bf16.msra.mxu0 %v187
    %430 = vmatprep.subr.bf16.mxu0 0
    %431 = vmatpush2.bf16.msra.mxu0 0
    %432 = vmatprep.subr.bf16.mxu0 0
    %433 = vmatpush2.bf16.msra.mxu0 0
    %434 = vmatprep.subr.bf16.mxu0 0
    %435 = vmatpush2.bf16.msra.mxu0 0
    %436 = vmatprep.subr.bf16.mxu0 0
    %437 = vmatpush2.bf16.msra.mxu0 0
    %438 = vmatprep.subr.bf16.mxu0 0
    %439 = vmatpush2.bf16.msra.mxu0 0
    %440 = vmatprep.subr.bf16.mxu0 0
    %441 = vmatpush2.bf16.msra.mxu0 0
    %442 = vmatprep.subr.bf16.mxu0 0
    %443 = vmatpush2.bf16.msra.mxu0 0
    %444 = vmatprep.subr.bf16.mxu0 0
    %445 = vmatpush2.bf16.msra.mxu0 0
    %446 = vmatprep.mubr.bf16.mxu0 0
    %447 = vmatmul.mubr.bf16.gmra.mxu0 %v412
    %v448 = vpop.f32.mrf.mxu0
    %v449 = vadd.f32 %v177, %v448
    %v450 = vpop.f32.mrf.mxu0
    %v451 = vpop.f32.mrf.mxu0
    %v452 = vpop.f32.mrf.mxu0
    %453 = vdwg.mxu0
    %v454 = vadd.f32 %v154, %v449
    %v455 = vxor.u32 %v454, 2147483648
    %v456 = vmul.f32 %v455, 1.442695
    %v457 = vpow.pop %v456
    %v458 = vadd.f32 %v457, 1.0
    %v459 = vrcp.pop %v458
    %v460 = vmul.f32 1.0, %v459
    %462 = vrot.lane.b32.xlu0 %v449, 64
    %v463 = vpop.permute.xlu0 %462
    %v465 = vmul.f32 %v460, %v463
    %467 = vrot.lane.b32.xlu0 %v465, 64
    %v468 = vpop.permute.xlu0 %467
    %v470 = vadd.f32 %v154, %v468
    %v471 = vtanh.pop %v470
    %v472 = vsub.f32 1.0, %v460
    %474 = vrot.lane.b32.xlu0 %v471, 96
    %v475 = vpop.permute.xlu0 %474
    %v477 = vmul.f32 %v472, %v475
    %v478 = vmul.f32 %v460, %v406
    %v479 = vadd.f32 %v477, %v478
    %v480 = vpack.c.bf16 %v479, %v479
    %482 = vrot.lane.b32.xlu0 %v480, 96
    %v483 = vpop.permute.xlu0 %482
    %v485 = vsel %vm191, %v483, 0
    %487 = vmatprep.subr.bf16.mxu0 0
    %488 = vmatpush1.bf16.msra.mxu0 0
    %489 = vmatprep.subr.bf16.mxu0 0
    %490 = vmatpush1.bf16.msra.mxu0 0
    %491 = vmatprep.subr.bf16.mxu0 0
    %492 = vmatpush1.bf16.msra.mxu0 0
    %493 = vmatprep.subr.bf16.mxu0 0
    %494 = vmatpush1.bf16.msra.mxu0 0
    %495 = vmatprep.subr.bf16.mxu0 0
    %496 = vmatpush1.bf16.msra.mxu0 0
    %497 = vmatprep.subr.bf16.mxu0 0
    %498 = vmatpush1.bf16.msra.mxu0 0
    %499 = vmatprep.subr.bf16.mxu0 0
    %500 = vmatpush1.bf16.msra.mxu0 %v188
    %501 = vmatprep.subr.bf16.mxu0 0
    %502 = vmatpush1.bf16.msra.mxu0 %v187
    %503 = vmatprep.subr.bf16.mxu0 0
    %504 = vmatpush2.bf16.msra.mxu0 0
    %505 = vmatprep.subr.bf16.mxu0 0
    %506 = vmatpush2.bf16.msra.mxu0 0
    %507 = vmatprep.subr.bf16.mxu0 0
    %508 = vmatpush2.bf16.msra.mxu0 0
    %509 = vmatprep.subr.bf16.mxu0 0
    %510 = vmatpush2.bf16.msra.mxu0 0
    %511 = vmatprep.subr.bf16.mxu0 0
    %512 = vmatpush2.bf16.msra.mxu0 0
    %513 = vmatprep.subr.bf16.mxu0 0
    %514 = vmatpush2.bf16.msra.mxu0 0
    %515 = vmatprep.subr.bf16.mxu0 0
    %516 = vmatpush2.bf16.msra.mxu0 0
    %517 = vmatprep.subr.bf16.mxu0 0
    %518 = vmatpush2.bf16.msra.mxu0 0
    %519 = vmatprep.mubr.bf16.mxu0 0
    %520 = vmatmul.mubr.bf16.gmra.mxu0 %v485
    %v521 = vpop.f32.mrf.mxu0
    %v522 = vadd.f32 %v177, %v521
    %v523 = vpop.f32.mrf.mxu0
    %v524 = vpop.f32.mrf.mxu0
    %v525 = vpop.f32.mrf.mxu0
    %526 = vdwg.mxu0
    %v527 = vadd.f32 %v159, %v522
    %v528 = vxor.u32 %v527, 2147483648
    %v529 = vmul.f32 %v528, 1.442695
    %v530 = vpow.pop %v529
    %v531 = vadd.f32 %v530, 1.0
    %v532 = vrcp.pop %v531
    %v533 = vmul.f32 1.0, %v532
    %535 = vrot.lane.b32.xlu0 %v522, 64
    %v536 = vpop.permute.xlu0 %535
    %v538 = vmul.f32 %v533, %v536
    %540 = vrot.lane.b32.xlu0 %v538, 64
    %v541 = vpop.permute.xlu0 %540
    %v543 = vadd.f32 %v159, %v541
    %v544 = vtanh.pop %v543
    %v545 = vsub.f32 1.0, %v533
    %547 = vrot.lane.b32.xlu0 %v544, 96
    %v548 = vpop.permute.xlu0 %547
    %v550 = vmul.f32 %v545, %v548
    %v551 = vmul.f32 %v533, %v479
    %v552 = vadd.f32 %v550, %v551
    %v553 = vpack.c.bf16 %v552, %v552
    %555 = vrot.lane.b32.xlu0 %v553, 96
    %v556 = vpop.permute.xlu0 %555
    %v558 = vsel %vm191, %v556, 0
    %560 = vmatprep.subr.bf16.mxu0 0
    %561 = vmatpush1.bf16.msra.mxu0 0
    %562 = vmatprep.subr.bf16.mxu0 0
    %563 = vmatpush1.bf16.msra.mxu0 0
    %564 = vmatprep.subr.bf16.mxu0 0
    %565 = vmatpush1.bf16.msra.mxu0 0
    %566 = vmatprep.subr.bf16.mxu0 0
    %567 = vmatpush1.bf16.msra.mxu0 0
    %568 = vmatprep.subr.bf16.mxu0 0
    %569 = vmatpush1.bf16.msra.mxu0 0
    %570 = vmatprep.subr.bf16.mxu0 0
    %571 = vmatpush1.bf16.msra.mxu0 0
    %572 = vmatprep.subr.bf16.mxu0 0
    %573 = vmatpush1.bf16.msra.mxu0 %v188
    %574 = vmatprep.subr.bf16.mxu0 0
    %575 = vmatpush1.bf16.msra.mxu0 %v187
    %576 = vmatprep.subr.bf16.mxu0 0
    %577 = vmatpush2.bf16.msra.mxu0 0
    %578 = vmatprep.subr.bf16.mxu0 0
    %579 = vmatpush2.bf16.msra.mxu0 0
    %580 = vmatprep.subr.bf16.mxu0 0
    %581 = vmatpush2.bf16.msra.mxu0 0
    %582 = vmatprep.subr.bf16.mxu0 0
    %583 = vmatpush2.bf16.msra.mxu0 0
    %584 = vmatprep.subr.bf16.mxu0 0
    %585 = vmatpush2.bf16.msra.mxu0 0
    %586 = vmatprep.subr.bf16.mxu0 0
    %587 = vmatpush2.bf16.msra.mxu0 0
    %588 = vmatprep.subr.bf16.mxu0 0
    %589 = vmatpush2.bf16.msra.mxu0 0
    %590 = vmatprep.subr.bf16.mxu0 0
    %591 = vmatpush2.bf16.msra.mxu0 0
    %592 = vmatprep.mubr.bf16.mxu0 0
    %593 = vmatmul.mubr.bf16.gmra.mxu0 %v558
    %v594 = vpop.f32.mrf.mxu0
    %v595 = vadd.f32 %v177, %v594
    %v596 = vpop.f32.mrf.mxu0
    %v597 = vpop.f32.mrf.mxu0
    %v598 = vpop.f32.mrf.mxu0
    %599 = vdwg.mxu0
    %v600 = vadd.f32 %v162, %v595
    %v601 = vxor.u32 %v600, 2147483648
    %v602 = vmul.f32 %v601, 1.442695
    %v603 = vpow.pop %v602
    %v604 = vadd.f32 %v603, 1.0
    %v605 = vrcp.pop %v604
    %v606 = vmul.f32 1.0, %v605
    %608 = vrot.lane.b32.xlu0 %v595, 64
    %v609 = vpop.permute.xlu0 %608
    %v611 = vmul.f32 %v606, %v609
    %613 = vrot.lane.b32.xlu0 %v611, 64
    %v614 = vpop.permute.xlu0 %613
    %v616 = vadd.f32 %v162, %v614
    %v617 = vtanh.pop %v616
    %v618 = vsub.f32 1.0, %v606
    %620 = vrot.lane.b32.xlu0 %v617, 96
    %v621 = vpop.permute.xlu0 %620
    %v623 = vmul.f32 %v618, %v621
    %v624 = vmul.f32 %v606, %v552
    %v625 = vadd.f32 %v623, %v624
    %v626 = vpack.c.bf16 %v625, %v625
    %628 = vrot.lane.b32.xlu0 %v626, 96
    %v629 = vpop.permute.xlu0 %628
    %v631 = vsel %vm191, %v629, 0
    %633 = vmatprep.subr.bf16.mxu0 0
    %634 = vmatpush1.bf16.msra.mxu0 0
    %635 = vmatprep.subr.bf16.mxu0 0
    %636 = vmatpush1.bf16.msra.mxu0 0
    %637 = vmatprep.subr.bf16.mxu0 0
    %638 = vmatpush1.bf16.msra.mxu0 0
    %639 = vmatprep.subr.bf16.mxu0 0
    %640 = vmatpush1.bf16.msra.mxu0 0
    %641 = vmatprep.subr.bf16.mxu0 0
    %642 = vmatpush1.bf16.msra.mxu0 0
    %643 = vmatprep.subr.bf16.mxu0 0
    %644 = vmatpush1.bf16.msra.mxu0 0
    %645 = vmatprep.subr.bf16.mxu0 0
    %646 = vmatpush1.bf16.msra.mxu0 %v188
    %647 = vmatprep.subr.bf16.mxu0 0
    %648 = vmatpush1.bf16.msra.mxu0 %v187
    %649 = vmatprep.subr.bf16.mxu0 0
    %650 = vmatpush2.bf16.msra.mxu0 0
    %651 = vmatprep.subr.bf16.mxu0 0
    %652 = vmatpush2.bf16.msra.mxu0 0
    %653 = vmatprep.subr.bf16.mxu0 0
    %654 = vmatpush2.bf16.msra.mxu0 0
    %655 = vmatprep.subr.bf16.mxu0 0
    %656 = vmatpush2.bf16.msra.mxu0 0
    %657 = vmatprep.subr.bf16.mxu0 0
    %658 = vmatpush2.bf16.msra.mxu0 0
    %659 = vmatprep.subr.bf16.mxu0 0
    %660 = vmatpush2.bf16.msra.mxu0 0
    %661 = vmatprep.subr.bf16.mxu0 0
    %662 = vmatpush2.bf16.msra.mxu0 0
    %663 = vmatprep.subr.bf16.mxu0 0
    %664 = vmatpush2.bf16.msra.mxu0 0
    %665 = vmatprep.mubr.bf16.mxu0 0
    %666 = vmatmul.mubr.bf16.gmra.mxu0 %v631
    %v667 = vpop.f32.mrf.mxu0
    %v668 = vadd.f32 %v177, %v667
    %v669 = vpop.f32.mrf.mxu0
    %v670 = vpop.f32.mrf.mxu0
    %v671 = vpop.f32.mrf.mxu0
    %672 = vdwg.mxu0
    %v673 = vadd.f32 %v167, %v668
    %v674 = vxor.u32 %v673, 2147483648
    %v675 = vmul.f32 %v674, 1.442695
    %v676 = vpow.pop %v675
    %v677 = vadd.f32 %v676, 1.0
    %v678 = vrcp.pop %v677
    %v679 = vmul.f32 1.0, %v678
    %681 = vrot.lane.b32.xlu0 %v668, 64
    %v682 = vpop.permute.xlu0 %681
    %v684 = vmul.f32 %v679, %v682
    %686 = vrot.lane.b32.xlu0 %v684, 64
    %v687 = vpop.permute.xlu0 %686
    %v689 = vadd.f32 %v167, %v687
    %v690 = vtanh.pop %v689
    %v691 = vsub.f32 1.0, %v679
    %693 = vrot.lane.b32.xlu0 %v690, 96
    %v694 = vpop.permute.xlu0 %693
    %v696 = vmul.f32 %v691, %v694
    %v697 = vmul.f32 %v679, %v625
    %v698 = vadd.f32 %v696, %v697
    %v699 = vpack.c.bf16 %v698, %v698
    %701 = vrot.lane.b32.xlu0 %v699, 96
    %v702 = vpop.permute.xlu0 %701
    %v704 = vsel %vm191, %v702, 0
    %706 = vmatprep.subr.bf16.mxu0 0
    %707 = vmatpush1.bf16.msra.mxu0 0
    %708 = vmatprep.subr.bf16.mxu0 0
    %709 = vmatpush1.bf16.msra.mxu0 0
    %710 = vmatprep.subr.bf16.mxu0 0
    %711 = vmatpush1.bf16.msra.mxu0 0
    %712 = vmatprep.subr.bf16.mxu0 0
    %713 = vmatpush1.bf16.msra.mxu0 0
    %714 = vmatprep.subr.bf16.mxu0 0
    %715 = vmatpush1.bf16.msra.mxu0 0
    %716 = vmatprep.subr.bf16.mxu0 0
    %717 = vmatpush1.bf16.msra.mxu0 0
    %718 = vmatprep.subr.bf16.mxu0 0
    %719 = vmatpush1.bf16.msra.mxu0 %v188
    %720 = vmatprep.subr.bf16.mxu0 0
    %721 = vmatpush1.bf16.msra.mxu0 %v187
    %722 = vmatprep.subr.bf16.mxu0 0
    %723 = vmatpush2.bf16.msra.mxu0 0
    %724 = vmatprep.subr.bf16.mxu0 0
    %725 = vmatpush2.bf16.msra.mxu0 0
    %726 = vmatprep.subr.bf16.mxu0 0
    %727 = vmatpush2.bf16.msra.mxu0 0
    %728 = vmatprep.subr.bf16.mxu0 0
    %729 = vmatpush2.bf16.msra.mxu0 0
    %730 = vmatprep.subr.bf16.mxu0 0
    %731 = vmatpush2.bf16.msra.mxu0 0
    %732 = vmatprep.subr.bf16.mxu0 0
    %733 = vmatpush2.bf16.msra.mxu0 0
    %734 = vmatprep.subr.bf16.mxu0 0
    %735 = vmatpush2.bf16.msra.mxu0 0
    %736 = vmatprep.subr.bf16.mxu0 0
    %737 = vmatpush2.bf16.msra.mxu0 0
    %738 = vmatprep.mubr.bf16.mxu0 0
    %739 = vmatmul.mubr.bf16.gmra.mxu0 %v704
    %v740 = vpop.f32.mrf.mxu0
    %v741 = vadd.f32 %v177, %v740
    %v742 = vpop.f32.mrf.mxu0
    %v743 = vpop.f32.mrf.mxu0
    %v744 = vpop.f32.mrf.mxu0
    %745 = vdwg.mxu0
    %v746 = vadd.f32 %v170, %v741
    %v747 = vxor.u32 %v746, 2147483648
    %v748 = vmul.f32 %v747, 1.442695
    %v749 = vpow.pop %v748
    %v750 = vadd.f32 %v749, 1.0
    %v751 = vrcp.pop %v750
    %v752 = vmul.f32 1.0, %v751
    %754 = vrot.lane.b32.xlu0 %v741, 64
    %v755 = vpop.permute.xlu0 %754
    %v757 = vmul.f32 %v752, %v755
    %759 = vrot.lane.b32.xlu0 %v757, 64
    %v760 = vpop.permute.xlu0 %759
    %v762 = vadd.f32 %v170, %v760
    %v763 = vtanh.pop %v762
    %v764 = vsub.f32 1.0, %v752
    %766 = vrot.lane.b32.xlu0 %v763, 96
    %v767 = vpop.permute.xlu0 %766
    %v769 = vmul.f32 %v764, %v767
    %v770 = vmul.f32 %v752, %v698
    %v771 = vadd.f32 %v769, %v770
    %773 = vrot.lane.b32.xlu0 %v771, 96
    %v774 = vpop.permute.xlu0 %773
    %776 = vst.msk [vmem:[#allocation6] sm:$0xff] %vm191, %v774
    %v777 = vld [vmem:[%s1] sm:$0xff]
    %v778 = vpack.c.bf16 %v777, %v777
    %v780 = vlaneseq
    %v781 = vshrl.u32 %v780, 7
    %v782 = vsub.s32 0, %v781
    %v783 = vrot.slane %v65, %v782
    %v787 = vunpack.c.l.b16 %v54
    %v788 = vunpack.c.l.b16 %v55
    %v789 = vpack.c.b16 %v788, %v787
    %v792 = vsel %vm95, %v778, 0
    %794 = vmatprep.subr.bf16.mxu0 0
    %795 = vmatpush1.bf16.msra.mxu0 0
    %796 = vmatprep.subr.bf16.mxu0 0
    %797 = vmatpush1.bf16.msra.mxu0 0
    %798 = vmatprep.subr.bf16.mxu0 0
    %799 = vmatpush1.bf16.msra.mxu0 0
    %800 = vmatprep.subr.bf16.mxu0 0
    %801 = vmatpush1.bf16.msra.mxu0 0
    %802 = vmatprep.subr.bf16.mxu0 0
    %803 = vmatpush1.bf16.msra.mxu0 0
    %804 = vmatprep.subr.bf16.mxu0 0
    %805 = vmatpush1.bf16.msra.mxu0 0
    %806 = vmatprep.subr.bf16.mxu0 0
    %807 = vmatpush1.bf16.msra.mxu0 0
    %808 = vmatprep.subr.bf16.mxu0 0
    %809 = vmatpush1.bf16.msra.mxu0 %v789
    %810 = vmatprep.subr.bf16.mxu0 0
    %811 = vmatpush2.bf16.msra.mxu0 0
    %812 = vmatprep.subr.bf16.mxu0 0
    %813 = vmatpush2.bf16.msra.mxu0 0
    %814 = vmatprep.subr.bf16.mxu0 0
    %815 = vmatpush2.bf16.msra.mxu0 0
    %816 = vmatprep.subr.bf16.mxu0 0
    %817 = vmatpush2.bf16.msra.mxu0 0
    %818 = vmatprep.subr.bf16.mxu0 0
    %819 = vmatpush2.bf16.msra.mxu0 0
    %820 = vmatprep.subr.bf16.mxu0 0
    %821 = vmatpush2.bf16.msra.mxu0 0
    %822 = vmatprep.subr.bf16.mxu0 0
    %823 = vmatpush2.bf16.msra.mxu0 0
    %824 = vmatprep.subr.bf16.mxu0 0
    %825 = vmatpush2.bf16.msra.mxu0 0
    %826 = vmatprep.mubr.bf16.mxu0 0
    %827 = vmatmul.mubr.bf16.gmra.mxu0 %v792
    %v828 = vpop.f32.mrf.mxu0
    %v829 = vadd.f32 %v783, %v828
    %v830 = vpop.f32.mrf.mxu0
    %v831 = vpop.f32.mrf.mxu0
    %v832 = vpop.f32.mrf.mxu0
    %833 = vdwg.mxu0
    %v834 = vpack.c.bf16 %v771, %v771
    %v836 = vlaneseq
    %v837 = vshrl.u32 %v836, 7
    %v838 = vsub.s32 0, %v837
    %v839 = vrot.slane %v66, %v838
    %842 = vrot.lane.b32.xlu0 %v834, 96
    %v843 = vpop.permute.xlu0 %842
    %v848 = vunpack.c.l.b16 %v56
    %v849 = vunpack.c.l.b16 %v57
    %v850 = vunpack.c.l.b16 %v58
    %v851 = vunpack.c.l.b16 %v59
    %v852 = vpack.c.b16 %v849, %v848
    %v853 = vpack.c.b16 %v851, %v850
    %v857 = vsel %vm191, %v843, 0
    %859 = vmatprep.subr.bf16.mxu0 0
    %860 = vmatpush1.bf16.msra.mxu0 0
    %861 = vmatprep.subr.bf16.mxu0 0
    %862 = vmatpush1.bf16.msra.mxu0 0
    %863 = vmatprep.subr.bf16.mxu0 0
    %864 = vmatpush1.bf16.msra.mxu0 0
    %865 = vmatprep.subr.bf16.mxu0 0
    %866 = vmatpush1.bf16.msra.mxu0 0
    %867 = vmatprep.subr.bf16.mxu0 0
    %868 = vmatpush1.bf16.msra.mxu0 0
    %869 = vmatprep.subr.bf16.mxu0 0
    %870 = vmatpush1.bf16.msra.mxu0 0
    %871 = vmatprep.subr.bf16.mxu0 0
    %872 = vmatpush1.bf16.msra.mxu0 %v853
    %873 = vmatprep.subr.bf16.mxu0 0
    %874 = vmatpush1.bf16.msra.mxu0 %v852
    %875 = vmatprep.subr.bf16.mxu0 0
    %876 = vmatpush2.bf16.msra.mxu0 0
    %877 = vmatprep.subr.bf16.mxu0 0
    %878 = vmatpush2.bf16.msra.mxu0 0
    %879 = vmatprep.subr.bf16.mxu0 0
    %880 = vmatpush2.bf16.msra.mxu0 0
    %881 = vmatprep.subr.bf16.mxu0 0
    %882 = vmatpush2.bf16.msra.mxu0 0
    %883 = vmatprep.subr.bf16.mxu0 0
    %884 = vmatpush2.bf16.msra.mxu0 0
    %885 = vmatprep.subr.bf16.mxu0 0
    %886 = vmatpush2.bf16.msra.mxu0 0
    %887 = vmatprep.subr.bf16.mxu0 0
    %888 = vmatpush2.bf16.msra.mxu0 0
    %889 = vmatprep.subr.bf16.mxu0 0
    %890 = vmatpush2.bf16.msra.mxu0 0
    %891 = vmatprep.mubr.bf16.mxu0 0
    %892 = vmatmul.mubr.bf16.gmra.mxu0 %v857
    %v893 = vpop.f32.mrf.mxu0
    %v894 = vadd.f32 %v839, %v893
    %v895 = vpop.f32.mrf.mxu0
    %v896 = vpop.f32.mrf.mxu0
    %v897 = vpop.f32.mrf.mxu0
    %898 = vdwg.mxu0
    %v899 = vadd.f32 %v829, %v894
    %v900 = vxor.u32 %v899, 2147483648
    %v901 = vmul.f32 %v900, 1.442695
    %v902 = vpow.pop %v901
    %v903 = vadd.f32 %v902, 1.0
    %v904 = vrcp.pop %v903
    %v905 = vmul.f32 1.0, %v904
    %907 = vrot.lane.b32.xlu0 %v894, 64
    %v908 = vpop.permute.xlu0 %907
    %v910 = vmul.f32 %v905, %v908
    %912 = vrot.lane.b32.xlu0 %v910, 64
    %v913 = vpop.permute.xlu0 %912
    %v915 = vadd.f32 %v829, %v913
    %v916 = vtanh.pop %v915
    %v917 = vsub.f32 1.0, %v905
    %919 = vrot.lane.b32.xlu0 %v916, 96
    %v920 = vpop.permute.xlu0 %919
    %v922 = vmul.f32 %v917, %v920
    %v923 = vmul.f32 %v905, %v771
    %v924 = vadd.f32 %v922, %v923
    %v925 = vpack.c.bf16 %v924, %v924
    %v927 = vlaneseq
    %v928 = vshrl.u32 %v927, 7
    %v929 = vsub.s32 0, %v928
    %v930 = vrot.slane %v67, %v929
    %933 = vrot.lane.b32.xlu0 %v925, 96
    %v934 = vpop.permute.xlu0 %933
    %v939 = vunpack.c.l.b16 %v60
    %v940 = vunpack.c.l.b16 %v61
    %v941 = vunpack.c.l.b16 %v62
    %v942 = vunpack.c.l.b16 %v63
    %v943 = vpack.c.b16 %v940, %v939
    %v944 = vpack.c.b16 %v942, %v941
    %v948 = vsel %vm191, %v934, 0
    %950 = vmatprep.subr.bf16.mxu0 0
    %951 = vmatpush1.bf16.msra.mxu0 0
    %952 = vmatprep.subr.bf16.mxu0 0
    %953 = vmatpush1.bf16.msra.mxu0 0
    %954 = vmatprep.subr.bf16.mxu0 0
    %955 = vmatpush1.bf16.msra.mxu0 0
    %956 = vmatprep.subr.bf16.mxu0 0
    %957 = vmatpush1.bf16.msra.mxu0 0
    %958 = vmatprep.subr.bf16.mxu0 0
    %959 = vmatpush1.bf16.msra.mxu0 0
    %960 = vmatprep.subr.bf16.mxu0 0
    %961 = vmatpush1.bf16.msra.mxu0 0
    %962 = vmatprep.subr.bf16.mxu0 0
    %963 = vmatpush1.bf16.msra.mxu0 %v944
    %964 = vmatprep.subr.bf16.mxu0 0
    %965 = vmatpush1.bf16.msra.mxu0 %v943
    %966 = vmatprep.subr.bf16.mxu0 0
    %967 = vmatpush2.bf16.msra.mxu0 0
    %968 = vmatprep.subr.bf16.mxu0 0
    %969 = vmatpush2.bf16.msra.mxu0 0
    %970 = vmatprep.subr.bf16.mxu0 0
    %971 = vmatpush2.bf16.msra.mxu0 0
    %972 = vmatprep.subr.bf16.mxu0 0
    %973 = vmatpush2.bf16.msra.mxu0 0
    %974 = vmatprep.subr.bf16.mxu0 0
    %975 = vmatpush2.bf16.msra.mxu0 0
    %976 = vmatprep.subr.bf16.mxu0 0
    %977 = vmatpush2.bf16.msra.mxu0 0
    %978 = vmatprep.subr.bf16.mxu0 0
    %979 = vmatpush2.bf16.msra.mxu0 0
    %980 = vmatprep.subr.bf16.mxu0 0
    %981 = vmatpush2.bf16.msra.mxu0 0
    %982 = vmatprep.mubr.bf16.mxu0 0
    %983 = vmatmul.mubr.bf16.gmra.mxu0 %v948
    %v984 = vpop.f32.mrf.mxu0
    %v985 = vadd.f32 %v930, %v984
    %v986 = vpop.f32.mrf.mxu0
    %v987 = vpop.f32.mrf.mxu0
    %v988 = vpop.f32.mrf.mxu0
    %989 = vdwg.mxu0
    %s990 = sld [smem:[#allocation3]]
    %p991 = scmp.ne.s32.totalorder %s990, 0
    %s992 = scalar_select %p991, 1, 0
    %v993 = vstv %s992
    %vm994 = vcmp.eq.s32.totalorder %v993, 1
    %v995 = vsel %vm994, %v777, %v985
    %v996 = vpack.c.bf16 %v995, %v995
    %v998 = vsel %vm95, %v996, 0
    %1000 = vmatprep.subr.bf16.mxu0 0
    %1001 = vmatpush1.bf16.msra.mxu0 0
    %1002 = vmatprep.subr.bf16.mxu0 0
    %1003 = vmatpush1.bf16.msra.mxu0 0
    %1004 = vmatprep.subr.bf16.mxu0 0
    %1005 = vmatpush1.bf16.msra.mxu0 0
    %1006 = vmatprep.subr.bf16.mxu0 0
    %1007 = vmatpush1.bf16.msra.mxu0 0
    %1008 = vmatprep.subr.bf16.mxu0 0
    %1009 = vmatpush1.bf16.msra.mxu0 0
    %1010 = vmatprep.subr.bf16.mxu0 0
    %1011 = vmatpush1.bf16.msra.mxu0 0
    %1012 = vmatprep.subr.bf16.mxu0 0
    %1013 = vmatpush1.bf16.msra.mxu0 0
    %1014 = vmatprep.subr.bf16.mxu0 0
    %1015 = vmatpush1.bf16.msra.mxu0 %v789
    %1016 = vmatprep.subr.bf16.mxu0 0
    %1017 = vmatpush2.bf16.msra.mxu0 0
    %1018 = vmatprep.subr.bf16.mxu0 0
    %1019 = vmatpush2.bf16.msra.mxu0 0
    %1020 = vmatprep.subr.bf16.mxu0 0
    %1021 = vmatpush2.bf16.msra.mxu0 0
    %1022 = vmatprep.subr.bf16.mxu0 0
    %1023 = vmatpush2.bf16.msra.mxu0 0
    %1024 = vmatprep.subr.bf16.mxu0 0
    %1025 = vmatpush2.bf16.msra.mxu0 0
    %1026 = vmatprep.subr.bf16.mxu0 0
    %1027 = vmatpush2.bf16.msra.mxu0 0
    %1028 = vmatprep.subr.bf16.mxu0 0
    %1029 = vmatpush2.bf16.msra.mxu0 0
    %1030 = vmatprep.subr.bf16.mxu0 0
    %1031 = vmatpush2.bf16.msra.mxu0 0
    %1032 = vmatprep.mubr.bf16.mxu0 0
    %1033 = vmatmul.mubr.bf16.gmra.mxu0 %v998
    %v1034 = vpop.f32.mrf.mxu0
    %v1035 = vadd.f32 %v783, %v1034
    %v1036 = vpop.f32.mrf.mxu0
    %v1037 = vpop.f32.mrf.mxu0
    %v1038 = vpop.f32.mrf.mxu0
    %1039 = vdwg.mxu0
    %1040 = vmatprep.subr.bf16.mxu0 0
    %1041 = vmatpush1.bf16.msra.mxu0 0
    %1042 = vmatprep.subr.bf16.mxu0 0
    %1043 = vmatpush1.bf16.msra.mxu0 0
    %1044 = vmatprep.subr.bf16.mxu0 0
    %1045 = vmatpush1.bf16.msra.mxu0 0
    %1046 = vmatprep.subr.bf16.mxu0 0
    %1047 = vmatpush1.bf16.msra.mxu0 0
    %1048 = vmatprep.subr.bf16.mxu0 0
    %1049 = vmatpush1.bf16.msra.mxu0 0
    %1050 = vmatprep.subr.bf16.mxu0 0
    %1051 = vmatpush1.bf16.msra.mxu0 0
    %1052 = vmatprep.subr.bf16.mxu0 0
    %1053 = vmatpush1.bf16.msra.mxu0 %v853
    %1054 = vmatprep.subr.bf16.mxu0 0
    %1055 = vmatpush1.bf16.msra.mxu0 %v852
    %1056 = vmatprep.subr.bf16.mxu0 0
    %1057 = vmatpush2.bf16.msra.mxu0 0
    %1058 = vmatprep.subr.bf16.mxu0 0
    %1059 = vmatpush2.bf16.msra.mxu0 0
    %1060 = vmatprep.subr.bf16.mxu0 0
    %1061 = vmatpush2.bf16.msra.mxu0 0
    %1062 = vmatprep.subr.bf16.mxu0 0
    %1063 = vmatpush2.bf16.msra.mxu0 0
    %1064 = vmatprep.subr.bf16.mxu0 0
    %1065 = vmatpush2.bf16.msra.mxu0 0
    %1066 = vmatprep.subr.bf16.mxu0 0
    %1067 = vmatpush2.bf16.msra.mxu0 0
    %1068 = vmatprep.subr.bf16.mxu0 0
    %1069 = vmatpush2.bf16.msra.mxu0 0
    %1070 = vmatprep.subr.bf16.mxu0 0
    %1071 = vmatpush2.bf16.msra.mxu0 0
    %1072 = vmatprep.mubr.bf16.mxu0 0
    %1073 = vmatmul.mubr.bf16.gmra.mxu0 %v948
    %v1074 = vpop.f32.mrf.mxu0
    %v1075 = vadd.f32 %v839, %v1074
    %v1076 = vpop.f32.mrf.mxu0
    %v1077 = vpop.f32.mrf.mxu0
    %v1078 = vpop.f32.mrf.mxu0
    %1079 = vdwg.mxu0
    %v1080 = vadd.f32 %v1035, %v1075
    %v1081 = vxor.u32 %v1080, 2147483648
    %v1082 = vmul.f32 %v1081, 1.442695
    %v1083 = vpow.pop %v1082
    %v1084 = vadd.f32 %v1083, 1.0
    %v1085 = vrcp.pop %v1084
    %v1086 = vmul.f32 1.0, %v1085
    %1088 = vrot.lane.b32.xlu0 %v1075, 64
    %v1089 = vpop.permute.xlu0 %1088
    %v1091 = vmul.f32 %v1086, %v1089
    %1093 = vrot.lane.b32.xlu0 %v1091, 64
    %v1094 = vpop.permute.xlu0 %1093
    %v1096 = vadd.f32 %v1035, %v1094
    %v1097 = vtanh.pop %v1096
    %v1098 = vsub.f32 1.0, %v1086
    %1100 = vrot.lane.b32.xlu0 %v1097, 96
    %v1101 = vpop.permute.xlu0 %1100
    %v1103 = vmul.f32 %v1098, %v1101
    %v1104 = vmul.f32 %v1086, %v924
    %v1105 = vadd.f32 %v1103, %v1104
    %v1106 = vpack.c.bf16 %v1105, %v1105
    %1108 = vrot.lane.b32.xlu0 %v1106, 96
    %v1109 = vpop.permute.xlu0 %1108
    %v1111 = vsel %vm191, %v1109, 0
    %1113 = vmatprep.subr.bf16.mxu0 0
    %1114 = vmatpush1.bf16.msra.mxu0 0
    %1115 = vmatprep.subr.bf16.mxu0 0
    %1116 = vmatpush1.bf16.msra.mxu0 0
    %1117 = vmatprep.subr.bf16.mxu0 0
    %1118 = vmatpush1.bf16.msra.mxu0 0
    %1119 = vmatprep.subr.bf16.mxu0 0
    %1120 = vmatpush1.bf16.msra.mxu0 0
    %1121 = vmatprep.subr.bf16.mxu0 0
    %1122 = vmatpush1.bf16.msra.mxu0 0
    %1123 = vmatprep.subr.bf16.mxu0 0
    %1124 = vmatpush1.bf16.msra.mxu0 0
    %1125 = vmatprep.subr.bf16.mxu0 0
    %1126 = vmatpush1.bf16.msra.mxu0 %v944
    %1127 = vmatprep.subr.bf16.mxu0 0
    %1128 = vmatpush1.bf16.msra.mxu0 %v943
    %1129 = vmatprep.subr.bf16.mxu0 0
    %1130 = vmatpush2.bf16.msra.mxu0 0
    %1131 = vmatprep.subr.bf16.mxu0 0
    %1132 = vmatpush2.bf16.msra.mxu0 0
    %1133 = vmatprep.subr.bf16.mxu0 0
    %1134 = vmatpush2.bf16.msra.mxu0 0
    %1135 = vmatprep.subr.bf16.mxu0 0
    %1136 = vmatpush2.bf16.msra.mxu0 0
    %1137 = vmatprep.subr.bf16.mxu0 0
    %1138 = vmatpush2.bf16.msra.mxu0 0
    %1139 = vmatprep.subr.bf16.mxu0 0
    %1140 = vmatpush2.bf16.msra.mxu0 0
    %1141 = vmatprep.subr.bf16.mxu0 0
    %1142 = vmatpush2.bf16.msra.mxu0 0
    %1143 = vmatprep.subr.bf16.mxu0 0
    %1144 = vmatpush2.bf16.msra.mxu0 0
    %1145 = vmatprep.mubr.bf16.mxu0 0
    %1146 = vmatmul.mubr.bf16.gmra.mxu0 %v1111
    %v1147 = vpop.f32.mrf.mxu0
    %v1148 = vadd.f32 %v930, %v1147
    %v1149 = vpop.f32.mrf.mxu0
    %v1150 = vpop.f32.mrf.mxu0
    %v1151 = vpop.f32.mrf.mxu0
    %1152 = vdwg.mxu0
    %s1153 = sld [smem:[#allocation3 + $0x1]]
    %p1154 = scmp.ne.s32.totalorder %s1153, 0
    %v1155 = vld [vmem:[%s1 + $0x8] sm:$0xff]
    %s1156 = scalar_select %p1154, 1, 0
    %v1157 = vstv %s1156
    %vm1158 = vcmp.eq.s32.totalorder %v1157, 1
    %v1159 = vsel %vm1158, %v1155, %v1148
    %v1160 = vpack.c.bf16 %v1159, %v1159
    %v1162 = vsel %vm95, %v1160, 0
    %1164 = vmatprep.subr.bf16.mxu0 0
    %1165 = vmatpush1.bf16.msra.mxu0 0
    %1166 = vmatprep.subr.bf16.mxu0 0
    %1167 = vmatpush1.bf16.msra.mxu0 0
    %1168 = vmatprep.subr.bf16.mxu0 0
    %1169 = vmatpush1.bf16.msra.mxu0 0
    %1170 = vmatprep.subr.bf16.mxu0 0
    %1171 = vmatpush1.bf16.msra.mxu0 0
    %1172 = vmatprep.subr.bf16.mxu0 0
    %1173 = vmatpush1.bf16.msra.mxu0 0
    %1174 = vmatprep.subr.bf16.mxu0 0
    %1175 = vmatpush1.bf16.msra.mxu0 0
    %1176 = vmatprep.subr.bf16.mxu0 0
    %1177 = vmatpush1.bf16.msra.mxu0 0
    %1178 = vmatprep.subr.bf16.mxu0 0
    %1179 = vmatpush1.bf16.msra.mxu0 %v789
    %1180 = vmatprep.subr.bf16.mxu0 0
    %1181 = vmatpush2.bf16.msra.mxu0 0
    %1182 = vmatprep.subr.bf16.mxu0 0
    %1183 = vmatpush2.bf16.msra.mxu0 0
    %1184 = vmatprep.subr.bf16.mxu0 0
    %1185 = vmatpush2.bf16.msra.mxu0 0
    %1186 = vmatprep.subr.bf16.mxu0 0
    %1187 = vmatpush2.bf16.msra.mxu0 0
    %1188 = vmatprep.subr.bf16.mxu0 0
    %1189 = vmatpush2.bf16.msra.mxu0 0
    %1190 = vmatprep.subr.bf16.mxu0 0
    %1191 = vmatpush2.bf16.msra.mxu0 0
    %1192 = vmatprep.subr.bf16.mxu0 0
    %1193 = vmatpush2.bf16.msra.mxu0 0
    %1194 = vmatprep.subr.bf16.mxu0 0
    %1195 = vmatpush2.bf16.msra.mxu0 0
    %1196 = vmatprep.mubr.bf16.mxu0 0
    %1197 = vmatmul.mubr.bf16.gmra.mxu0 %v1162
    %v1198 = vpop.f32.mrf.mxu0
    %v1199 = vadd.f32 %v783, %v1198
    %v1200 = vpop.f32.mrf.mxu0
    %v1201 = vpop.f32.mrf.mxu0
    %v1202 = vpop.f32.mrf.mxu0
    %1203 = vdwg.mxu0
    %1204 = vmatprep.subr.bf16.mxu0 0
    %1205 = vmatpush1.bf16.msra.mxu0 0
    %1206 = vmatprep.subr.bf16.mxu0 0
    %1207 = vmatpush1.bf16.msra.mxu0 0
    %1208 = vmatprep.subr.bf16.mxu0 0
    %1209 = vmatpush1.bf16.msra.mxu0 0
    %1210 = vmatprep.subr.bf16.mxu0 0
    %1211 = vmatpush1.bf16.msra.mxu0 0
    %1212 = vmatprep.subr.bf16.mxu0 0
    %1213 = vmatpush1.bf16.msra.mxu0 0
    %1214 = vmatprep.subr.bf16.mxu0 0
    %1215 = vmatpush1.bf16.msra.mxu0 0
    %1216 = vmatprep.subr.bf16.mxu0 0
    %1217 = vmatpush1.bf16.msra.mxu0 %v853
    %1218 = vmatprep.subr.bf16.mxu0 0
    %1219 = vmatpush1.bf16.msra.mxu0 %v852
    %1220 = vmatprep.subr.bf16.mxu0 0
    %1221 = vmatpush2.bf16.msra.mxu0 0
    %1222 = vmatprep.subr.bf16.mxu0 0
    %1223 = vmatpush2.bf16.msra.mxu0 0
    %1224 = vmatprep.subr.bf16.mxu0 0
    %1225 = vmatpush2.bf16.msra.mxu0 0
    %1226 = vmatprep.subr.bf16.mxu0 0
    %1227 = vmatpush2.bf16.msra.mxu0 0
    %1228 = vmatprep.subr.bf16.mxu0 0
    %1229 = vmatpush2.bf16.msra.mxu0 0
    %1230 = vmatprep.subr.bf16.mxu0 0
    %1231 = vmatpush2.bf16.msra.mxu0 0
    %1232 = vmatprep.subr.bf16.mxu0 0
    %1233 = vmatpush2.bf16.msra.mxu0 0
    %1234 = vmatprep.subr.bf16.mxu0 0
    %1235 = vmatpush2.bf16.msra.mxu0 0
    %1236 = vmatprep.mubr.bf16.mxu0 0
    %1237 = vmatmul.mubr.bf16.gmra.mxu0 %v1111
    %v1238 = vpop.f32.mrf.mxu0
    %v1239 = vadd.f32 %v839, %v1238
    %v1240 = vpop.f32.mrf.mxu0
    %v1241 = vpop.f32.mrf.mxu0
    %v1242 = vpop.f32.mrf.mxu0
    %1243 = vdwg.mxu0
    %v1244 = vadd.f32 %v1199, %v1239
    %v1245 = vxor.u32 %v1244, 2147483648
    %v1246 = vmul.f32 %v1245, 1.442695
    %v1247 = vpow.pop %v1246
    %v1248 = vadd.f32 %v1247, 1.0
    %v1249 = vrcp.pop %v1248
    %v1250 = vmul.f32 1.0, %v1249
    %1252 = vrot.lane.b32.xlu0 %v1239, 64
    %v1253 = vpop.permute.xlu0 %1252
    %v1255 = vmul.f32 %v1250, %v1253
    %1257 = vrot.lane.b32.xlu0 %v1255, 64
    %v1258 = vpop.permute.xlu0 %1257
    %v1260 = vadd.f32 %v1199, %v1258
    %v1261 = vtanh.pop %v1260
    %v1262 = vsub.f32 1.0, %v1250
    %1264 = vrot.lane.b32.xlu0 %v1261, 96
    %v1265 = vpop.permute.xlu0 %1264
    %v1267 = vmul.f32 %v1262, %v1265
    %v1268 = vmul.f32 %v1250, %v1105
    %v1269 = vadd.f32 %v1267, %v1268
    %v1270 = vpack.c.bf16 %v1269, %v1269
    %1272 = vrot.lane.b32.xlu0 %v1270, 96
    %v1273 = vpop.permute.xlu0 %1272
    %v1275 = vsel %vm191, %v1273, 0
    %1277 = vmatprep.subr.bf16.mxu0 0
    %1278 = vmatpush1.bf16.msra.mxu0 0
    %1279 = vmatprep.subr.bf16.mxu0 0
    %1280 = vmatpush1.bf16.msra.mxu0 0
    %1281 = vmatprep.subr.bf16.mxu0 0
    %1282 = vmatpush1.bf16.msra.mxu0 0
    %1283 = vmatprep.subr.bf16.mxu0 0
    %1284 = vmatpush1.bf16.msra.mxu0 0
    %1285 = vmatprep.subr.bf16.mxu0 0
    %1286 = vmatpush1.bf16.msra.mxu0 0
    %1287 = vmatprep.subr.bf16.mxu0 0
    %1288 = vmatpush1.bf16.msra.mxu0 0
    %1289 = vmatprep.subr.bf16.mxu0 0
    %1290 = vmatpush1.bf16.msra.mxu0 %v944
    %1291 = vmatprep.subr.bf16.mxu0 0
    %1292 = vmatpush1.bf16.msra.mxu0 %v943
    %1293 = vmatprep.subr.bf16.mxu0 0
    %1294 = vmatpush2.bf16.msra.mxu0 0
    %1295 = vmatprep.subr.bf16.mxu0 0
    %1296 = vmatpush2.bf16.msra.mxu0 0
    %1297 = vmatprep.subr.bf16.mxu0 0
    %1298 = vmatpush2.bf16.msra.mxu0 0
    %1299 = vmatprep.subr.bf16.mxu0 0
    %1300 = vmatpush2.bf16.msra.mxu0 0
    %1301 = vmatprep.subr.bf16.mxu0 0
    %1302 = vmatpush2.bf16.msra.mxu0 0
    %1303 = vmatprep.subr.bf16.mxu0 0
    %1304 = vmatpush2.bf16.msra.mxu0 0
    %1305 = vmatprep.subr.bf16.mxu0 0
    %1306 = vmatpush2.bf16.msra.mxu0 0
    %1307 = vmatprep.subr.bf16.mxu0 0
    %1308 = vmatpush2.bf16.msra.mxu0 0
    %1309 = vmatprep.mubr.bf16.mxu0 0
    %1310 = vmatmul.mubr.bf16.gmra.mxu0 %v1275
    %v1311 = vpop.f32.mrf.mxu0
    %v1312 = vadd.f32 %v930, %v1311
    %v1313 = vpop.f32.mrf.mxu0
    %v1314 = vpop.f32.mrf.mxu0
    %v1315 = vpop.f32.mrf.mxu0
    %1316 = vdwg.mxu0
    %s1317 = sld [smem:[#allocation3 + $0x2]]
    %p1318 = scmp.ne.s32.totalorder %s1317, 0
    %v1319 = vld [vmem:[%s1 + $0x10] sm:$0xff]
    %s1320 = scalar_select %p1318, 1, 0
    %v1321 = vstv %s1320
    %vm1322 = vcmp.eq.s32.totalorder %v1321, 1
    %v1323 = vsel %vm1322, %v1319, %v1312
    %v1324 = vpack.c.bf16 %v1323, %v1323
    %v1326 = vsel %vm95, %v1324, 0
    %1328 = vmatprep.subr.bf16.mxu0 0
    %1329 = vmatpush1.bf16.msra.mxu0 0
    %1330 = vmatprep.subr.bf16.mxu0 0
    %1331 = vmatpush1.bf16.msra.mxu0 0
    %1332 = vmatprep.subr.bf16.mxu0 0
    %1333 = vmatpush1.bf16.msra.mxu0 0
    %1334 = vmatprep.subr.bf16.mxu0 0
    %1335 = vmatpush1.bf16.msra.mxu0 0
    %1336 = vmatprep.subr.bf16.mxu0 0
    %1337 = vmatpush1.bf16.msra.mxu0 0
    %1338 = vmatprep.subr.bf16.mxu0 0
    %1339 = vmatpush1.bf16.msra.mxu0 0
    %1340 = vmatprep.subr.bf16.mxu0 0
    %1341 = vmatpush1.bf16.msra.mxu0 0
    %1342 = vmatprep.subr.bf16.mxu0 0
    %1343 = vmatpush1.bf16.msra.mxu0 %v789
    %1344 = vmatprep.subr.bf16.mxu0 0
    %1345 = vmatpush2.bf16.msra.mxu0 0
    %1346 = vmatprep.subr.bf16.mxu0 0
    %1347 = vmatpush2.bf16.msra.mxu0 0
    %1348 = vmatprep.subr.bf16.mxu0 0
    %1349 = vmatpush2.bf16.msra.mxu0 0
    %1350 = vmatprep.subr.bf16.mxu0 0
    %1351 = vmatpush2.bf16.msra.mxu0 0
    %1352 = vmatprep.subr.bf16.mxu0 0
    %1353 = vmatpush2.bf16.msra.mxu0 0
    %1354 = vmatprep.subr.bf16.mxu0 0
    %1355 = vmatpush2.bf16.msra.mxu0 0
    %1356 = vmatprep.subr.bf16.mxu0 0
    %1357 = vmatpush2.bf16.msra.mxu0 0
    %1358 = vmatprep.subr.bf16.mxu0 0
    %1359 = vmatpush2.bf16.msra.mxu0 0
    %1360 = vmatprep.mubr.bf16.mxu0 0
    %1361 = vmatmul.mubr.bf16.gmra.mxu0 %v1326
    %v1362 = vpop.f32.mrf.mxu0
    %v1363 = vadd.f32 %v783, %v1362
    %v1364 = vpop.f32.mrf.mxu0
    %v1365 = vpop.f32.mrf.mxu0
    %v1366 = vpop.f32.mrf.mxu0
    %1367 = vdwg.mxu0
    %1368 = vmatprep.subr.bf16.mxu0 0
    %1369 = vmatpush1.bf16.msra.mxu0 0
    %1370 = vmatprep.subr.bf16.mxu0 0
    %1371 = vmatpush1.bf16.msra.mxu0 0
    %1372 = vmatprep.subr.bf16.mxu0 0
    %1373 = vmatpush1.bf16.msra.mxu0 0
    %1374 = vmatprep.subr.bf16.mxu0 0
    %1375 = vmatpush1.bf16.msra.mxu0 0
    %1376 = vmatprep.subr.bf16.mxu0 0
    %1377 = vmatpush1.bf16.msra.mxu0 0
    %1378 = vmatprep.subr.bf16.mxu0 0
    %1379 = vmatpush1.bf16.msra.mxu0 0
    %1380 = vmatprep.subr.bf16.mxu0 0
    %1381 = vmatpush1.bf16.msra.mxu0 %v853
    %1382 = vmatprep.subr.bf16.mxu0 0
    %1383 = vmatpush1.bf16.msra.mxu0 %v852
    %1384 = vmatprep.subr.bf16.mxu0 0
    %1385 = vmatpush2.bf16.msra.mxu0 0
    %1386 = vmatprep.subr.bf16.mxu0 0
    %1387 = vmatpush2.bf16.msra.mxu0 0
    %1388 = vmatprep.subr.bf16.mxu0 0
    %1389 = vmatpush2.bf16.msra.mxu0 0
    %1390 = vmatprep.subr.bf16.mxu0 0
    %1391 = vmatpush2.bf16.msra.mxu0 0
    %1392 = vmatprep.subr.bf16.mxu0 0
    %1393 = vmatpush2.bf16.msra.mxu0 0
    %1394 = vmatprep.subr.bf16.mxu0 0
    %1395 = vmatpush2.bf16.msra.mxu0 0
    %1396 = vmatprep.subr.bf16.mxu0 0
    %1397 = vmatpush2.bf16.msra.mxu0 0
    %1398 = vmatprep.subr.bf16.mxu0 0
    %1399 = vmatpush2.bf16.msra.mxu0 0
    %1400 = vmatprep.mubr.bf16.mxu0 0
    %1401 = vmatmul.mubr.bf16.gmra.mxu0 %v1275
    %v1402 = vpop.f32.mrf.mxu0
    %v1403 = vadd.f32 %v839, %v1402
    %v1404 = vpop.f32.mrf.mxu0
    %v1405 = vpop.f32.mrf.mxu0
    %v1406 = vpop.f32.mrf.mxu0
    %1407 = vdwg.mxu0
    %v1408 = vadd.f32 %v1363, %v1403
    %v1409 = vxor.u32 %v1408, 2147483648
    %v1410 = vmul.f32 %v1409, 1.442695
    %v1411 = vpow.pop %v1410
    %v1412 = vadd.f32 %v1411, 1.0
    %v1413 = vrcp.pop %v1412
    %v1414 = vmul.f32 1.0, %v1413
    %1416 = vrot.lane.b32.xlu0 %v1403, 64
    %v1417 = vpop.permute.xlu0 %1416
    %v1419 = vmul.f32 %v1414, %v1417
    %1421 = vrot.lane.b32.xlu0 %v1419, 64
    %v1422 = vpop.permute.xlu0 %1421
    %v1424 = vadd.f32 %v1363, %v1422
    %v1425 = vtanh.pop %v1424
    %v1426 = vsub.f32 1.0, %v1414
    %1428 = vrot.lane.b32.xlu0 %v1425, 96
    %v1429 = vpop.permute.xlu0 %1428
    %v1431 = vmul.f32 %v1426, %v1429
    %v1432 = vmul.f32 %v1414, %v1269
    %v1433 = vadd.f32 %v1431, %v1432
    %v1434 = vpack.c.bf16 %v1433, %v1433
    %1436 = vrot.lane.b32.xlu0 %v1434, 96
    %v1437 = vpop.permute.xlu0 %1436
    %v1439 = vsel %vm191, %v1437, 0
    %1441 = vmatprep.subr.bf16.mxu0 0
    %1442 = vmatpush1.bf16.msra.mxu0 0
    %1443 = vmatprep.subr.bf16.mxu0 0
    %1444 = vmatpush1.bf16.msra.mxu0 0
    %1445 = vmatprep.subr.bf16.mxu0 0
    %1446 = vmatpush1.bf16.msra.mxu0 0
    %1447 = vmatprep.subr.bf16.mxu0 0
    %1448 = vmatpush1.bf16.msra.mxu0 0
    %1449 = vmatprep.subr.bf16.mxu0 0
    %1450 = vmatpush1.bf16.msra.mxu0 0
    %1451 = vmatprep.subr.bf16.mxu0 0
    %1452 = vmatpush1.bf16.msra.mxu0 0
    %1453 = vmatprep.subr.bf16.mxu0 0
    %1454 = vmatpush1.bf16.msra.mxu0 %v944
    %1455 = vmatprep.subr.bf16.mxu0 0
    %1456 = vmatpush1.bf16.msra.mxu0 %v943
    %1457 = vmatprep.subr.bf16.mxu0 0
    %1458 = vmatpush2.bf16.msra.mxu0 0
    %1459 = vmatprep.subr.bf16.mxu0 0
    %1460 = vmatpush2.bf16.msra.mxu0 0
    %1461 = vmatprep.subr.bf16.mxu0 0
    %1462 = vmatpush2.bf16.msra.mxu0 0
    %1463 = vmatprep.subr.bf16.mxu0 0
    %1464 = vmatpush2.bf16.msra.mxu0 0
    %1465 = vmatprep.subr.bf16.mxu0 0
    %1466 = vmatpush2.bf16.msra.mxu0 0
    %1467 = vmatprep.subr.bf16.mxu0 0
    %1468 = vmatpush2.bf16.msra.mxu0 0
    %1469 = vmatprep.subr.bf16.mxu0 0
    %1470 = vmatpush2.bf16.msra.mxu0 0
    %1471 = vmatprep.subr.bf16.mxu0 0
    %1472 = vmatpush2.bf16.msra.mxu0 0
    %1473 = vmatprep.mubr.bf16.mxu0 0
    %1474 = vmatmul.mubr.bf16.gmra.mxu0 %v1439
    %v1475 = vpop.f32.mrf.mxu0
    %v1476 = vadd.f32 %v930, %v1475
    %v1477 = vpop.f32.mrf.mxu0
    %v1478 = vpop.f32.mrf.mxu0
    %v1479 = vpop.f32.mrf.mxu0
    %1480 = vdwg.mxu0
    %s1481 = sld [smem:[#allocation3 + $0x3]]
    %p1482 = scmp.ne.s32.totalorder %s1481, 0
    %v1483 = vld [vmem:[%s1 + $0x18] sm:$0xff]
    %s1484 = scalar_select %p1482, 1, 0
    %v1485 = vstv %s1484
    %vm1486 = vcmp.eq.s32.totalorder %v1485, 1
    %v1487 = vsel %vm1486, %v1483, %v1476
    %v1488 = vpack.c.bf16 %v1487, %v1487
    %v1490 = vsel %vm95, %v1488, 0
    %1492 = vmatprep.subr.bf16.mxu0 0
    %1493 = vmatpush1.bf16.msra.mxu0 0
    %1494 = vmatprep.subr.bf16.mxu0 0
    %1495 = vmatpush1.bf16.msra.mxu0 0
    %1496 = vmatprep.subr.bf16.mxu0 0
    %1497 = vmatpush1.bf16.msra.mxu0 0
    %1498 = vmatprep.subr.bf16.mxu0 0
    %1499 = vmatpush1.bf16.msra.mxu0 0
    %1500 = vmatprep.subr.bf16.mxu0 0
    %1501 = vmatpush1.bf16.msra.mxu0 0
    %1502 = vmatprep.subr.bf16.mxu0 0
    %1503 = vmatpush1.bf16.msra.mxu0 0
    %1504 = vmatprep.subr.bf16.mxu0 0
    %1505 = vmatpush1.bf16.msra.mxu0 0
    %1506 = vmatprep.subr.bf16.mxu0 0
    %1507 = vmatpush1.bf16.msra.mxu0 %v789
    %1508 = vmatprep.subr.bf16.mxu0 0
    %1509 = vmatpush2.bf16.msra.mxu0 0
    %1510 = vmatprep.subr.bf16.mxu0 0
    %1511 = vmatpush2.bf16.msra.mxu0 0
    %1512 = vmatprep.subr.bf16.mxu0 0
    %1513 = vmatpush2.bf16.msra.mxu0 0
    %1514 = vmatprep.subr.bf16.mxu0 0
    %1515 = vmatpush2.bf16.msra.mxu0 0
    %1516 = vmatprep.subr.bf16.mxu0 0
    %1517 = vmatpush2.bf16.msra.mxu0 0
    %1518 = vmatprep.subr.bf16.mxu0 0
    %1519 = vmatpush2.bf16.msra.mxu0 0
    %1520 = vmatprep.subr.bf16.mxu0 0
    %1521 = vmatpush2.bf16.msra.mxu0 0
    %1522 = vmatprep.subr.bf16.mxu0 0
    %1523 = vmatpush2.bf16.msra.mxu0 0
    %1524 = vmatprep.mubr.bf16.mxu0 0
    %1525 = vmatmul.mubr.bf16.gmra.mxu0 %v1490
    %v1526 = vpop.f32.mrf.mxu0
    %v1527 = vadd.f32 %v783, %v1526
    %v1528 = vpop.f32.mrf.mxu0
    %v1529 = vpop.f32.mrf.mxu0
    %v1530 = vpop.f32.mrf.mxu0
    %1531 = vdwg.mxu0
    %1532 = vmatprep.subr.bf16.mxu0 0
    %1533 = vmatpush1.bf16.msra.mxu0 0
    %1534 = vmatprep.subr.bf16.mxu0 0
    %1535 = vmatpush1.bf16.msra.mxu0 0
    %1536 = vmatprep.subr.bf16.mxu0 0
    %1537 = vmatpush1.bf16.msra.mxu0 0
    %1538 = vmatprep.subr.bf16.mxu0 0
    %1539 = vmatpush1.bf16.msra.mxu0 0
    %1540 = vmatprep.subr.bf16.mxu0 0
    %1541 = vmatpush1.bf16.msra.mxu0 0
    %1542 = vmatprep.subr.bf16.mxu0 0
    %1543 = vmatpush1.bf16.msra.mxu0 0
    %1544 = vmatprep.subr.bf16.mxu0 0
    %1545 = vmatpush1.bf16.msra.mxu0 %v853
    %1546 = vmatprep.subr.bf16.mxu0 0
    %1547 = vmatpush1.bf16.msra.mxu0 %v852
    %1548 = vmatprep.subr.bf16.mxu0 0
    %1549 = vmatpush2.bf16.msra.mxu0 0
    %1550 = vmatprep.subr.bf16.mxu0 0
    %1551 = vmatpush2.bf16.msra.mxu0 0
    %1552 = vmatprep.subr.bf16.mxu0 0
    %1553 = vmatpush2.bf16.msra.mxu0 0
    %1554 = vmatprep.subr.bf16.mxu0 0
    %1555 = vmatpush2.bf16.msra.mxu0 0
    %1556 = vmatprep.subr.bf16.mxu0 0
    %1557 = vmatpush2.bf16.msra.mxu0 0
    %1558 = vmatprep.subr.bf16.mxu0 0
    %1559 = vmatpush2.bf16.msra.mxu0 0
    %1560 = vmatprep.subr.bf16.mxu0 0
    %1561 = vmatpush2.bf16.msra.mxu0 0
    %1562 = vmatprep.subr.bf16.mxu0 0
    %1563 = vmatpush2.bf16.msra.mxu0 0
    %1564 = vmatprep.mubr.bf16.mxu0 0
    %1565 = vmatmul.mubr.bf16.gmra.mxu0 %v1439
    %v1566 = vpop.f32.mrf.mxu0
    %v1567 = vadd.f32 %v839, %v1566
    %v1568 = vpop.f32.mrf.mxu0
    %v1569 = vpop.f32.mrf.mxu0
    %v1570 = vpop.f32.mrf.mxu0
    %1571 = vdwg.mxu0
    %v1572 = vadd.f32 %v1527, %v1567
    %v1573 = vxor.u32 %v1572, 2147483648
    %v1574 = vmul.f32 %v1573, 1.442695
    %v1575 = vpow.pop %v1574
    %v1576 = vadd.f32 %v1575, 1.0
    %v1577 = vrcp.pop %v1576
    %v1578 = vmul.f32 1.0, %v1577
    %1580 = vrot.lane.b32.xlu0 %v1567, 64
    %v1581 = vpop.permute.xlu0 %1580
    %v1583 = vmul.f32 %v1578, %v1581
    %1585 = vrot.lane.b32.xlu0 %v1583, 64
    %v1586 = vpop.permute.xlu0 %1585
    %v1588 = vadd.f32 %v1527, %v1586
    %v1589 = vtanh.pop %v1588
    %v1590 = vsub.f32 1.0, %v1578
    %1592 = vrot.lane.b32.xlu0 %v1589, 96
    %v1593 = vpop.permute.xlu0 %1592
    %v1595 = vmul.f32 %v1590, %v1593
    %v1596 = vmul.f32 %v1578, %v1433
    %v1597 = vadd.f32 %v1595, %v1596
    %v1598 = vpack.c.bf16 %v1597, %v1597
    %1600 = vrot.lane.b32.xlu0 %v1598, 96
    %v1601 = vpop.permute.xlu0 %1600
    %v1603 = vsel %vm191, %v1601, 0
    %1605 = vmatprep.subr.bf16.mxu0 0
    %1606 = vmatpush1.bf16.msra.mxu0 0
    %1607 = vmatprep.subr.bf16.mxu0 0
    %1608 = vmatpush1.bf16.msra.mxu0 0
    %1609 = vmatprep.subr.bf16.mxu0 0
    %1610 = vmatpush1.bf16.msra.mxu0 0
    %1611 = vmatprep.subr.bf16.mxu0 0
    %1612 = vmatpush1.bf16.msra.mxu0 0
    %1613 = vmatprep.subr.bf16.mxu0 0
    %1614 = vmatpush1.bf16.msra.mxu0 0
    %1615 = vmatprep.subr.bf16.mxu0 0
    %1616 = vmatpush1.bf16.msra.mxu0 0
    %1617 = vmatprep.subr.bf16.mxu0 0
    %1618 = vmatpush1.bf16.msra.mxu0 %v944
    %1619 = vmatprep.subr.bf16.mxu0 0
    %1620 = vmatpush1.bf16.msra.mxu0 %v943
    %1621 = vmatprep.subr.bf16.mxu0 0
    %1622 = vmatpush2.bf16.msra.mxu0 0
    %1623 = vmatprep.subr.bf16.mxu0 0
    %1624 = vmatpush2.bf16.msra.mxu0 0
    %1625 = vmatprep.subr.bf16.mxu0 0
    %1626 = vmatpush2.bf16.msra.mxu0 0
    %1627 = vmatprep.subr.bf16.mxu0 0
    %1628 = vmatpush2.bf16.msra.mxu0 0
    %1629 = vmatprep.subr.bf16.mxu0 0
    %1630 = vmatpush2.bf16.msra.mxu0 0
    %1631 = vmatprep.subr.bf16.mxu0 0
    %1632 = vmatpush2.bf16.msra.mxu0 0
    %1633 = vmatprep.subr.bf16.mxu0 0
    %1634 = vmatpush2.bf16.msra.mxu0 0
    %1635 = vmatprep.subr.bf16.mxu0 0
    %1636 = vmatpush2.bf16.msra.mxu0 0
    %1637 = vmatprep.mubr.bf16.mxu0 0
    %1638 = vmatmul.mubr.bf16.gmra.mxu0 %v1603
    %v1639 = vpop.f32.mrf.mxu0
    %v1640 = vadd.f32 %v930, %v1639
    %v1641 = vpop.f32.mrf.mxu0
    %v1642 = vpop.f32.mrf.mxu0
    %v1643 = vpop.f32.mrf.mxu0
    %1644 = vdwg.mxu0
    %s1645 = sld [smem:[#allocation3 + $0x4]]
    %p1646 = scmp.ne.s32.totalorder %s1645, 0
    %v1647 = vld [vmem:[%s1 + $0x20] sm:$0xff]
    %s1648 = scalar_select %p1646, 1, 0
    %v1649 = vstv %s1648
    %vm1650 = vcmp.eq.s32.totalorder %v1649, 1
    %v1651 = vsel %vm1650, %v1647, %v1640
    %v1652 = vpack.c.bf16 %v1651, %v1651
    %v1654 = vsel %vm95, %v1652, 0
    %1656 = vmatprep.subr.bf16.mxu0 0
    %1657 = vmatpush1.bf16.msra.mxu0 0
    %1658 = vmatprep.subr.bf16.mxu0 0
    %1659 = vmatpush1.bf16.msra.mxu0 0
    %1660 = vmatprep.subr.bf16.mxu0 0
    %1661 = vmatpush1.bf16.msra.mxu0 0
    %1662 = vmatprep.subr.bf16.mxu0 0
    %1663 = vmatpush1.bf16.msra.mxu0 0
    %1664 = vmatprep.subr.bf16.mxu0 0
    %1665 = vmatpush1.bf16.msra.mxu0 0
    %1666 = vmatprep.subr.bf16.mxu0 0
    %1667 = vmatpush1.bf16.msra.mxu0 0
    %1668 = vmatprep.subr.bf16.mxu0 0
    %1669 = vmatpush1.bf16.msra.mxu0 0
    %1670 = vmatprep.subr.bf16.mxu0 0
    %1671 = vmatpush1.bf16.msra.mxu0 %v789
    %1672 = vmatprep.subr.bf16.mxu0 0
    %1673 = vmatpush2.bf16.msra.mxu0 0
    %1674 = vmatprep.subr.bf16.mxu0 0
    %1675 = vmatpush2.bf16.msra.mxu0 0
    %1676 = vmatprep.subr.bf16.mxu0 0
    %1677 = vmatpush2.bf16.msra.mxu0 0
    %1678 = vmatprep.subr.bf16.mxu0 0
    %1679 = vmatpush2.bf16.msra.mxu0 0
    %1680 = vmatprep.subr.bf16.mxu0 0
    %1681 = vmatpush2.bf16.msra.mxu0 0
    %1682 = vmatprep.subr.bf16.mxu0 0
    %1683 = vmatpush2.bf16.msra.mxu0 0
    %1684 = vmatprep.subr.bf16.mxu0 0
    %1685 = vmatpush2.bf16.msra.mxu0 0
    %1686 = vmatprep.subr.bf16.mxu0 0
    %1687 = vmatpush2.bf16.msra.mxu0 0
    %1688 = vmatprep.mubr.bf16.mxu0 0
    %1689 = vmatmul.mubr.bf16.gmra.mxu0 %v1654
    %v1690 = vpop.f32.mrf.mxu0
    %v1691 = vadd.f32 %v783, %v1690
    %v1692 = vpop.f32.mrf.mxu0
    %v1693 = vpop.f32.mrf.mxu0
    %v1694 = vpop.f32.mrf.mxu0
    %1695 = vdwg.mxu0
    %1696 = vmatprep.subr.bf16.mxu0 0
    %1697 = vmatpush1.bf16.msra.mxu0 0
    %1698 = vmatprep.subr.bf16.mxu0 0
    %1699 = vmatpush1.bf16.msra.mxu0 0
    %1700 = vmatprep.subr.bf16.mxu0 0
    %1701 = vmatpush1.bf16.msra.mxu0 0
    %1702 = vmatprep.subr.bf16.mxu0 0
    %1703 = vmatpush1.bf16.msra.mxu0 0
    %1704 = vmatprep.subr.bf16.mxu0 0
    %1705 = vmatpush1.bf16.msra.mxu0 0
    %1706 = vmatprep.subr.bf16.mxu0 0
    %1707 = vmatpush1.bf16.msra.mxu0 0
    %1708 = vmatprep.subr.bf16.mxu0 0
    %1709 = vmatpush1.bf16.msra.mxu0 %v853
    %1710 = vmatprep.subr.bf16.mxu0 0
    %1711 = vmatpush1.bf16.msra.mxu0 %v852
    %1712 = vmatprep.subr.bf16.mxu0 0
    %1713 = vmatpush2.bf16.msra.mxu0 0
    %1714 = vmatprep.subr.bf16.mxu0 0
    %1715 = vmatpush2.bf16.msra.mxu0 0
    %1716 = vmatprep.subr.bf16.mxu0 0
    %1717 = vmatpush2.bf16.msra.mxu0 0
    %1718 = vmatprep.subr.bf16.mxu0 0
    %1719 = vmatpush2.bf16.msra.mxu0 0
    %1720 = vmatprep.subr.bf16.mxu0 0
    %1721 = vmatpush2.bf16.msra.mxu0 0
    %1722 = vmatprep.subr.bf16.mxu0 0
    %1723 = vmatpush2.bf16.msra.mxu0 0
    %1724 = vmatprep.subr.bf16.mxu0 0
    %1725 = vmatpush2.bf16.msra.mxu0 0
    %1726 = vmatprep.subr.bf16.mxu0 0
    %1727 = vmatpush2.bf16.msra.mxu0 0
    %1728 = vmatprep.mubr.bf16.mxu0 0
    %1729 = vmatmul.mubr.bf16.gmra.mxu0 %v1603
    %v1730 = vpop.f32.mrf.mxu0
    %v1731 = vadd.f32 %v839, %v1730
    %v1732 = vpop.f32.mrf.mxu0
    %v1733 = vpop.f32.mrf.mxu0
    %v1734 = vpop.f32.mrf.mxu0
    %1735 = vdwg.mxu0
    %v1736 = vadd.f32 %v1691, %v1731
    %v1737 = vxor.u32 %v1736, 2147483648
    %v1738 = vmul.f32 %v1737, 1.442695
    %v1739 = vpow.pop %v1738
    %v1740 = vadd.f32 %v1739, 1.0
    %v1741 = vrcp.pop %v1740
    %v1742 = vmul.f32 1.0, %v1741
    %1744 = vrot.lane.b32.xlu0 %v1731, 64
    %v1745 = vpop.permute.xlu0 %1744
    %v1747 = vmul.f32 %v1742, %v1745
    %1749 = vrot.lane.b32.xlu0 %v1747, 64
    %v1750 = vpop.permute.xlu0 %1749
    %v1752 = vadd.f32 %v1691, %v1750
    %v1753 = vtanh.pop %v1752
    %v1754 = vsub.f32 1.0, %v1742
    %1756 = vrot.lane.b32.xlu0 %v1753, 96
    %v1757 = vpop.permute.xlu0 %1756
    %v1759 = vmul.f32 %v1754, %v1757
    %v1760 = vmul.f32 %v1742, %v1597
    %v1761 = vadd.f32 %v1759, %v1760
    %v1762 = vpack.c.bf16 %v1761, %v1761
    %1764 = vrot.lane.b32.xlu0 %v1762, 96
    %v1765 = vpop.permute.xlu0 %1764
    %v1767 = vsel %vm191, %v1765, 0
    %1769 = vmatprep.subr.bf16.mxu0 0
    %1770 = vmatpush1.bf16.msra.mxu0 0
    %1771 = vmatprep.subr.bf16.mxu0 0
    %1772 = vmatpush1.bf16.msra.mxu0 0
    %1773 = vmatprep.subr.bf16.mxu0 0
    %1774 = vmatpush1.bf16.msra.mxu0 0
    %1775 = vmatprep.subr.bf16.mxu0 0
    %1776 = vmatpush1.bf16.msra.mxu0 0
    %1777 = vmatprep.subr.bf16.mxu0 0
    %1778 = vmatpush1.bf16.msra.mxu0 0
    %1779 = vmatprep.subr.bf16.mxu0 0
    %1780 = vmatpush1.bf16.msra.mxu0 0
    %1781 = vmatprep.subr.bf16.mxu0 0
    %1782 = vmatpush1.bf16.msra.mxu0 %v944
    %1783 = vmatprep.subr.bf16.mxu0 0
    %1784 = vmatpush1.bf16.msra.mxu0 %v943
    %1785 = vmatprep.subr.bf16.mxu0 0
    %1786 = vmatpush2.bf16.msra.mxu0 0
    %1787 = vmatprep.subr.bf16.mxu0 0
    %1788 = vmatpush2.bf16.msra.mxu0 0
    %1789 = vmatprep.subr.bf16.mxu0 0
    %1790 = vmatpush2.bf16.msra.mxu0 0
    %1791 = vmatprep.subr.bf16.mxu0 0
    %1792 = vmatpush2.bf16.msra.mxu0 0
    %1793 = vmatprep.subr.bf16.mxu0 0
    %1794 = vmatpush2.bf16.msra.mxu0 0
    %1795 = vmatprep.subr.bf16.mxu0 0
    %1796 = vmatpush2.bf16.msra.mxu0 0
    %1797 = vmatprep.subr.bf16.mxu0 0
    %1798 = vmatpush2.bf16.msra.mxu0 0
    %1799 = vmatprep.subr.bf16.mxu0 0
    %1800 = vmatpush2.bf16.msra.mxu0 0
    %1801 = vmatprep.mubr.bf16.mxu0 0
    %1802 = vmatmul.mubr.bf16.gmra.mxu0 %v1767
    %v1803 = vpop.f32.mrf.mxu0
    %v1804 = vadd.f32 %v930, %v1803
    %v1805 = vpop.f32.mrf.mxu0
    %v1806 = vpop.f32.mrf.mxu0
    %v1807 = vpop.f32.mrf.mxu0
    %1808 = vdwg.mxu0
    %s1809 = sld [smem:[#allocation3 + $0x5]]
    %p1810 = scmp.ne.s32.totalorder %s1809, 0
    %v1811 = vld [vmem:[%s1 + $0x28] sm:$0xff]
    %s1812 = scalar_select %p1810, 1, 0
    %v1813 = vstv %s1812
    %vm1814 = vcmp.eq.s32.totalorder %v1813, 1
    %v1815 = vsel %vm1814, %v1811, %v1804
    %v1816 = vpack.c.bf16 %v1815, %v1815
    %v1818 = vsel %vm95, %v1816, 0
    %1820 = vmatprep.subr.bf16.mxu0 0
    %1821 = vmatpush1.bf16.msra.mxu0 0
    %1822 = vmatprep.subr.bf16.mxu0 0
    %1823 = vmatpush1.bf16.msra.mxu0 0
    %1824 = vmatprep.subr.bf16.mxu0 0
    %1825 = vmatpush1.bf16.msra.mxu0 0
    %1826 = vmatprep.subr.bf16.mxu0 0
    %1827 = vmatpush1.bf16.msra.mxu0 0
    %1828 = vmatprep.subr.bf16.mxu0 0
    %1829 = vmatpush1.bf16.msra.mxu0 0
    %1830 = vmatprep.subr.bf16.mxu0 0
    %1831 = vmatpush1.bf16.msra.mxu0 0
    %1832 = vmatprep.subr.bf16.mxu0 0
    %1833 = vmatpush1.bf16.msra.mxu0 0
    %1834 = vmatprep.subr.bf16.mxu0 0
    %1835 = vmatpush1.bf16.msra.mxu0 %v789
    %1836 = vmatprep.subr.bf16.mxu0 0
    %1837 = vmatpush2.bf16.msra.mxu0 0
    %1838 = vmatprep.subr.bf16.mxu0 0
    %1839 = vmatpush2.bf16.msra.mxu0 0
    %1840 = vmatprep.subr.bf16.mxu0 0
    %1841 = vmatpush2.bf16.msra.mxu0 0
    %1842 = vmatprep.subr.bf16.mxu0 0
    %1843 = vmatpush2.bf16.msra.mxu0 0
    %1844 = vmatprep.subr.bf16.mxu0 0
    %1845 = vmatpush2.bf16.msra.mxu0 0
    %1846 = vmatprep.subr.bf16.mxu0 0
    %1847 = vmatpush2.bf16.msra.mxu0 0
    %1848 = vmatprep.subr.bf16.mxu0 0
    %1849 = vmatpush2.bf16.msra.mxu0 0
    %1850 = vmatprep.subr.bf16.mxu0 0
    %1851 = vmatpush2.bf16.msra.mxu0 0
    %1852 = vmatprep.mubr.bf16.mxu0 0
    %1853 = vmatmul.mubr.bf16.gmra.mxu0 %v1818
    %v1854 = vpop.f32.mrf.mxu0
    %v1855 = vadd.f32 %v783, %v1854
    %v1856 = vpop.f32.mrf.mxu0
    %v1857 = vpop.f32.mrf.mxu0
    %v1858 = vpop.f32.mrf.mxu0
    %1859 = vdwg.mxu0
    %1860 = vmatprep.subr.bf16.mxu0 0
    %1861 = vmatpush1.bf16.msra.mxu0 0
    %1862 = vmatprep.subr.bf16.mxu0 0
    %1863 = vmatpush1.bf16.msra.mxu0 0
    %1864 = vmatprep.subr.bf16.mxu0 0
    %1865 = vmatpush1.bf16.msra.mxu0 0
    %1866 = vmatprep.subr.bf16.mxu0 0
    %1867 = vmatpush1.bf16.msra.mxu0 0
    %1868 = vmatprep.subr.bf16.mxu0 0
    %1869 = vmatpush1.bf16.msra.mxu0 0
    %1870 = vmatprep.subr.bf16.mxu0 0
    %1871 = vmatpush1.bf16.msra.mxu0 0
    %1872 = vmatprep.subr.bf16.mxu0 0
    %1873 = vmatpush1.bf16.msra.mxu0 %v853
    %1874 = vmatprep.subr.bf16.mxu0 0
    %1875 = vmatpush1.bf16.msra.mxu0 %v852
    %1876 = vmatprep.subr.bf16.mxu0 0
    %1877 = vmatpush2.bf16.msra.mxu0 0
    %1878 = vmatprep.subr.bf16.mxu0 0
    %1879 = vmatpush2.bf16.msra.mxu0 0
    %1880 = vmatprep.subr.bf16.mxu0 0
    %1881 = vmatpush2.bf16.msra.mxu0 0
    %1882 = vmatprep.subr.bf16.mxu0 0
    %1883 = vmatpush2.bf16.msra.mxu0 0
    %1884 = vmatprep.subr.bf16.mxu0 0
    %1885 = vmatpush2.bf16.msra.mxu0 0
    %1886 = vmatprep.subr.bf16.mxu0 0
    %1887 = vmatpush2.bf16.msra.mxu0 0
    %1888 = vmatprep.subr.bf16.mxu0 0
    %1889 = vmatpush2.bf16.msra.mxu0 0
    %1890 = vmatprep.subr.bf16.mxu0 0
    %1891 = vmatpush2.bf16.msra.mxu0 0
    %1892 = vmatprep.mubr.bf16.mxu0 0
    %1893 = vmatmul.mubr.bf16.gmra.mxu0 %v1767
    %v1894 = vpop.f32.mrf.mxu0
    %v1895 = vadd.f32 %v839, %v1894
    %v1896 = vpop.f32.mrf.mxu0
    %v1897 = vpop.f32.mrf.mxu0
    %v1898 = vpop.f32.mrf.mxu0
    %1899 = vdwg.mxu0
    %v1900 = vadd.f32 %v1855, %v1895
    %v1901 = vxor.u32 %v1900, 2147483648
    %v1902 = vmul.f32 %v1901, 1.442695
    %v1903 = vpow.pop %v1902
    %v1904 = vadd.f32 %v1903, 1.0
    %v1905 = vrcp.pop %v1904
    %v1906 = vmul.f32 1.0, %v1905
    %1908 = vrot.lane.b32.xlu0 %v1895, 64
    %v1909 = vpop.permute.xlu0 %1908
    %v1911 = vmul.f32 %v1906, %v1909
    %1913 = vrot.lane.b32.xlu0 %v1911, 64
    %v1914 = vpop.permute.xlu0 %1913
    %v1916 = vadd.f32 %v1855, %v1914
    %v1917 = vtanh.pop %v1916
    %v1918 = vsub.f32 1.0, %v1906
    %1920 = vrot.lane.b32.xlu0 %v1917, 96
    %v1921 = vpop.permute.xlu0 %1920
    %v1923 = vmul.f32 %v1918, %v1921
    %v1924 = vmul.f32 %v1906, %v1761
    %v1925 = vadd.f32 %v1923, %v1924
    %v1926 = vpack.c.bf16 %v1925, %v1925
    %1928 = vrot.lane.b32.xlu0 %v1926, 96
    %v1929 = vpop.permute.xlu0 %1928
    %v1931 = vsel %vm191, %v1929, 0
    %1933 = vmatprep.subr.bf16.mxu0 0
    %1934 = vmatpush1.bf16.msra.mxu0 0
    %1935 = vmatprep.subr.bf16.mxu0 0
    %1936 = vmatpush1.bf16.msra.mxu0 0
    %1937 = vmatprep.subr.bf16.mxu0 0
    %1938 = vmatpush1.bf16.msra.mxu0 0
    %1939 = vmatprep.subr.bf16.mxu0 0
    %1940 = vmatpush1.bf16.msra.mxu0 0
    %1941 = vmatprep.subr.bf16.mxu0 0
    %1942 = vmatpush1.bf16.msra.mxu0 0
    %1943 = vmatprep.subr.bf16.mxu0 0
    %1944 = vmatpush1.bf16.msra.mxu0 0
    %1945 = vmatprep.subr.bf16.mxu0 0
    %1946 = vmatpush1.bf16.msra.mxu0 %v944
    %1947 = vmatprep.subr.bf16.mxu0 0
    %1948 = vmatpush1.bf16.msra.mxu0 %v943
    %1949 = vmatprep.subr.bf16.mxu0 0
    %1950 = vmatpush2.bf16.msra.mxu0 0
    %1951 = vmatprep.subr.bf16.mxu0 0
    %1952 = vmatpush2.bf16.msra.mxu0 0
    %1953 = vmatprep.subr.bf16.mxu0 0
    %1954 = vmatpush2.bf16.msra.mxu0 0
    %1955 = vmatprep.subr.bf16.mxu0 0
    %1956 = vmatpush2.bf16.msra.mxu0 0
    %1957 = vmatprep.subr.bf16.mxu0 0
    %1958 = vmatpush2.bf16.msra.mxu0 0
    %1959 = vmatprep.subr.bf16.mxu0 0
    %1960 = vmatpush2.bf16.msra.mxu0 0
    %1961 = vmatprep.subr.bf16.mxu0 0
    %1962 = vmatpush2.bf16.msra.mxu0 0
    %1963 = vmatprep.subr.bf16.mxu0 0
    %1964 = vmatpush2.bf16.msra.mxu0 0
    %1965 = vmatprep.mubr.bf16.mxu0 0
    %1966 = vmatmul.mubr.bf16.gmra.mxu0 %v1931
    %v1967 = vpop.f32.mrf.mxu0
    %v1968 = vadd.f32 %v930, %v1967
    %v1969 = vpop.f32.mrf.mxu0
    %v1970 = vpop.f32.mrf.mxu0
    %v1971 = vpop.f32.mrf.mxu0
    %1972 = vdwg.mxu0
    %s1973 = sld [smem:[#allocation3 + $0x6]]
    %p1974 = scmp.ne.s32.totalorder %s1973, 0
    %v1975 = vld [vmem:[%s1 + $0x30] sm:$0xff]
    %s1976 = scalar_select %p1974, 1, 0
    %v1977 = vstv %s1976
    %vm1978 = vcmp.eq.s32.totalorder %v1977, 1
    %v1979 = vsel %vm1978, %v1975, %v1968
    %v1980 = vpack.c.bf16 %v1979, %v1979
    %v1982 = vsel %vm95, %v1980, 0
    %1984 = vmatprep.subr.bf16.mxu0 0
    %1985 = vmatpush1.bf16.msra.mxu0 0
    %1986 = vmatprep.subr.bf16.mxu0 0
    %1987 = vmatpush1.bf16.msra.mxu0 0
    %1988 = vmatprep.subr.bf16.mxu0 0
    %1989 = vmatpush1.bf16.msra.mxu0 0
    %1990 = vmatprep.subr.bf16.mxu0 0
    %1991 = vmatpush1.bf16.msra.mxu0 0
    %1992 = vmatprep.subr.bf16.mxu0 0
    %1993 = vmatpush1.bf16.msra.mxu0 0
    %1994 = vmatprep.subr.bf16.mxu0 0
    %1995 = vmatpush1.bf16.msra.mxu0 0
    %1996 = vmatprep.subr.bf16.mxu0 0
    %1997 = vmatpush1.bf16.msra.mxu0 0
    %1998 = vmatprep.subr.bf16.mxu0 0
    %1999 = vmatpush1.bf16.msra.mxu0 %v789
    %2000 = vmatprep.subr.bf16.mxu0 0
    %2001 = vmatpush2.bf16.msra.mxu0 0
    %2002 = vmatprep.subr.bf16.mxu0 0
    %2003 = vmatpush2.bf16.msra.mxu0 0
    %2004 = vmatprep.subr.bf16.mxu0 0
    %2005 = vmatpush2.bf16.msra.mxu0 0
    %2006 = vmatprep.subr.bf16.mxu0 0
    %2007 = vmatpush2.bf16.msra.mxu0 0
    %2008 = vmatprep.subr.bf16.mxu0 0
    %2009 = vmatpush2.bf16.msra.mxu0 0
    %2010 = vmatprep.subr.bf16.mxu0 0
    %2011 = vmatpush2.bf16.msra.mxu0 0
    %2012 = vmatprep.subr.bf16.mxu0 0
    %2013 = vmatpush2.bf16.msra.mxu0 0
    %2014 = vmatprep.subr.bf16.mxu0 0
    %2015 = vmatpush2.bf16.msra.mxu0 0
    %2016 = vmatprep.mubr.bf16.mxu0 0
    %2017 = vmatmul.mubr.bf16.gmra.mxu0 %v1982
    %v2018 = vpop.f32.mrf.mxu0
    %v2019 = vadd.f32 %v783, %v2018
    %v2020 = vpop.f32.mrf.mxu0
    %v2021 = vpop.f32.mrf.mxu0
    %v2022 = vpop.f32.mrf.mxu0
    %2023 = vdwg.mxu0
    %2024 = vmatprep.subr.bf16.mxu0 0
    %2025 = vmatpush1.bf16.msra.mxu0 0
    %2026 = vmatprep.subr.bf16.mxu0 0
    %2027 = vmatpush1.bf16.msra.mxu0 0
    %2028 = vmatprep.subr.bf16.mxu0 0
    %2029 = vmatpush1.bf16.msra.mxu0 0
    %2030 = vmatprep.subr.bf16.mxu0 0
    %2031 = vmatpush1.bf16.msra.mxu0 0
    %2032 = vmatprep.subr.bf16.mxu0 0
    %2033 = vmatpush1.bf16.msra.mxu0 0
    %2034 = vmatprep.subr.bf16.mxu0 0
    %2035 = vmatpush1.bf16.msra.mxu0 0
    %2036 = vmatprep.subr.bf16.mxu0 0
    %2037 = vmatpush1.bf16.msra.mxu0 %v853
    %2038 = vmatprep.subr.bf16.mxu0 0
    %2039 = vmatpush1.bf16.msra.mxu0 %v852
    %2040 = vmatprep.subr.bf16.mxu0 0
    %2041 = vmatpush2.bf16.msra.mxu0 0
    %2042 = vmatprep.subr.bf16.mxu0 0
    %2043 = vmatpush2.bf16.msra.mxu0 0
    %2044 = vmatprep.subr.bf16.mxu0 0
    %2045 = vmatpush2.bf16.msra.mxu0 0
    %2046 = vmatprep.subr.bf16.mxu0 0
    %2047 = vmatpush2.bf16.msra.mxu0 0
    %2048 = vmatprep.subr.bf16.mxu0 0
    %2049 = vmatpush2.bf16.msra.mxu0 0
    %2050 = vmatprep.subr.bf16.mxu0 0
    %2051 = vmatpush2.bf16.msra.mxu0 0
    %2052 = vmatprep.subr.bf16.mxu0 0
    %2053 = vmatpush2.bf16.msra.mxu0 0
    %2054 = vmatprep.subr.bf16.mxu0 0
    %2055 = vmatpush2.bf16.msra.mxu0 0
    %2056 = vmatprep.mubr.bf16.mxu0 0
    %2057 = vmatmul.mubr.bf16.gmra.mxu0 %v1931
    %v2058 = vpop.f32.mrf.mxu0
    %v2059 = vadd.f32 %v839, %v2058
    %v2060 = vpop.f32.mrf.mxu0
    %v2061 = vpop.f32.mrf.mxu0
    %v2062 = vpop.f32.mrf.mxu0
    %2063 = vdwg.mxu0
    %v2064 = vadd.f32 %v2019, %v2059
    %v2065 = vxor.u32 %v2064, 2147483648
    %v2066 = vmul.f32 %v2065, 1.442695
    %v2067 = vpow.pop %v2066
    %v2068 = vadd.f32 %v2067, 1.0
    %v2069 = vrcp.pop %v2068
    %v2070 = vmul.f32 1.0, %v2069
    %2072 = vrot.lane.b32.xlu0 %v2059, 64
    %v2073 = vpop.permute.xlu0 %2072
    %v2075 = vmul.f32 %v2070, %v2073
    %2077 = vrot.lane.b32.xlu0 %v2075, 64
    %v2078 = vpop.permute.xlu0 %2077
    %v2080 = vadd.f32 %v2019, %v2078
    %v2081 = vtanh.pop %v2080
    %v2082 = vsub.f32 1.0, %v2070
    %2084 = vrot.lane.b32.xlu0 %v2081, 96
    %v2085 = vpop.permute.xlu0 %2084
    %v2087 = vmul.f32 %v2082, %v2085
    %v2088 = vmul.f32 %v2070, %v1925
    %v2089 = vadd.f32 %v2087, %v2088
    %v2090 = vpack.c.bf16 %v2089, %v2089
    %2092 = vrot.lane.b32.xlu0 %v2090, 96
    %v2093 = vpop.permute.xlu0 %2092
    %v2095 = vsel %vm191, %v2093, 0
    %2097 = vmatprep.subr.bf16.mxu0 0
    %2098 = vmatpush1.bf16.msra.mxu0 0
    %2099 = vmatprep.subr.bf16.mxu0 0
    %2100 = vmatpush1.bf16.msra.mxu0 0
    %2101 = vmatprep.subr.bf16.mxu0 0
    %2102 = vmatpush1.bf16.msra.mxu0 0
    %2103 = vmatprep.subr.bf16.mxu0 0
    %2104 = vmatpush1.bf16.msra.mxu0 0
    %2105 = vmatprep.subr.bf16.mxu0 0
    %2106 = vmatpush1.bf16.msra.mxu0 0
    %2107 = vmatprep.subr.bf16.mxu0 0
    %2108 = vmatpush1.bf16.msra.mxu0 0
    %2109 = vmatprep.subr.bf16.mxu0 0
    %2110 = vmatpush1.bf16.msra.mxu0 %v944
    %2111 = vmatprep.subr.bf16.mxu0 0
    %2112 = vmatpush1.bf16.msra.mxu0 %v943
    %2113 = vmatprep.subr.bf16.mxu0 0
    %2114 = vmatpush2.bf16.msra.mxu0 0
    %2115 = vmatprep.subr.bf16.mxu0 0
    %2116 = vmatpush2.bf16.msra.mxu0 0
    %2117 = vmatprep.subr.bf16.mxu0 0
    %2118 = vmatpush2.bf16.msra.mxu0 0
    %2119 = vmatprep.subr.bf16.mxu0 0
    %2120 = vmatpush2.bf16.msra.mxu0 0
    %2121 = vmatprep.subr.bf16.mxu0 0
    %2122 = vmatpush2.bf16.msra.mxu0 0
    %2123 = vmatprep.subr.bf16.mxu0 0
    %2124 = vmatpush2.bf16.msra.mxu0 0
    %2125 = vmatprep.subr.bf16.mxu0 0
    %2126 = vmatpush2.bf16.msra.mxu0 0
    %2127 = vmatprep.subr.bf16.mxu0 0
    %2128 = vmatpush2.bf16.msra.mxu0 0
    %2129 = vmatprep.mubr.bf16.mxu0 0
    %2130 = vmatmul.mubr.bf16.gmra.mxu0 %v2095
    %v2131 = vpop.f32.mrf.mxu0
    %v2132 = vadd.f32 %v930, %v2131
    %v2133 = vpop.f32.mrf.mxu0
    %v2134 = vpop.f32.mrf.mxu0
    %v2135 = vpop.f32.mrf.mxu0
    %2136 = vdwg.mxu0
    %2138 = vrot.lane.b32.xlu0 %v1148, 16
    %v2139 = vpop.permute.xlu0 %2138
    %2142 = vrot.lane.b32.xlu0 %v1312, 32
    %v2143 = vpop.permute.xlu0 %2142
    %2146 = vrot.lane.b32.xlu0 %v1476, 48
    %v2147 = vpop.permute.xlu0 %2146
    %2150 = vrot.lane.b32.xlu0 %v1640, 64
    %v2151 = vpop.permute.xlu0 %2150
    %2154 = vrot.lane.b32.xlu0 %v1804, 80
    %v2155 = vpop.permute.xlu0 %2154
    %2158 = vrot.lane.b32.xlu0 %v1968, 96
    %v2159 = vpop.permute.xlu0 %2158
    %2162 = vrot.lane.b32.xlu0 %v2132, 112
    %v2163 = vpop.permute.xlu0 %2162
    %v2165 = vsel %vm95, %v985, %v2139
    %v2166 = vsel %vm191, %v2165, %v2143
    %vm2167 = vcmask 392192
    %v2168 = vsel %vm2167, %v2166, %v2147
    %vm2169 = vcmask 523264
    %v2170 = vsel %vm2169, %v2168, %v2151
    %vm2171 = vcmask 654336
    %v2172 = vsel %vm2171, %v2170, %v2155
    %vm2173 = vcmask 785408
    %v2174 = vsel %vm2173, %v2172, %v2159
    %vm2175 = vcmask 916480
    %v2176 = vsel %vm2175, %v2174, %v2163
    %2177 = vst [vmem:[#allocation4] sm:$0xff] %v2176
    // Predicated region
    $region46: #{tpu_custom_call.1} parent=1 // pred_check
      _
    $region47: #{tpu_custom_call.1} parent=1 // pred_check_branch
      %2179 = sbr.rel (0) target = $region49
    $region48: #{tpu_custom_call.1} parent=1 // pred_region
      %s2181 = ssub.s32 128, 128
      %2182 = vsyncadd [#allocation5], %s2181
      %s2184 = sshll.u32 [#allocation4], 4
      %s2185 = int_to_ptr.vmem [resolvable:$true] %s2184
      %2187 = dma.vmem_to_hbm [thread:$0]  %s2185, 128, %s12, [#allocation5]
    $region49: #{tpu_custom_call.1} parent=1 // pred_fallthru
      _
    // Predicated region
    $region50: #{tpu_custom_call.1} parent=1 // pred_check
      _
    $region51: #{tpu_custom_call.1} parent=1 // pred_check_branch
      %2189 = sbr.rel (0) target = $region53
    $region52: #{tpu_custom_call.1} parent=1 // pred_region
      %s2191 = ssub.s32 128, 128
      %2192 = vsyncadd [#allocation7], %s2191
      %s2194 = sshll.u32 [#allocation6], 4
      %s2195 = int_to_ptr.vmem [resolvable:$true] %s2194
      %2197 = dma.vmem_to_hbm [thread:$0]  %s2195, 128, %s13, [#allocation7]
    $region53: #{tpu_custom_call.1} parent=1 // pred_fallthru
      _
    // Predicated region
    $region54: #{tpu_custom_call.1} parent=1 // pred_check
      _
    $region55: #{tpu_custom_call.1} parent=1 // pred_check_branch
      %2199 = sbr.rel (0) target = $region57
    $region56: #{tpu_custom_call.1} parent=1 // pred_region
      %2200 = dma.done [#allocation5], 128
    $region57: #{tpu_custom_call.1} parent=1 // pred_fallthru
      _
    // Predicated region
    $region58: #{tpu_custom_call.1} parent=1 // pred_check
      _
    $region59: #{tpu_custom_call.1} parent=1 // pred_check_branch
      %2202 = sbr.rel (0) target = $region61
    $region60: #{tpu_custom_call.1} parent=1 // pred_region
      %2203 = dma.done [#allocation7], 128
    $region61: #{tpu_custom_call.1} parent=1 // pred_fallthru
      _
    %2204 = vsyncpa [#allocation5], 1
    %2205 = vsyncpa [#allocation7], 1

</llo_original>
